<compile_context>
chip_gen: v5e
topology: v5e:2x2
jax: 0.10.0
libtpu: 0.0.40
codegen_flags: <defaults>
</compile_context>

<pallas_src>
import functools

import numpy as np
import jax
import jax.numpy as jnp
from jax.experimental import pallas as pl
from jax.experimental.pallas import tpu as pltpu


NUM_CLASSES = 4
HEAD_DIM = 32
STRIDES = (4, 8)
LANES = 128      # lane-dense width for prediction / output slabs
K1_PAD = 128     # conv1 im2col K (= 9 * in_ch) padded to one full lane group
REG_LANE = 8     # box (l,t,r,b) live in output lanes [8:12)


# -----------------------------------------------------------------------------
# Parameters (deterministic synthetic init; same structure as before)
# -----------------------------------------------------------------------------
def init_params(key, in_ch, head_dim, num_classes, num_tower=2):
    keys = iter(jax.random.split(key, 32))

    def conv_p(cin, cout, k):
        w = jax.random.normal(next(keys), (k, k, cin, cout), jnp.float32)
        w = w * (1.0 / (k * k * cin) ** 0.5)
        b = jnp.zeros((cout,), jnp.float32)
        return (w, b)

    backbone = {
        "conv1": conv_p(in_ch, 16, 3),           # stride 2
        "conv2": conv_p(16, head_dim, 3),        # stride 2 -> C4 (stride 4)
        "conv3": conv_p(head_dim, head_dim, 3),  # stride 2 -> C5 (stride 8)
    }
    fpn = {
        "lat4": conv_p(head_dim, head_dim, 1),
        "lat5": conv_p(head_dim, head_dim, 1),
        "out4": conv_p(head_dim, head_dim, 3),
        "out5": conv_p(head_dim, head_dim, 3),
    }
    head = {
        "cls_tower": [conv_p(head_dim, head_dim, 3) for _ in range(num_tower)],
        "reg_tower": [conv_p(head_dim, head_dim, 3) for _ in range(num_tower)],
        "cls_pred": conv_p(head_dim, num_classes, 3),
        "reg_pred": conv_p(head_dim, 4, 3),
        "pss_pred": conv_p(head_dim, 1, 3),
    }
    return {"backbone": backbone, "fpn": fpn, "head": head}


# -----------------------------------------------------------------------------
# Host-side constant packing (selection matrices + weight slabs)
# -----------------------------------------------------------------------------
def _sel_taps(h_in, w_in, stride):
    """(9, M_out, M_in) 0/1 selection matrices of a 3x3 / pad-1 conv."""
    h_out = (h_in + 2 - 3) // stride + 1
    w_out = (w_in + 2 - 3) // stride + 1
    r = np.zeros((9, h_out * w_out, h_in * w_in), np.float32)
    for yo in range(h_out):
        for xo in range(w_out):
            ro = yo * w_out + xo
            for i in range(3):
                for j in range(3):
                    yi, xi = yo * stride + i - 1, xo * stride + j - 1
                    if 0 <= yi < h_in and 0 <= xi < w_in:
                        r[i * 3 + j, ro, yi * w_in + xi] = 1.0
    return r, h_out, w_out


def _pad_taps(taps, m_out, m_in):
    t = np.zeros((taps.shape[0], m_out, m_in), np.float32)
    t[:, : taps.shape[1], : taps.shape[2]] = taps
    return t


def _stack_taps(taps):  # (9, m, n) -> (9m, n); tap k occupies rows [k*m, (k+1)*m)
    return taps.reshape(taps.shape[0] * taps.shape[1], taps.shape[2])


def _build_slab(entries, dtype):
    """Stack 2-D constants into one (rows, 128) slab; every entry starts at a
    multiple-of-8 row so in-kernel static slices are sublane aligned."""
    idx, blocks, off = {}, [], 0
    for name, arr in entries:
        arr = np.asarray(arr, np.float32)
        r, c = arr.shape
        rp = ((r + 7) // 8) * 8
        blk = np.zeros((rp, LANES), np.float32)
        blk[:r, :c] = arr
        idx[name] = (off, r, c)
        blocks.append(blk)
        off += rp
    return jnp.asarray(np.concatenate(blocks, axis=0), dtype), idx


def pack_operands(params, num_classes, head_dim, in_hw):
    """Pack all constants into (bf16 slab, f32 slab) + index maps + geometry."""
    C = head_dim
    nc = num_classes
    bb, fpn, head = params["backbone"], params["fpn"], params["head"]

    def w9(w):  # (3,3,cin,cout) -> (9,cin,cout)
        w = np.asarray(w, np.float32)
        return w.reshape(9, w.shape[2], w.shape[3])

    def flat9(w):  # (9,cin,cout) -> (9*cin, cout)
        return w.reshape(w.shape[0] * w.shape[1], w.shape[2])

    # ---- geometry (square input assumed, as in the toy config) ----
    h1 = (in_hw + 2 - 3) // 2 + 1        # conv1 out grid (8)
    r2, h4, _ = _sel_taps(h1, h1, 2)     # (9,16,64)  conv2, stride 2
    r3, h5, _ = _sel_taps(h4, h4, 2)     # (9,4,16)   conv3, stride 2
    r4, _, _ = _sel_taps(h4, h4, 1)      # (9,16,16)  stride 1, level 0
    r5, _, _ = _sel_taps(h5, h5, 1)      # (9,4,4)    stride 1, level 1
    m4, m5 = h4 * h4, h5 * h5            # 16, 4
    m5p = 8                              # level-1 rows padded to one sublane tile
    mh = m4 + m5p                        # 24 stacked rows (multiple of 8)

    r3p = _pad_taps(r3, m5p, m4)         # pad conv3 output rows 4..7 (zero taps)
    r5p = _pad_taps(r5, m5p, m5p)        # pad rows and input columns

    # stride-1 selection over the stacked 24-row feature (block diagonal)
    rh = np.zeros((9, mh, mh), np.float32)
    rh[:, :m4, :m4] = r4
    rh[:, m4:, m4:] = r5p

    # FPN out-conv selections place each level directly into the 24-row layout
    r4s = np.zeros((9, mh, m4), np.float32); r4s[:, :m4, :] = r4
    r5s = np.zeros((9, mh, m5p), np.float32); r5s[:, m4:, :] = r5p

    # nearest 2x upsample p5 -> p4 (reads only real p5 rows)
    u = np.zeros((m4, m5p), np.float32)
    for y in range(h4):
        for x in range(h4):
            u[y * h4 + x, (y // 2) * h5 + (x // 2)] = 1.0

    # ---- weights ----
    w1, b1 = bb["conv1"]
    cin1, cout1 = w1.shape[2], w1.shape[3]
    w1f = np.zeros((K1_PAD, cout1), np.float32)
    w1f[: 9 * cin1] = np.asarray(w1, np.float32).reshape(9 * cin1, cout1)

    w2, b2 = bb["conv2"]
    w3, b3 = bb["conv3"]
    wl4, bl4 = fpn["lat4"]
    wl5, bl5 = fpn["lat5"]
    wo4, bo4 = fpn["out4"]
    wo5, bo5 = fpn["out5"]
    (wct1, bct1), (wct2, bct2) = head["cls_tower"]
    (wrt1, brt1), (wrt2, brt2) = head["reg_tower"]
    wcls, bcls = head["cls_pred"]
    wreg, breg = head["reg_pred"]
    wpss, bpss = head["pss_pred"]

    # FPN out convs emit duplicated 64-lane output (lanes 0:32 == 32:64) so the
    # packed two-tower head input needs no in-kernel lane concat.
    wo4d = np.concatenate([w9(wo4), w9(wo4)], axis=-1)       # (9,32,64)
    wo5d = np.concatenate([w9(wo5), w9(wo5)], axis=-1)
    bo45 = np.zeros((mh, 2 * C), np.float32)
    bo45[:m4, :] = np.concatenate([np.asarray(bo4), np.asarray(bo4)])
    bo45[m4:, :] = np.concatenate([np.asarray(bo5), np.asarray(bo5)])

    # block-diagonal cls/reg tower weights: one shared-shift conv per depth
    def blockdiag(wc, wr):
        w = np.zeros((9, 2 * C, 2 * C), np.float32)
        w[:, :C, :C] = w9(wc)
        w[:, C:, C:] = w9(wr)
        return w

    wt1 = blockdiag(wct1, wrt1)
    wt2 = blockdiag(wct2, wrt2)
    bt1 = np.concatenate([np.asarray(bct1), np.asarray(brt1)]).reshape(1, -1)
    bt2 = np.concatenate([np.asarray(bct2), np.asarray(brt2)]).reshape(1, -1)

    # merged prediction head: cls | pss (replicated) | reg in ONE (9,64,128) weight
    wpred = np.zeros((9, 2 * C, LANES), np.float32)
    wpred[:, :C, 0:nc] = w9(wcls)
    wpred[:, :C, nc:2 * nc] = np.broadcast_to(w9(wpss), (9, C, nc))
    wpred[:, C:, REG_LANE:REG_LANE + 4] = w9(wreg)
    bpred = np.zeros((1, LANES), np.float32)
    bpred[0, 0:nc] = np.asarray(bcls)
    bpred[0, nc:2 * nc] = np.asarray(bpss)[0]
    bpred[0, REG_LANE:REG_LANE + 4] = np.asarray(breg)

    # anchors + signed ltrb scale, at the reg lanes; pad rows stay zero
    anch = np.zeros((mh, LANES), np.float32)
    scale = np.zeros((mh, LANES), np.float32)

    def fill(base, hh, s):
        for y in range(hh):
            for x in range(hh):
                r_ = base + y * hh + x
                ax, ay = (x + 0.5) * s, (y + 0.5) * s
                anch[r_, REG_LANE:REG_LANE + 4] = (ax, ay, ax, ay)
                scale[r_, REG_LANE:REG_LANE + 4] = (-s, -s, s, s)

    fill(0, h4, STRIDES[0])
    fill(m4, h5, STRIDES[1])

    bf_entries = [
        ("w1", w1f),
        ("w2", flat9(w9(w2))), ("w3", flat9(w9(w3))),
        ("wl4", np.asarray(wl4, np.float32).reshape(C, C)),
        ("wl5", np.asarray(wl5, np.float32).reshape(C, C)),
        ("wo4", flat9(wo4d)), ("wo5", flat9(wo5d)),
        ("wt1", flat9(wt1)), ("wt2", flat9(wt2)),
        ("wpred", flat9(wpred)),
        ("r2", _stack_taps(r2)), ("r3", _stack_taps(r3p)),
        ("r4", _stack_taps(r4s)), ("r5", _stack_taps(r5s)),
        ("rh", _stack_taps(rh)), ("u", u),
    ]
    f32_entries = [
        ("b1", np.asarray(b1).reshape(1, -1)),
        ("b2", np.asarray(b2).reshape(1, -1)),
        ("b3", np.asarray(b3).reshape(1, -1)),
        ("bl4", np.asarray(bl4).reshape(1, -1)),
        ("bl5", np.asarray(bl5).reshape(1, -1)),
        ("bo45", bo45),
        ("bt1", bt1), ("bt2", bt2), ("bpred", bpred),
        ("anch", anch), ("scale", scale),
    ]

    cbf, bf_idx = _build_slab(bf_entries, jnp.bfloat16)
    cf32, f32_idx = _build_slab(f32_entries, jnp.float32)

    geom = {"m4": m4, "m5p": m5p, "mh": mh, "C": C}
    meta = {"levels": ((0, m4), (m4, m5))}   # (row_start, valid_rows) per level
    return cbf, cf32, bf_idx, f32_idx, geom, meta


# -----------------------------------------------------------------------------
# The single fused Pallas kernel
# -----------------------------------------------------------------------------
def make_kernel(bf_idx, f32_idx, geom, num_classes):
    m4, m5p, mh, C = geom["m4"], geom["m5p"], geom["mh"], geom["C"]
    nc = num_classes

    def kernel(xp_ref, cbf_ref, cf_ref, scores_ref, boxes_ref):
        f32, bf16 = jnp.float32, jnp.bfloat16

        def wmat(name):                       # whole bf16 constant (static slice)
            off, r, c = bf_idx[name]
            return cbf_ref[off:off + r, 0:c]

        def wtap(name, k, cin):               # tap k of a flattened (9*cin, cout)
            off, _, c = bf_idx[name]
            return cbf_ref[off + k * cin: off + (k + 1) * cin, 0:c]

        def fmat(name):                       # f32 constant (bias / anchors)
            off, r, c = f32_idx[name]
            return cf_ref[off:off + r, 0:c]

        def mm(a, b):
            return jnp.dot(a, b, preferred_element_type=f32)

        def relu(v):
            return jnp.maximum(v, 0.0)

        def conv3x3(x_bf, r_name, w_name, b_name, m, cin):
            # ONE stacked-selection GEMM (all 9 taps), sublane-aligned tap
            # slices, 9 weight GEMMs, tree-reduced partial sums.
            s = mm(wmat(r_name), x_bf).astype(bf16)          # (9m, cin), exact
            parts = [mm(s[k * m:(k + 1) * m, :], wtap(w_name, k, cin))
                     for k in range(9)]
            while len(parts) > 1:
                nxt = [parts[i] + parts[i + 1] for i in range(0, len(parts) - 1, 2)]
                if len(parts) % 2:
                    nxt.append(parts[-1])
                parts = nxt
            out = parts[0]
            if b_name is not None:
                out = out + fmat(b_name)
            return out

        # ---- backbone (conv1 arrives pre-im2col'd; conv2/conv3 stride 2) ----
        f1 = relu(mm(xp_ref[...], wmat("w1")) + fmat("b1"))             # (64,16)
        c4 = relu(conv3x3(f1.astype(bf16), "r2", "w2", "b2", m4, 16))   # (16,32)
        c5 = relu(conv3x3(c4.astype(bf16), "r3", "w3", "b3", m5p, C))   # (8,32)

        # ---- FPN ----
        c4b = c4.astype(bf16)
        p5 = mm(c5.astype(bf16), wmat("wl5")) + fmat("bl5")             # (8,32)
        p5b = p5.astype(bf16)
        p4 = mm(c4b, wmat("wl4")) + fmat("bl4") + mm(wmat("u"), p5b)    # (16,32)
        # out convs place each level directly into the stacked 24-row layout
        # and emit duplicated 64-lane features (cls copy | reg copy).
        p4x = conv3x3(p4.astype(bf16), "r4", "wo4", None, mh, C)        # (24,64)
        p5x = conv3x3(p5b, "r5", "wo5", None, mh, C)                    # (24,64)
        x0 = p4x + p5x + fmat("bo45")                                   # (24,64)

        # ---- lane-packed two-tower head (block-diagonal weights) ----
        t = relu(conv3x3(x0.astype(bf16), "rh", "wt1", "bt1", mh, 2 * C))
        t = relu(conv3x3(t.astype(bf16), "rh", "wt2", "bt2", mh, 2 * C))
        pred = conv3x3(t.astype(bf16), "rh", "wpred", "bpred", mh, 2 * C)  # (24,128)

        # ---- fused PSS scoring + FCOS box decode; lane-dense (24,128) stores
        sig = jax.nn.sigmoid(pred)
        # cls logits in lanes [0:nc), pss logit replicated in lanes [nc:2nc)
        scores_ref[...] = sig * sig[:, nc:nc + 1]
        # reg ltrb in lanes [8:12); anchors/scale zero elsewhere
        boxes_ref[...] = fmat("anch") + relu(pred) * fmat("scale")

    return kernel


def fcos_fused_forward(cbf, cf32, x_patches, *, bf_idx, f32_idx, geom, num_classes):
    """x_patches: (B, 64, 128) bf16 im2col of conv1.
    Returns (scores, boxes): each (B, 24, 128) f32; scores valid in lanes [0:NC),
    boxes in lanes [8:12); rows [20:24) are padding."""
    B, rows_in, k_in = x_patches.shape
    mh = geom["mh"]
    kernel = make_kernel(bf_idx, f32_idx, geom, num_classes)
    out_sds = jax.ShapeDtypeStruct((B, mh, LANES), jnp.float32)
    return pl.pallas_call(
        kernel,
        out_shape=(out_sds, out_sds),
        grid=(B,),
        in_specs=[
            pl.BlockSpec((None, rows_in, k_in), lambda b: (b, 0, 0)),
            pl.BlockSpec(cbf.shape, lambda b: (0, 0)),
            pl.BlockSpec(cf32.shape, lambda b: (0, 0)),
        ],
        out_specs=(
            pl.BlockSpec((None, mh, LANES), lambda b: (b, 0, 0)),
            pl.BlockSpec((None, mh, LANES), lambda b: (b, 0, 0)),
        ),
        compiler_params=pltpu.CompilerParams(
            dimension_semantics=("parallel",)),   # one image per TC on v7x
    )(x_patches, cbf, cf32)


# -----------------------------------------------------------------------------
# Inference wrapper (conv1 im2col + post-process stay in XLA)
# -----------------------------------------------------------------------------
def fcos_pss_inference(cbf, cf32, src_nchw, *, bf_idx, f32_idx, geom, meta,
                       num_classes, conf_thresh, topk_results):
    x = jnp.transpose(src_nchw, (0, 2, 3, 1)).astype(jnp.float32)   # NCHW -> NHWC
    B, H, W, Cin = x.shape

    # conv1 (3x3, stride 2, pad 1) im2col; everything after it runs fused in VMEM.
    xp = jnp.pad(x, ((0, 0), (1, 1), (1, 1), (0, 0)))
    Hout = (H + 2 - 3) // 2 + 1
    Wout = (W + 2 - 3) // 2 + 1
    cols = [xp[:, i:i + 2 * Hout:2, j:j + 2 * Wout:2, :]
            for i in range(3) for j in range(3)]
    patches = jnp.concatenate(cols, axis=-1).reshape(B, Hout * Wout, 9 * Cin)
    patches = jnp.pad(patches, ((0, 0), (0, 0), (0, K1_PAD - 9 * Cin)))
    patches = patches.astype(jnp.bfloat16)

    scores_all, boxes_all = fcos_fused_forward(
        cbf, cf32, patches, bf_idx=bf_idx, f32_idx=f32_idx, geom=geom,
        num_classes=num_classes)

    # post-process: batch element 0 only (as in the reference post_process)
    scores_b0 = scores_all[0]
    boxes_b0 = boxes_all[0]
    all_scores, all_labels, all_bboxes, all_keep = [], [], [], []
    for start, hw in meta["levels"]:
        sc = scores_b0[start:start + hw, 0:num_classes].reshape(-1)   # (HW*C,)
        bx = boxes_b0[start:start + hw, REG_LANE:REG_LANE + 4]        # (HW, 4)
        num_topk = min(topk_results, hw)
        topk_scores, topk_idxs = jax.lax.top_k(sc, num_topk)
        # TODO(synk): PyTorch drops entries below conf_thresh (dynamic shape);
        # fixed-size top-k results plus a validity mask are returned instead.
        keep = topk_scores > conf_thresh
        labels = topk_idxs % num_classes
        anchor_idxs = topk_idxs // num_classes
        all_scores.append(topk_scores)
        all_labels.append(labels)
        all_bboxes.append(bx[anchor_idxs])
        all_keep.append(keep)

    bboxes = jnp.concatenate(all_bboxes, axis=0)
    scores = jnp.concatenate(all_scores, axis=0)
    labels = jnp.concatenate(all_labels, axis=0)
    keep = jnp.concatenate(all_keep, axis=0)
    Hin, Win = src_nchw.shape[-2], src_nchw.shape[-1]
    norm = jnp.array([Win, Hin, Win, Hin], jnp.float32)
    bboxes = jnp.clip(bboxes / norm, 0.0, 1.0)
    return {"scores": scores, "labels": labels, "bboxes": bboxes, "keep": keep}


# -----------------------------------------------------------------------------
# main
# -----------------------------------------------------------------------------
if __name__ == "__main__":
    key = jax.random.PRNGKey(0)
    k_in, k_par = jax.random.split(key)

    src = jax.random.normal(k_in, (2, 4, 16, 16), jnp.float32)   # NCHW, like PyTorch
    params = init_params(k_par, in_ch=4, head_dim=HEAD_DIM, num_classes=NUM_CLASSES)
    cbf, cf32, bf_idx, f32_idx, geom, meta = pack_operands(
        params, NUM_CLASSES, HEAD_DIM, in_hw=src.shape[-1])

    run = jax.jit(functools.partial(
        fcos_pss_inference,
        bf_idx=bf_idx, f32_idx=f32_idx, geom=geom, meta=meta,
        num_classes=NUM_CLASSES, conf_thresh=0.05, topk_results=1000))

    outputs = run(cbf, cf32, src)
    jax.block_until_ready(outputs)

    assert outputs["bboxes"].shape[-1] == 4
    assert outputs["scores"].shape == outputs["labels"].shape
    print("KERNEL_OK")
</pallas_src>

<mosaic_0001>
module attributes {stable_mosaic.version = 11 : i64} {
  func.func @kernel(%arg0: i32, %arg1: memref<1x64x128xbf16, #tpu.memory_space<vmem>>, %arg2: memref<3808x128xbf16, #tpu.memory_space<vmem>>, %arg3: memref<136x128xf32, #tpu.memory_space<vmem>>, %arg4: memref<1x24x128xf32, #tpu.memory_space<vmem>>, %arg5: memref<1x24x128xf32, #tpu.memory_space<vmem>>) attributes {dimension_semantics = [#tpu.dimension_semantics<parallel>], iteration_bounds = array<i64: 2>, scalar_prefetch = 0 : i64, scratch_operands = 0 : i64, tpu.core_type = #tpu.core_type<tc>, window_params = [{transform_indices = @transform_0, window_bounds = array<i64: 1, 64, 128>}, {pipeline_mode = #tpu.pipeline_mode<synchronous>, transform_indices = @transform_1, window_bounds = array<i64: 3808, 128>}, {pipeline_mode = #tpu.pipeline_mode<synchronous>, transform_indices = @transform_2, window_bounds = array<i64: 136, 128>}, {transform_indices = @transform_3, window_bounds = array<i64: 1, 24, 128>}, {transform_indices = @transform_4, window_bounds = array<i64: 1, 24, 128>}]} {
    %c0 = arith.constant 0 : index
    %c0_0 = arith.constant 0 : index
    %c0_1 = arith.constant 0 : index
    %0 = vector.load %arg1[%c0, %c0_0, %c0_1] : memref<1x64x128xbf16, #tpu.memory_space<vmem>>, vector<1x64x128xbf16>
    %1 = vector.shape_cast %0 : vector<1x64x128xbf16> to vector<64x128xbf16>
    %c0_2 = arith.constant 0 : index
    %c0_3 = arith.constant 0 : index
    %2 = vector.load %arg2[%c0_2, %c0_3] : memref<3808x128xbf16, #tpu.memory_space<vmem>>, vector<128x16xbf16>
    %cst = arith.constant dense<0.000000e+00> : vector<64x16xf32>
    %3 = tpu.matmul %1, %2, %cst {dimension_numbers = #tpu.dot_dimension_numbers<[1], [0], [0], [1], [0, 0, 1, 1], [], []>} : vector<64x128xbf16>, vector<128x16xbf16>, vector<64x16xf32> -> vector<64x16xf32>
    %c0_4 = arith.constant 0 : index
    %c0_5 = arith.constant 0 : index
    %4 = vector.load %arg3[%c0_4, %c0_5] : memref<136x128xf32, #tpu.memory_space<vmem>>, vector<1x16xf32>
    %5 = vector.broadcast %4 : vector<1x16xf32> to vector<64x16xf32>
    %6 = arith.addf %3, %5 : vector<64x16xf32>
    %cst_6 = arith.constant 0.000000e+00 : f32
    %7 = vector.broadcast %cst_6 : f32 to vector<64x16xf32>
    %8 = arith.maximumf %6, %7 : vector<64x16xf32>
    %9 = arith.truncf %8 : vector<64x16xf32> to vector<64x16xbf16>
    %c2928 = arith.constant 2928 : index
    %c0_7 = arith.constant 0 : index
    %10 = vector.load %arg2[%c2928, %c0_7] : memref<3808x128xbf16, #tpu.memory_space<vmem>>, vector<144x64xbf16>
    %cst_8 = arith.constant dense<0.000000e+00> : vector<144x16xf32>
    %11 = tpu.matmul %10, %9, %cst_8 {dimension_numbers = #tpu.dot_dimension_numbers<[1], [0], [0], [1], [0, 0, 1, 1], [], []>} : vector<144x64xbf16>, vector<64x16xbf16>, vector<144x16xf32> -> vector<144x16xf32>
    %12 = arith.truncf %11 : vector<144x16xf32> to vector<144x16xbf16>
    %13 = vector.extract_strided_slice %12 {offsets = [0, 0], sizes = [16, 16], strides = [1, 1]} : vector<144x16xbf16> to vector<16x16xbf16>
    %c128 = arith.constant 128 : index
    %c0_9 = arith.constant 0 : index
    %14 = vector.load %arg2[%c128, %c0_9] : memref<3808x128xbf16, #tpu.memory_space<vmem>>, vector<16x32xbf16>
    %cst_10 = arith.constant dense<0.000000e+00> : vector<16x32xf32>
    %15 = tpu.matmul %13, %14, %cst_10 {dimension_numbers = #tpu.dot_dimension_numbers<[1], [0], [0], [1], [0, 0, 1, 1], [], []>} : vector<16x16xbf16>, vector<16x32xbf16>, vector<16x32xf32> -> vector<16x32xf32>
    %16 = vector.extract_strided_slice %12 {offsets = [16, 0], sizes = [16, 16], strides = [1, 1]} : vector<144x16xbf16> to vector<16x16xbf16>
    %c144 = arith.constant 144 : index
    %c0_11 = arith.constant 0 : index
    %17 = vector.load %arg2[%c144, %c0_11] : memref<3808x128xbf16, #tpu.memory_space<vmem>>, vector<16x32xbf16>
    %cst_12 = arith.constant dense<0.000000e+00> : vector<16x32xf32>
    %18 = tpu.matmul %16, %17, %cst_12 {dimension_numbers = #tpu.dot_dimension_numbers<[1], [0], [0], [1], [0, 0, 1, 1], [], []>} : vector<16x16xbf16>, vector<16x32xbf16>, vector<16x32xf32> -> vector<16x32xf32>
    %19 = vector.extract_strided_slice %12 {offsets = [32, 0], sizes = [16, 16], strides = [1, 1]} : vector<144x16xbf16> to vector<16x16xbf16>
    %c160 = arith.constant 160 : index
    %c0_13 = arith.constant 0 : index
    %20 = vector.load %arg2[%c160, %c0_13] : memref<3808x128xbf16, #tpu.memory_space<vmem>>, vector<16x32xbf16>
    %cst_14 = arith.constant dense<0.000000e+00> : vector<16x32xf32>
    %21 = tpu.matmul %19, %20, %cst_14 {dimension_numbers = #tpu.dot_dimension_numbers<[1], [0], [0], [1], [0, 0, 1, 1], [], []>} : vector<16x16xbf16>, vector<16x32xbf16>, vector<16x32xf32> -> vector<16x32xf32>
    %22 = vector.extract_strided_slice %12 {offsets = [48, 0], sizes = [16, 16], strides = [1, 1]} : vector<144x16xbf16> to vector<16x16xbf16>
    %c176 = arith.constant 176 : index
    %c0_15 = arith.constant 0 : index
    %23 = vector.load %arg2[%c176, %c0_15] : memref<3808x128xbf16, #tpu.memory_space<vmem>>, vector<16x32xbf16>
    %cst_16 = arith.constant dense<0.000000e+00> : vector<16x32xf32>
    %24 = tpu.matmul %22, %23, %cst_16 {dimension_numbers = #tpu.dot_dimension_numbers<[1], [0], [0], [1], [0, 0, 1, 1], [], []>} : vector<16x16xbf16>, vector<16x32xbf16>, vector<16x32xf32> -> vector<16x32xf32>
    %25 = vector.extract_strided_slice %12 {offsets = [64, 0], sizes = [16, 16], strides = [1, 1]} : vector<144x16xbf16> to vector<16x16xbf16>
    %c192 = arith.constant 192 : index
    %c0_17 = arith.constant 0 : index
    %26 = vector.load %arg2[%c192, %c0_17] : memref<3808x128xbf16, #tpu.memory_space<vmem>>, vector<16x32xbf16>
    %cst_18 = arith.constant dense<0.000000e+00> : vector<16x32xf32>
    %27 = tpu.matmul %25, %26, %cst_18 {dimension_numbers = #tpu.dot_dimension_numbers<[1], [0], [0], [1], [0, 0, 1, 1], [], []>} : vector<16x16xbf16>, vector<16x32xbf16>, vector<16x32xf32> -> vector<16x32xf32>
    %28 = vector.extract_strided_slice %12 {offsets = [80, 0], sizes = [16, 16], strides = [1, 1]} : vector<144x16xbf16> to vector<16x16xbf16>
    %c208 = arith.constant 208 : index
    %c0_19 = arith.constant 0 : index
    %29 = vector.load %arg2[%c208, %c0_19] : memref<3808x128xbf16, #tpu.memory_space<vmem>>, vector<16x32xbf16>
    %cst_20 = arith.constant dense<0.000000e+00> : vector<16x32xf32>
    %30 = tpu.matmul %28, %29, %cst_20 {dimension_numbers = #tpu.dot_dimension_numbers<[1], [0], [0], [1], [0, 0, 1, 1], [], []>} : vector<16x16xbf16>, vector<16x32xbf16>, vector<16x32xf32> -> vector<16x32xf32>
    %31 = vector.extract_strided_slice %12 {offsets = [96, 0], sizes = [16, 16], strides = [1, 1]} : vector<144x16xbf16> to vector<16x16xbf16>
    %c224 = arith.constant 224 : index
    %c0_21 = arith.constant 0 : index
    %32 = vector.load %arg2[%c224, %c0_21] : memref<3808x128xbf16, #tpu.memory_space<vmem>>, vector<16x32xbf16>
    %cst_22 = arith.constant dense<0.000000e+00> : vector<16x32xf32>
    %33 = tpu.matmul %31, %32, %cst_22 {dimension_numbers = #tpu.dot_dimension_numbers<[1], [0], [0], [1], [0, 0, 1, 1], [], []>} : vector<16x16xbf16>, vector<16x32xbf16>, vector<16x32xf32> -> vector<16x32xf32>
    %34 = vector.extract_strided_slice %12 {offsets = [112, 0], sizes = [16, 16], strides = [1, 1]} : vector<144x16xbf16> to vector<16x16xbf16>
    %c240 = arith.constant 240 : index
    %c0_23 = arith.constant 0 : index
    %35 = vector.load %arg2[%c240, %c0_23] : memref<3808x128xbf16, #tpu.memory_space<vmem>>, vector<16x32xbf16>
    %cst_24 = arith.constant dense<0.000000e+00> : vector<16x32xf32>
    %36 = tpu.matmul %34, %35, %cst_24 {dimension_numbers = #tpu.dot_dimension_numbers<[1], [0], [0], [1], [0, 0, 1, 1], [], []>} : vector<16x16xbf16>, vector<16x32xbf16>, vector<16x32xf32> -> vector<16x32xf32>
    %37 = vector.extract_strided_slice %12 {offsets = [128, 0], sizes = [16, 16], strides = [1, 1]} : vector<144x16xbf16> to vector<16x16xbf16>
    %c256 = arith.constant 256 : index
    %c0_25 = arith.constant 0 : index
    %38 = vector.load %arg2[%c256, %c0_25] : memref<3808x128xbf16, #tpu.memory_space<vmem>>, vector<16x32xbf16>
    %cst_26 = arith.constant dense<0.000000e+00> : vector<16x32xf32>
    %39 = tpu.matmul %37, %38, %cst_26 {dimension_numbers = #tpu.dot_dimension_numbers<[1], [0], [0], [1], [0, 0, 1, 1], [], []>} : vector<16x16xbf16>, vector<16x32xbf16>, vector<16x32xf32> -> vector<16x32xf32>
    %40 = arith.addf %15, %18 : vector<16x32xf32>
    %41 = arith.addf %21, %24 : vector<16x32xf32>
    %42 = arith.addf %27, %30 : vector<16x32xf32>
    %43 = arith.addf %33, %36 : vector<16x32xf32>
    %44 = arith.addf %40, %41 : vector<16x32xf32>
    %45 = arith.addf %42, %43 : vector<16x32xf32>
    %46 = arith.addf %44, %45 : vector<16x32xf32>
    %47 = arith.addf %46, %39 : vector<16x32xf32>
    %c8 = arith.constant 8 : index
    %c0_27 = arith.constant 0 : index
    %48 = vector.load %arg3[%c8, %c0_27] : memref<136x128xf32, #tpu.memory_space<vmem>>, vector<1x32xf32>
    %49 = vector.broadcast %48 : vector<1x32xf32> to vector<16x32xf32>
    %50 = arith.addf %47, %49 : vector<16x32xf32>
    %cst_28 = arith.constant 0.000000e+00 : f32
    %51 = vector.broadcast %cst_28 : f32 to vector<16x32xf32>
    %52 = arith.maximumf %50, %51 : vector<16x32xf32>
    %53 = arith.truncf %52 : vector<16x32xf32> to vector<16x32xbf16>
    %c3072 = arith.constant 3072 : index
    %c0_29 = arith.constant 0 : index
    %54 = vector.load %arg2[%c3072, %c0_29] : memref<3808x128xbf16, #tpu.memory_space<vmem>>, vector<72x16xbf16>
    %cst_30 = arith.constant dense<0.000000e+00> : vector<72x32xf32>
    %55 = tpu.matmul %54, %53, %cst_30 {dimension_numbers = #tpu.dot_dimension_numbers<[1], [0], [0], [1], [0, 0, 1, 1], [], []>} : vector<72x16xbf16>, vector<16x32xbf16>, vector<72x32xf32> -> vector<72x32xf32>
    %56 = arith.truncf %55 : vector<72x32xf32> to vector<72x32xbf16>
    %57 = vector.extract_strided_slice %56 {offsets = [0, 0], sizes = [8, 32], strides = [1, 1]} : vector<72x32xbf16> to vector<8x32xbf16>
    %c272 = arith.constant 272 : index
    %c0_31 = arith.constant 0 : index
    %58 = vector.load %arg2[%c272, %c0_31] : memref<3808x128xbf16, #tpu.memory_space<vmem>>, vector<32x32xbf16>
    %cst_32 = arith.constant dense<0.000000e+00> : vector<8x32xf32>
    %59 = tpu.matmul %57, %58, %cst_32 {dimension_numbers = #tpu.dot_dimension_numbers<[1], [0], [0], [1], [0, 0, 1, 1], [], []>} : vector<8x32xbf16>, vector<32x32xbf16>, vector<8x32xf32> -> vector<8x32xf32>
    %60 = vector.extract_strided_slice %56 {offsets = [8, 0], sizes = [8, 32], strides = [1, 1]} : vector<72x32xbf16> to vector<8x32xbf16>
    %c304 = arith.constant 304 : index
    %c0_33 = arith.constant 0 : index
    %61 = vector.load %arg2[%c304, %c0_33] : memref<3808x128xbf16, #tpu.memory_space<vmem>>, vector<32x32xbf16>
    %cst_34 = arith.constant dense<0.000000e+00> : vector<8x32xf32>
    %62 = tpu.matmul %60, %61, %cst_34 {dimension_numbers = #tpu.dot_dimension_numbers<[1], [0], [0], [1], [0, 0, 1, 1], [], []>} : vector<8x32xbf16>, vector<32x32xbf16>, vector<8x32xf32> -> vector<8x32xf32>
    %63 = vector.extract_strided_slice %56 {offsets = [16, 0], sizes = [8, 32], strides = [1, 1]} : vector<72x32xbf16> to vector<8x32xbf16>
    %c336 = arith.constant 336 : index
    %c0_35 = arith.constant 0 : index
    %64 = vector.load %arg2[%c336, %c0_35] : memref<3808x128xbf16, #tpu.memory_space<vmem>>, vector<32x32xbf16>
    %cst_36 = arith.constant dense<0.000000e+00> : vector<8x32xf32>
    %65 = tpu.matmul %63, %64, %cst_36 {dimension_numbers = #tpu.dot_dimension_numbers<[1], [0], [0], [1], [0, 0, 1, 1], [], []>} : vector<8x32xbf16>, vector<32x32xbf16>, vector<8x32xf32> -> vector<8x32xf32>
    %66 = vector.extract_strided_slice %56 {offsets = [24, 0], sizes = [8, 32], strides = [1, 1]} : vector<72x32xbf16> to vector<8x32xbf16>
    %c368 = arith.constant 368 : index
    %c0_37 = arith.constant 0 : index
    %67 = vector.load %arg2[%c368, %c0_37] : memref<3808x128xbf16, #tpu.memory_space<vmem>>, vector<32x32xbf16>
    %cst_38 = arith.constant dense<0.000000e+00> : vector<8x32xf32>
    %68 = tpu.matmul %66, %67, %cst_38 {dimension_numbers = #tpu.dot_dimension_numbers<[1], [0], [0], [1], [0, 0, 1, 1], [], []>} : vector<8x32xbf16>, vector<32x32xbf16>, vector<8x32xf32> -> vector<8x32xf32>
    %69 = vector.extract_strided_slice %56 {offsets = [32, 0], sizes = [8, 32], strides = [1, 1]} : vector<72x32xbf16> to vector<8x32xbf16>
    %c400 = arith.constant 400 : index
    %c0_39 = arith.constant 0 : index
    %70 = vector.load %arg2[%c400, %c0_39] : memref<3808x128xbf16, #tpu.memory_space<vmem>>, vector<32x32xbf16>
    %cst_40 = arith.constant dense<0.000000e+00> : vector<8x32xf32>
    %71 = tpu.matmul %69, %70, %cst_40 {dimension_numbers = #tpu.dot_dimension_numbers<[1], [0], [0], [1], [0, 0, 1, 1], [], []>} : vector<8x32xbf16>, vector<32x32xbf16>, vector<8x32xf32> -> vector<8x32xf32>
    %72 = vector.extract_strided_slice %56 {offsets = [40, 0], sizes = [8, 32], strides = [1, 1]} : vector<72x32xbf16> to vector<8x32xbf16>
    %c432 = arith.constant 432 : index
    %c0_41 = arith.constant 0 : index
    %73 = vector.load %arg2[%c432, %c0_41] : memref<3808x128xbf16, #tpu.memory_space<vmem>>, vector<32x32xbf16>
    %cst_42 = arith.constant dense<0.000000e+00> : vector<8x32xf32>
    %74 = tpu.matmul %72, %73, %cst_42 {dimension_numbers = #tpu.dot_dimension_numbers<[1], [0], [0], [1], [0, 0, 1, 1], [], []>} : vector<8x32xbf16>, vector<32x32xbf16>, vector<8x32xf32> -> vector<8x32xf32>
    %75 = vector.extract_strided_slice %56 {offsets = [48, 0], sizes = [8, 32], strides = [1, 1]} : vector<72x32xbf16> to vector<8x32xbf16>
    %c464 = arith.constant 464 : index
    %c0_43 = arith.constant 0 : index
    %76 = vector.load %arg2[%c464, %c0_43] : memref<3808x128xbf16, #tpu.memory_space<vmem>>, vector<32x32xbf16>
    %cst_44 = arith.constant dense<0.000000e+00> : vector<8x32xf32>
    %77 = tpu.matmul %75, %76, %cst_44 {dimension_numbers = #tpu.dot_dimension_numbers<[1], [0], [0], [1], [0, 0, 1, 1], [], []>} : vector<8x32xbf16>, vector<32x32xbf16>, vector<8x32xf32> -> vector<8x32xf32>
    %78 = vector.extract_strided_slice %56 {offsets = [56, 0], sizes = [8, 32], strides = [1, 1]} : vector<72x32xbf16> to vector<8x32xbf16>
    %c496 = arith.constant 496 : index
    %c0_45 = arith.constant 0 : index
    %79 = vector.load %arg2[%c496, %c0_45] : memref<3808x128xbf16, #tpu.memory_space<vmem>>, vector<32x32xbf16>
    %cst_46 = arith.constant dense<0.000000e+00> : vector<8x32xf32>
    %80 = tpu.matmul %78, %79, %cst_46 {dimension_numbers = #tpu.dot_dimension_numbers<[1], [0], [0], [1], [0, 0, 1, 1], [], []>} : vector<8x32xbf16>, vector<32x32xbf16>, vector<8x32xf32> -> vector<8x32xf32>
    %81 = vector.extract_strided_slice %56 {offsets = [64, 0], sizes = [8, 32], strides = [1, 1]} : vector<72x32xbf16> to vector<8x32xbf16>
    %c528 = arith.constant 528 : index
    %c0_47 = arith.constant 0 : index
    %82 = vector.load %arg2[%c528, %c0_47] : memref<3808x128xbf16, #tpu.memory_space<vmem>>, vector<32x32xbf16>
    %cst_48 = arith.constant dense<0.000000e+00> : vector<8x32xf32>
    %83 = tpu.matmul %81, %82, %cst_48 {dimension_numbers = #tpu.dot_dimension_numbers<[1], [0], [0], [1], [0, 0, 1, 1], [], []>} : vector<8x32xbf16>, vector<32x32xbf16>, vector<8x32xf32> -> vector<8x32xf32>
    %84 = arith.addf %59, %62 : vector<8x32xf32>
    %85 = arith.addf %65, %68 : vector<8x32xf32>
    %86 = arith.addf %71, %74 : vector<8x32xf32>
    %87 = arith.addf %77, %80 : vector<8x32xf32>
    %88 = arith.addf %84, %85 : vector<8x32xf32>
    %89 = arith.addf %86, %87 : vector<8x32xf32>
    %90 = arith.addf %88, %89 : vector<8x32xf32>
    %91 = arith.addf %90, %83 : vector<8x32xf32>
    %c16 = arith.constant 16 : index
    %c0_49 = arith.constant 0 : index
    %92 = vector.load %arg3[%c16, %c0_49] : memref<136x128xf32, #tpu.memory_space<vmem>>, vector<1x32xf32>
    %93 = vector.broadcast %92 : vector<1x32xf32> to vector<8x32xf32>
    %94 = arith.addf %91, %93 : vector<8x32xf32>
    %cst_50 = arith.constant 0.000000e+00 : f32
    %95 = vector.broadcast %cst_50 : f32 to vector<8x32xf32>
    %96 = arith.maximumf %94, %95 : vector<8x32xf32>
    %97 = arith.truncf %52 : vector<16x32xf32> to vector<16x32xbf16>
    %98 = arith.truncf %96 : vector<8x32xf32> to vector<8x32xbf16>
    %c592 = arith.constant 592 : index
    %c0_51 = arith.constant 0 : index
    %99 = vector.load %arg2[%c592, %c0_51] : memref<3808x128xbf16, #tpu.memory_space<vmem>>, vector<32x32xbf16>
    %cst_52 = arith.constant dense<0.000000e+00> : vector<8x32xf32>
    %100 = tpu.matmul %98, %99, %cst_52 {dimension_numbers = #tpu.dot_dimension_numbers<[1], [0], [0], [1], [0, 0, 1, 1], [], []>} : vector<8x32xbf16>, vector<32x32xbf16>, vector<8x32xf32> -> vector<8x32xf32>
    %c32 = arith.constant 32 : index
    %c0_53 = arith.constant 0 : index
    %101 = vector.load %arg3[%c32, %c0_53] : memref<136x128xf32, #tpu.memory_space<vmem>>, vector<1x32xf32>
    %102 = vector.broadcast %101 : vector<1x32xf32> to vector<8x32xf32>
    %103 = arith.addf %100, %102 : vector<8x32xf32>
    %104 = arith.truncf %103 : vector<8x32xf32> to vector<8x32xbf16>
    %c560 = arith.constant 560 : index
    %c0_54 = arith.constant 0 : index
    %105 = vector.load %arg2[%c560, %c0_54] : memref<3808x128xbf16, #tpu.memory_space<vmem>>, vector<32x32xbf16>
    %cst_55 = arith.constant dense<0.000000e+00> : vector<16x32xf32>
    %106 = tpu.matmul %97, %105, %cst_55 {dimension_numbers = #tpu.dot_dimension_numbers<[1], [0], [0], [1], [0, 0, 1, 1], [], []>} : vector<16x32xbf16>, vector<32x32xbf16>, vector<16x32xf32> -> vector<16x32xf32>
    %c24 = arith.constant 24 : index
    %c0_56 = arith.constant 0 : index
    %107 = vector.load %arg3[%c24, %c0_56] : memref<136x128xf32, #tpu.memory_space<vmem>>, vector<1x32xf32>
    %108 = vector.broadcast %107 : vector<1x32xf32> to vector<16x32xf32>
    %109 = arith.addf %106, %108 : vector<16x32xf32>
    %c3792 = arith.constant 3792 : index
    %c0_57 = arith.constant 0 : index
    %110 = vector.load %arg2[%c3792, %c0_57] : memref<3808x128xbf16, #tpu.memory_space<vmem>>, vector<16x8xbf16>
    %cst_58 = arith.constant dense<0.000000e+00> : vector<16x32xf32>
    %111 = tpu.matmul %110, %104, %cst_58 {dimension_numbers = #tpu.dot_dimension_numbers<[1], [0], [0], [1], [0, 0, 1, 1], [], []>} : vector<16x8xbf16>, vector<8x32xbf16>, vector<16x32xf32> -> vector<16x32xf32>
    %112 = arith.addf %109, %111 : vector<16x32xf32>
    %113 = arith.truncf %112 : vector<16x32xf32> to vector<16x32xbf16>
    %c3144 = arith.constant 3144 : index
    %c0_59 = arith.constant 0 : index
    %114 = vector.load %arg2[%c3144, %c0_59] : memref<3808x128xbf16, #tpu.memory_space<vmem>>, vector<216x16xbf16>
    %cst_60 = arith.constant dense<0.000000e+00> : vector<216x32xf32>
    %115 = tpu.matmul %114, %113, %cst_60 {dimension_numbers = #tpu.dot_dimension_numbers<[1], [0], [0], [1], [0, 0, 1, 1], [], []>} : vector<216x16xbf16>, vector<16x32xbf16>, vector<216x32xf32> -> vector<216x32xf32>
    %116 = arith.truncf %115 : vector<216x32xf32> to vector<216x32xbf16>
    %117 = vector.extract_strided_slice %116 {offsets = [0, 0], sizes = [24, 32], strides = [1, 1]} : vector<216x32xbf16> to vector<24x32xbf16>
    %c624 = arith.constant 624 : index
    %c0_61 = arith.constant 0 : index
    %118 = vector.load %arg2[%c624, %c0_61] : memref<3808x128xbf16, #tpu.memory_space<vmem>>, vector<32x64xbf16>
    %cst_62 = arith.constant dense<0.000000e+00> : vector<24x64xf32>
    %119 = tpu.matmul %117, %118, %cst_62 {dimension_numbers = #tpu.dot_dimension_numbers<[1], [0], [0], [1], [0, 0, 1, 1], [], []>} : vector<24x32xbf16>, vector<32x64xbf16>, vector<24x64xf32> -> vector<24x64xf32>
    %120 = vector.extract_strided_slice %116 {offsets = [24, 0], sizes = [24, 32], strides = [1, 1]} : vector<216x32xbf16> to vector<24x32xbf16>
    %c656 = arith.constant 656 : index
    %c0_63 = arith.constant 0 : index
    %121 = vector.load %arg2[%c656, %c0_63] : memref<3808x128xbf16, #tpu.memory_space<vmem>>, vector<32x64xbf16>
    %cst_64 = arith.constant dense<0.000000e+00> : vector<24x64xf32>
    %122 = tpu.matmul %120, %121, %cst_64 {dimension_numbers = #tpu.dot_dimension_numbers<[1], [0], [0], [1], [0, 0, 1, 1], [], []>} : vector<24x32xbf16>, vector<32x64xbf16>, vector<24x64xf32> -> vector<24x64xf32>
    %123 = vector.extract_strided_slice %116 {offsets = [48, 0], sizes = [24, 32], strides = [1, 1]} : vector<216x32xbf16> to vector<24x32xbf16>
    %c688 = arith.constant 688 : index
    %c0_65 = arith.constant 0 : index
    %124 = vector.load %arg2[%c688, %c0_65] : memref<3808x128xbf16, #tpu.memory_space<vmem>>, vector<32x64xbf16>
    %cst_66 = arith.constant dense<0.000000e+00> : vector<24x64xf32>
    %125 = tpu.matmul %123, %124, %cst_66 {dimension_numbers = #tpu.dot_dimension_numbers<[1], [0], [0], [1], [0, 0, 1, 1], [], []>} : vector<24x32xbf16>, vector<32x64xbf16>, vector<24x64xf32> -> vector<24x64xf32>
    %126 = vector.extract_strided_slice %116 {offsets = [72, 0], sizes = [24, 32], strides = [1, 1]} : vector<216x32xbf16> to vector<24x32xbf16>
    %c720 = arith.constant 720 : index
    %c0_67 = arith.constant 0 : index
    %127 = vector.load %arg2[%c720, %c0_67] : memref<3808x128xbf16, #tpu.memory_space<vmem>>, vector<32x64xbf16>
    %cst_68 = arith.constant dense<0.000000e+00> : vector<24x64xf32>
    %128 = tpu.matmul %126, %127, %cst_68 {dimension_numbers = #tpu.dot_dimension_numbers<[1], [0], [0], [1], [0, 0, 1, 1], [], []>} : vector<24x32xbf16>, vector<32x64xbf16>, vector<24x64xf32> -> vector<24x64xf32>
    %129 = vector.extract_strided_slice %116 {offsets = [96, 0], sizes = [24, 32], strides = [1, 1]} : vector<216x32xbf16> to vector<24x32xbf16>
    %c752 = arith.constant 752 : index
    %c0_69 = arith.constant 0 : index
    %130 = vector.load %arg2[%c752, %c0_69] : memref<3808x128xbf16, #tpu.memory_space<vmem>>, vector<32x64xbf16>
    %cst_70 = arith.constant dense<0.000000e+00> : vector<24x64xf32>
    %131 = tpu.matmul %129, %130, %cst_70 {dimension_numbers = #tpu.dot_dimension_numbers<[1], [0], [0], [1], [0, 0, 1, 1], [], []>} : vector<24x32xbf16>, vector<32x64xbf16>, vector<24x64xf32> -> vector<24x64xf32>
    %132 = vector.extract_strided_slice %116 {offsets = [120, 0], sizes = [24, 32], strides = [1, 1]} : vector<216x32xbf16> to vector<24x32xbf16>
    %c784 = arith.constant 784 : index
    %c0_71 = arith.constant 0 : index
    %133 = vector.load %arg2[%c784, %c0_71] : memref<3808x128xbf16, #tpu.memory_space<vmem>>, vector<32x64xbf16>
    %cst_72 = arith.constant dense<0.000000e+00> : vector<24x64xf32>
    %134 = tpu.matmul %132, %133, %cst_72 {dimension_numbers = #tpu.dot_dimension_numbers<[1], [0], [0], [1], [0, 0, 1, 1], [], []>} : vector<24x32xbf16>, vector<32x64xbf16>, vector<24x64xf32> -> vector<24x64xf32>
    %135 = vector.extract_strided_slice %116 {offsets = [144, 0], sizes = [24, 32], strides = [1, 1]} : vector<216x32xbf16> to vector<24x32xbf16>
    %c816 = arith.constant 816 : index
    %c0_73 = arith.constant 0 : index
    %136 = vector.load %arg2[%c816, %c0_73] : memref<3808x128xbf16, #tpu.memory_space<vmem>>, vector<32x64xbf16>
    %cst_74 = arith.constant dense<0.000000e+00> : vector<24x64xf32>
    %137 = tpu.matmul %135, %136, %cst_74 {dimension_numbers = #tpu.dot_dimension_numbers<[1], [0], [0], [1], [0, 0, 1, 1], [], []>} : vector<24x32xbf16>, vector<32x64xbf16>, vector<24x64xf32> -> vector<24x64xf32>
    %138 = vector.extract_strided_slice %116 {offsets = [168, 0], sizes = [24, 32], strides = [1, 1]} : vector<216x32xbf16> to vector<24x32xbf16>
    %c848 = arith.constant 848 : index
    %c0_75 = arith.constant 0 : index
    %139 = vector.load %arg2[%c848, %c0_75] : memref<3808x128xbf16, #tpu.memory_space<vmem>>, vector<32x64xbf16>
    %cst_76 = arith.constant dense<0.000000e+00> : vector<24x64xf32>
    %140 = tpu.matmul %138, %139, %cst_76 {dimension_numbers = #tpu.dot_dimension_numbers<[1], [0], [0], [1], [0, 0, 1, 1], [], []>} : vector<24x32xbf16>, vector<32x64xbf16>, vector<24x64xf32> -> vector<24x64xf32>
    %141 = vector.extract_strided_slice %116 {offsets = [192, 0], sizes = [24, 32], strides = [1, 1]} : vector<216x32xbf16> to vector<24x32xbf16>
    %c880 = arith.constant 880 : index
    %c0_77 = arith.constant 0 : index
    %142 = vector.load %arg2[%c880, %c0_77] : memref<3808x128xbf16, #tpu.memory_space<vmem>>, vector<32x64xbf16>
    %cst_78 = arith.constant dense<0.000000e+00> : vector<24x64xf32>
    %143 = tpu.matmul %141, %142, %cst_78 {dimension_numbers = #tpu.dot_dimension_numbers<[1], [0], [0], [1], [0, 0, 1, 1], [], []>} : vector<24x32xbf16>, vector<32x64xbf16>, vector<24x64xf32> -> vector<24x64xf32>
    %144 = arith.addf %119, %122 : vector<24x64xf32>
    %145 = arith.addf %125, %128 : vector<24x64xf32>
    %146 = arith.addf %131, %134 : vector<24x64xf32>
    %147 = arith.addf %137, %140 : vector<24x64xf32>
    %148 = arith.addf %144, %145 : vector<24x64xf32>
    %149 = arith.addf %146, %147 : vector<24x64xf32>
    %150 = arith.addf %148, %149 : vector<24x64xf32>
    %151 = arith.addf %150, %143 : vector<24x64xf32>
    %c3360 = arith.constant 3360 : index
    %c0_79 = arith.constant 0 : index
    %152 = vector.load %arg2[%c3360, %c0_79] : memref<3808x128xbf16, #tpu.memory_space<vmem>>, vector<216x8xbf16>
    %cst_80 = arith.constant dense<0.000000e+00> : vector<216x32xf32>
    %153 = tpu.matmul %152, %104, %cst_80 {dimension_numbers = #tpu.dot_dimension_numbers<[1], [0], [0], [1], [0, 0, 1, 1], [], []>} : vector<216x8xbf16>, vector<8x32xbf16>, vector<216x32xf32> -> vector<216x32xf32>
    %154 = arith.truncf %153 : vector<216x32xf32> to vector<216x32xbf16>
    %155 = vector.extract_strided_slice %154 {offsets = [0, 0], sizes = [24, 32], strides = [1, 1]} : vector<216x32xbf16> to vector<24x32xbf16>
    %c912 = arith.constant 912 : index
    %c0_81 = arith.constant 0 : index
    %156 = vector.load %arg2[%c912, %c0_81] : memref<3808x128xbf16, #tpu.memory_space<vmem>>, vector<32x64xbf16>
    %cst_82 = arith.constant dense<0.000000e+00> : vector<24x64xf32>
    %157 = tpu.matmul %155, %156, %cst_82 {dimension_numbers = #tpu.dot_dimension_numbers<[1], [0], [0], [1], [0, 0, 1, 1], [], []>} : vector<24x32xbf16>, vector<32x64xbf16>, vector<24x64xf32> -> vector<24x64xf32>
    %158 = vector.extract_strided_slice %154 {offsets = [24, 0], sizes = [24, 32], strides = [1, 1]} : vector<216x32xbf16> to vector<24x32xbf16>
    %c944 = arith.constant 944 : index
    %c0_83 = arith.constant 0 : index
    %159 = vector.load %arg2[%c944, %c0_83] : memref<3808x128xbf16, #tpu.memory_space<vmem>>, vector<32x64xbf16>
    %cst_84 = arith.constant dense<0.000000e+00> : vector<24x64xf32>
    %160 = tpu.matmul %158, %159, %cst_84 {dimension_numbers = #tpu.dot_dimension_numbers<[1], [0], [0], [1], [0, 0, 1, 1], [], []>} : vector<24x32xbf16>, vector<32x64xbf16>, vector<24x64xf32> -> vector<24x64xf32>
    %161 = vector.extract_strided_slice %154 {offsets = [48, 0], sizes = [24, 32], strides = [1, 1]} : vector<216x32xbf16> to vector<24x32xbf16>
    %c976 = arith.constant 976 : index
    %c0_85 = arith.constant 0 : index
    %162 = vector.load %arg2[%c976, %c0_85] : memref<3808x128xbf16, #tpu.memory_space<vmem>>, vector<32x64xbf16>
    %cst_86 = arith.constant dense<0.000000e+00> : vector<24x64xf32>
    %163 = tpu.matmul %161, %162, %cst_86 {dimension_numbers = #tpu.dot_dimension_numbers<[1], [0], [0], [1], [0, 0, 1, 1], [], []>} : vector<24x32xbf16>, vector<32x64xbf16>, vector<24x64xf32> -> vector<24x64xf32>
    %164 = vector.extract_strided_slice %154 {offsets = [72, 0], sizes = [24, 32], strides = [1, 1]} : vector<216x32xbf16> to vector<24x32xbf16>
    %c1008 = arith.constant 1008 : index
    %c0_87 = arith.constant 0 : index
    %165 = vector.load %arg2[%c1008, %c0_87] : memref<3808x128xbf16, #tpu.memory_space<vmem>>, vector<32x64xbf16>
    %cst_88 = arith.constant dense<0.000000e+00> : vector<24x64xf32>
    %166 = tpu.matmul %164, %165, %cst_88 {dimension_numbers = #tpu.dot_dimension_numbers<[1], [0], [0], [1], [0, 0, 1, 1], [], []>} : vector<24x32xbf16>, vector<32x64xbf16>, vector<24x64xf32> -> vector<24x64xf32>
    %167 = vector.extract_strided_slice %154 {offsets = [96, 0], sizes = [24, 32], strides = [1, 1]} : vector<216x32xbf16> to vector<24x32xbf16>
    %c1040 = arith.constant 1040 : index
    %c0_89 = arith.constant 0 : index
    %168 = vector.load %arg2[%c1040, %c0_89] : memref<3808x128xbf16, #tpu.memory_space<vmem>>, vector<32x64xbf16>
    %cst_90 = arith.constant dense<0.000000e+00> : vector<24x64xf32>
    %169 = tpu.matmul %167, %168, %cst_90 {dimension_numbers = #tpu.dot_dimension_numbers<[1], [0], [0], [1], [0, 0, 1, 1], [], []>} : vector<24x32xbf16>, vector<32x64xbf16>, vector<24x64xf32> -> vector<24x64xf32>
    %170 = vector.extract_strided_slice %154 {offsets = [120, 0], sizes = [24, 32], strides = [1, 1]} : vector<216x32xbf16> to vector<24x32xbf16>
    %c1072 = arith.constant 1072 : index
    %c0_91 = arith.constant 0 : index
    %171 = vector.load %arg2[%c1072, %c0_91] : memref<3808x128xbf16, #tpu.memory_space<vmem>>, vector<32x64xbf16>
    %cst_92 = arith.constant dense<0.000000e+00> : vector<24x64xf32>
    %172 = tpu.matmul %170, %171, %cst_92 {dimension_numbers = #tpu.dot_dimension_numbers<[1], [0], [0], [1], [0, 0, 1, 1], [], []>} : vector<24x32xbf16>, vector<32x64xbf16>, vector<24x64xf32> -> vector<24x64xf32>
    %173 = vector.extract_strided_slice %154 {offsets = [144, 0], sizes = [24, 32], strides = [1, 1]} : vector<216x32xbf16> to vector<24x32xbf16>
    %c1104 = arith.constant 1104 : index
    %c0_93 = arith.constant 0 : index
    %174 = vector.load %arg2[%c1104, %c0_93] : memref<3808x128xbf16, #tpu.memory_space<vmem>>, vector<32x64xbf16>
    %cst_94 = arith.constant dense<0.000000e+00> : vector<24x64xf32>
    %175 = tpu.matmul %173, %174, %cst_94 {dimension_numbers = #tpu.dot_dimension_numbers<[1], [0], [0], [1], [0, 0, 1, 1], [], []>} : vector<24x32xbf16>, vector<32x64xbf16>, vector<24x64xf32> -> vector<24x64xf32>
    %176 = vector.extract_strided_slice %154 {offsets = [168, 0], sizes = [24, 32], strides = [1, 1]} : vector<216x32xbf16> to vector<24x32xbf16>
    %c1136 = arith.constant 1136 : index
    %c0_95 = arith.constant 0 : index
    %177 = vector.load %arg2[%c1136, %c0_95] : memref<3808x128xbf16, #tpu.memory_space<vmem>>, vector<32x64xbf16>
    %cst_96 = arith.constant dense<0.000000e+00> : vector<24x64xf32>
    %178 = tpu.matmul %176, %177, %cst_96 {dimension_numbers = #tpu.dot_dimension_numbers<[1], [0], [0], [1], [0, 0, 1, 1], [], []>} : vector<24x32xbf16>, vector<32x64xbf16>, vector<24x64xf32> -> vector<24x64xf32>
    %179 = vector.extract_strided_slice %154 {offsets = [192, 0], sizes = [24, 32], strides = [1, 1]} : vector<216x32xbf16> to vector<24x32xbf16>
    %c1168 = arith.constant 1168 : index
    %c0_97 = arith.constant 0 : index
    %180 = vector.load %arg2[%c1168, %c0_97] : memref<3808x128xbf16, #tpu.memory_space<vmem>>, vector<32x64xbf16>
    %cst_98 = arith.constant dense<0.000000e+00> : vector<24x64xf32>
    %181 = tpu.matmul %179, %180, %cst_98 {dimension_numbers = #tpu.dot_dimension_numbers<[1], [0], [0], [1], [0, 0, 1, 1], [], []>} : vector<24x32xbf16>, vector<32x64xbf16>, vector<24x64xf32> -> vector<24x64xf32>
    %182 = arith.addf %157, %160 : vector<24x64xf32>
    %183 = arith.addf %163, %166 : vector<24x64xf32>
    %184 = arith.addf %169, %172 : vector<24x64xf32>
    %185 = arith.addf %175, %178 : vector<24x64xf32>
    %186 = arith.addf %182, %183 : vector<24x64xf32>
    %187 = arith.addf %184, %185 : vector<24x64xf32>
    %188 = arith.addf %186, %187 : vector<24x64xf32>
    %189 = arith.addf %188, %181 : vector<24x64xf32>
    %190 = arith.addf %151, %189 : vector<24x64xf32>
    %c40 = arith.constant 40 : index
    %c0_99 = arith.constant 0 : index
    %191 = vector.load %arg3[%c40, %c0_99] : memref<136x128xf32, #tpu.memory_space<vmem>>, vector<24x64xf32>
    %192 = arith.addf %190, %191 : vector<24x64xf32>
    %193 = arith.truncf %192 : vector<24x64xf32> to vector<24x64xbf16>
    %c3576 = arith.constant 3576 : index
    %c0_100 = arith.constant 0 : index
    %194 = vector.load %arg2[%c3576, %c0_100] : memref<3808x128xbf16, #tpu.memory_space<vmem>>, vector<216x24xbf16>
    %cst_101 = arith.constant dense<0.000000e+00> : vector<216x64xf32>
    %195 = tpu.matmul %194, %193, %cst_101 {dimension_numbers = #tpu.dot_dimension_numbers<[1], [0], [0], [1], [0, 0, 1, 1], [], []>} : vector<216x24xbf16>, vector<24x64xbf16>, vector<216x64xf32> -> vector<216x64xf32>
    %196 = arith.truncf %195 : vector<216x64xf32> to vector<216x64xbf16>
    %197 = vector.extract_strided_slice %196 {offsets = [0, 0], sizes = [24, 64], strides = [1, 1]} : vector<216x64xbf16> to vector<24x64xbf16>
    %c1200 = arith.constant 1200 : index
    %c0_102 = arith.constant 0 : index
    %198 = vector.load %arg2[%c1200, %c0_102] : memref<3808x128xbf16, #tpu.memory_space<vmem>>, vector<64x64xbf16>
    %cst_103 = arith.constant dense<0.000000e+00> : vector<24x64xf32>
    %199 = tpu.matmul %197, %198, %cst_103 {dimension_numbers = #tpu.dot_dimension_numbers<[1], [0], [0], [1], [0, 0, 1, 1], [], []>} : vector<24x64xbf16>, vector<64x64xbf16>, vector<24x64xf32> -> vector<24x64xf32>
    %200 = vector.extract_strided_slice %196 {offsets = [24, 0], sizes = [24, 64], strides = [1, 1]} : vector<216x64xbf16> to vector<24x64xbf16>
    %c1264 = arith.constant 1264 : index
    %c0_104 = arith.constant 0 : index
    %201 = vector.load %arg2[%c1264, %c0_104] : memref<3808x128xbf16, #tpu.memory_space<vmem>>, vector<64x64xbf16>
    %cst_105 = arith.constant dense<0.000000e+00> : vector<24x64xf32>
    %202 = tpu.matmul %200, %201, %cst_105 {dimension_numbers = #tpu.dot_dimension_numbers<[1], [0], [0], [1], [0, 0, 1, 1], [], []>} : vector<24x64xbf16>, vector<64x64xbf16>, vector<24x64xf32> -> vector<24x64xf32>
    %203 = vector.extract_strided_slice %196 {offsets = [48, 0], sizes = [24, 64], strides = [1, 1]} : vector<216x64xbf16> to vector<24x64xbf16>
    %c1328 = arith.constant 1328 : index
    %c0_106 = arith.constant 0 : index
    %204 = vector.load %arg2[%c1328, %c0_106] : memref<3808x128xbf16, #tpu.memory_space<vmem>>, vector<64x64xbf16>
    %cst_107 = arith.constant dense<0.000000e+00> : vector<24x64xf32>
    %205 = tpu.matmul %203, %204, %cst_107 {dimension_numbers = #tpu.dot_dimension_numbers<[1], [0], [0], [1], [0, 0, 1, 1], [], []>} : vector<24x64xbf16>, vector<64x64xbf16>, vector<24x64xf32> -> vector<24x64xf32>
    %206 = vector.extract_strided_slice %196 {offsets = [72, 0], sizes = [24, 64], strides = [1, 1]} : vector<216x64xbf16> to vector<24x64xbf16>
    %c1392 = arith.constant 1392 : index
    %c0_108 = arith.constant 0 : index
    %207 = vector.load %arg2[%c1392, %c0_108] : memref<3808x128xbf16, #tpu.memory_space<vmem>>, vector<64x64xbf16>
    %cst_109 = arith.constant dense<0.000000e+00> : vector<24x64xf32>
    %208 = tpu.matmul %206, %207, %cst_109 {dimension_numbers = #tpu.dot_dimension_numbers<[1], [0], [0], [1], [0, 0, 1, 1], [], []>} : vector<24x64xbf16>, vector<64x64xbf16>, vector<24x64xf32> -> vector<24x64xf32>
    %209 = vector.extract_strided_slice %196 {offsets = [96, 0], sizes = [24, 64], strides = [1, 1]} : vector<216x64xbf16> to vector<24x64xbf16>
    %c1456 = arith.constant 1456 : index
    %c0_110 = arith.constant 0 : index
    %210 = vector.load %arg2[%c1456, %c0_110] : memref<3808x128xbf16, #tpu.memory_space<vmem>>, vector<64x64xbf16>
    %cst_111 = arith.constant dense<0.000000e+00> : vector<24x64xf32>
    %211 = tpu.matmul %209, %210, %cst_111 {dimension_numbers = #tpu.dot_dimension_numbers<[1], [0], [0], [1], [0, 0, 1, 1], [], []>} : vector<24x64xbf16>, vector<64x64xbf16>, vector<24x64xf32> -> vector<24x64xf32>
    %212 = vector.extract_strided_slice %196 {offsets = [120, 0], sizes = [24, 64], strides = [1, 1]} : vector<216x64xbf16> to vector<24x64xbf16>
    %c1520 = arith.constant 1520 : index
    %c0_112 = arith.constant 0 : index
    %213 = vector.load %arg2[%c1520, %c0_112] : memref<3808x128xbf16, #tpu.memory_space<vmem>>, vector<64x64xbf16>
    %cst_113 = arith.constant dense<0.000000e+00> : vector<24x64xf32>
    %214 = tpu.matmul %212, %213, %cst_113 {dimension_numbers = #tpu.dot_dimension_numbers<[1], [0], [0], [1], [0, 0, 1, 1], [], []>} : vector<24x64xbf16>, vector<64x64xbf16>, vector<24x64xf32> -> vector<24x64xf32>
    %215 = vector.extract_strided_slice %196 {offsets = [144, 0], sizes = [24, 64], strides = [1, 1]} : vector<216x64xbf16> to vector<24x64xbf16>
    %c1584 = arith.constant 1584 : index
    %c0_114 = arith.constant 0 : index
    %216 = vector.load %arg2[%c1584, %c0_114] : memref<3808x128xbf16, #tpu.memory_space<vmem>>, vector<64x64xbf16>
    %cst_115 = arith.constant dense<0.000000e+00> : vector<24x64xf32>
    %217 = tpu.matmul %215, %216, %cst_115 {dimension_numbers = #tpu.dot_dimension_numbers<[1], [0], [0], [1], [0, 0, 1, 1], [], []>} : vector<24x64xbf16>, vector<64x64xbf16>, vector<24x64xf32> -> vector<24x64xf32>
    %218 = vector.extract_strided_slice %196 {offsets = [168, 0], sizes = [24, 64], strides = [1, 1]} : vector<216x64xbf16> to vector<24x64xbf16>
    %c1648 = arith.constant 1648 : index
    %c0_116 = arith.constant 0 : index
    %219 = vector.load %arg2[%c1648, %c0_116] : memref<3808x128xbf16, #tpu.memory_space<vmem>>, vector<64x64xbf16>
    %cst_117 = arith.constant dense<0.000000e+00> : vector<24x64xf32>
    %220 = tpu.matmul %218, %219, %cst_117 {dimension_numbers = #tpu.dot_dimension_numbers<[1], [0], [0], [1], [0, 0, 1, 1], [], []>} : vector<24x64xbf16>, vector<64x64xbf16>, vector<24x64xf32> -> vector<24x64xf32>
    %221 = vector.extract_strided_slice %196 {offsets = [192, 0], sizes = [24, 64], strides = [1, 1]} : vector<216x64xbf16> to vector<24x64xbf16>
    %c1712 = arith.constant 1712 : index
    %c0_118 = arith.constant 0 : index
    %222 = vector.load %arg2[%c1712, %c0_118] : memref<3808x128xbf16, #tpu.memory_space<vmem>>, vector<64x64xbf16>
    %cst_119 = arith.constant dense<0.000000e+00> : vector<24x64xf32>
    %223 = tpu.matmul %221, %222, %cst_119 {dimension_numbers = #tpu.dot_dimension_numbers<[1], [0], [0], [1], [0, 0, 1, 1], [], []>} : vector<24x64xbf16>, vector<64x64xbf16>, vector<24x64xf32> -> vector<24x64xf32>
    %224 = arith.addf %199, %202 : vector<24x64xf32>
    %225 = arith.addf %205, %208 : vector<24x64xf32>
    %226 = arith.addf %211, %214 : vector<24x64xf32>
    %227 = arith.addf %217, %220 : vector<24x64xf32>
    %228 = arith.addf %224, %225 : vector<24x64xf32>
    %229 = arith.addf %226, %227 : vector<24x64xf32>
    %230 = arith.addf %228, %229 : vector<24x64xf32>
    %231 = arith.addf %230, %223 : vector<24x64xf32>
    %c64 = arith.constant 64 : index
    %c0_120 = arith.constant 0 : index
    %232 = vector.load %arg3[%c64, %c0_120] : memref<136x128xf32, #tpu.memory_space<vmem>>, vector<1x64xf32>
    %233 = vector.broadcast %232 : vector<1x64xf32> to vector<24x64xf32>
    %234 = arith.addf %231, %233 : vector<24x64xf32>
    %cst_121 = arith.constant 0.000000e+00 : f32
    %235 = vector.broadcast %cst_121 : f32 to vector<24x64xf32>
    %236 = arith.maximumf %234, %235 : vector<24x64xf32>
    %237 = arith.truncf %236 : vector<24x64xf32> to vector<24x64xbf16>
    %c3576_122 = arith.constant 3576 : index
    %c0_123 = arith.constant 0 : index
    %238 = vector.load %arg2[%c3576_122, %c0_123] : memref<3808x128xbf16, #tpu.memory_space<vmem>>, vector<216x24xbf16>
    %cst_124 = arith.constant dense<0.000000e+00> : vector<216x64xf32>
    %239 = tpu.matmul %238, %237, %cst_124 {dimension_numbers = #tpu.dot_dimension_numbers<[1], [0], [0], [1], [0, 0, 1, 1], [], []>} : vector<216x24xbf16>, vector<24x64xbf16>, vector<216x64xf32> -> vector<216x64xf32>
    %240 = arith.truncf %239 : vector<216x64xf32> to vector<216x64xbf16>
    %241 = vector.extract_strided_slice %240 {offsets = [0, 0], sizes = [24, 64], strides = [1, 1]} : vector<216x64xbf16> to vector<24x64xbf16>
    %c1776 = arith.constant 1776 : index
    %c0_125 = arith.constant 0 : index
    %242 = vector.load %arg2[%c1776, %c0_125] : memref<3808x128xbf16, #tpu.memory_space<vmem>>, vector<64x64xbf16>
    %cst_126 = arith.constant dense<0.000000e+00> : vector<24x64xf32>
    %243 = tpu.matmul %241, %242, %cst_126 {dimension_numbers = #tpu.dot_dimension_numbers<[1], [0], [0], [1], [0, 0, 1, 1], [], []>} : vector<24x64xbf16>, vector<64x64xbf16>, vector<24x64xf32> -> vector<24x64xf32>
    %244 = vector.extract_strided_slice %240 {offsets = [24, 0], sizes = [24, 64], strides = [1, 1]} : vector<216x64xbf16> to vector<24x64xbf16>
    %c1840 = arith.constant 1840 : index
    %c0_127 = arith.constant 0 : index
    %245 = vector.load %arg2[%c1840, %c0_127] : memref<3808x128xbf16, #tpu.memory_space<vmem>>, vector<64x64xbf16>
    %cst_128 = arith.constant dense<0.000000e+00> : vector<24x64xf32>
    %246 = tpu.matmul %244, %245, %cst_128 {dimension_numbers = #tpu.dot_dimension_numbers<[1], [0], [0], [1], [0, 0, 1, 1], [], []>} : vector<24x64xbf16>, vector<64x64xbf16>, vector<24x64xf32> -> vector<24x64xf32>
    %247 = vector.extract_strided_slice %240 {offsets = [48, 0], sizes = [24, 64], strides = [1, 1]} : vector<216x64xbf16> to vector<24x64xbf16>
    %c1904 = arith.constant 1904 : index
    %c0_129 = arith.constant 0 : index
    %248 = vector.load %arg2[%c1904, %c0_129] : memref<3808x128xbf16, #tpu.memory_space<vmem>>, vector<64x64xbf16>
    %cst_130 = arith.constant dense<0.000000e+00> : vector<24x64xf32>
    %249 = tpu.matmul %247, %248, %cst_130 {dimension_numbers = #tpu.dot_dimension_numbers<[1], [0], [0], [1], [0, 0, 1, 1], [], []>} : vector<24x64xbf16>, vector<64x64xbf16>, vector<24x64xf32> -> vector<24x64xf32>
    %250 = vector.extract_strided_slice %240 {offsets = [72, 0], sizes = [24, 64], strides = [1, 1]} : vector<216x64xbf16> to vector<24x64xbf16>
    %c1968 = arith.constant 1968 : index
    %c0_131 = arith.constant 0 : index
    %251 = vector.load %arg2[%c1968, %c0_131] : memref<3808x128xbf16, #tpu.memory_space<vmem>>, vector<64x64xbf16>
    %cst_132 = arith.constant dense<0.000000e+00> : vector<24x64xf32>
    %252 = tpu.matmul %250, %251, %cst_132 {dimension_numbers = #tpu.dot_dimension_numbers<[1], [0], [0], [1], [0, 0, 1, 1], [], []>} : vector<24x64xbf16>, vector<64x64xbf16>, vector<24x64xf32> -> vector<24x64xf32>
    %253 = vector.extract_strided_slice %240 {offsets = [96, 0], sizes = [24, 64], strides = [1, 1]} : vector<216x64xbf16> to vector<24x64xbf16>
    %c2032 = arith.constant 2032 : index
    %c0_133 = arith.constant 0 : index
    %254 = vector.load %arg2[%c2032, %c0_133] : memref<3808x128xbf16, #tpu.memory_space<vmem>>, vector<64x64xbf16>
    %cst_134 = arith.constant dense<0.000000e+00> : vector<24x64xf32>
    %255 = tpu.matmul %253, %254, %cst_134 {dimension_numbers = #tpu.dot_dimension_numbers<[1], [0], [0], [1], [0, 0, 1, 1], [], []>} : vector<24x64xbf16>, vector<64x64xbf16>, vector<24x64xf32> -> vector<24x64xf32>
    %256 = vector.extract_strided_slice %240 {offsets = [120, 0], sizes = [24, 64], strides = [1, 1]} : vector<216x64xbf16> to vector<24x64xbf16>
    %c2096 = arith.constant 2096 : index
    %c0_135 = arith.constant 0 : index
    %257 = vector.load %arg2[%c2096, %c0_135] : memref<3808x128xbf16, #tpu.memory_space<vmem>>, vector<64x64xbf16>
    %cst_136 = arith.constant dense<0.000000e+00> : vector<24x64xf32>
    %258 = tpu.matmul %256, %257, %cst_136 {dimension_numbers = #tpu.dot_dimension_numbers<[1], [0], [0], [1], [0, 0, 1, 1], [], []>} : vector<24x64xbf16>, vector<64x64xbf16>, vector<24x64xf32> -> vector<24x64xf32>
    %259 = vector.extract_strided_slice %240 {offsets = [144, 0], sizes = [24, 64], strides = [1, 1]} : vector<216x64xbf16> to vector<24x64xbf16>
    %c2160 = arith.constant 2160 : index
    %c0_137 = arith.constant 0 : index
    %260 = vector.load %arg2[%c2160, %c0_137] : memref<3808x128xbf16, #tpu.memory_space<vmem>>, vector<64x64xbf16>
    %cst_138 = arith.constant dense<0.000000e+00> : vector<24x64xf32>
    %261 = tpu.matmul %259, %260, %cst_138 {dimension_numbers = #tpu.dot_dimension_numbers<[1], [0], [0], [1], [0, 0, 1, 1], [], []>} : vector<24x64xbf16>, vector<64x64xbf16>, vector<24x64xf32> -> vector<24x64xf32>
    %262 = vector.extract_strided_slice %240 {offsets = [168, 0], sizes = [24, 64], strides = [1, 1]} : vector<216x64xbf16> to vector<24x64xbf16>
    %c2224 = arith.constant 2224 : index
    %c0_139 = arith.constant 0 : index
    %263 = vector.load %arg2[%c2224, %c0_139] : memref<3808x128xbf16, #tpu.memory_space<vmem>>, vector<64x64xbf16>
    %cst_140 = arith.constant dense<0.000000e+00> : vector<24x64xf32>
    %264 = tpu.matmul %262, %263, %cst_140 {dimension_numbers = #tpu.dot_dimension_numbers<[1], [0], [0], [1], [0, 0, 1, 1], [], []>} : vector<24x64xbf16>, vector<64x64xbf16>, vector<24x64xf32> -> vector<24x64xf32>
    %265 = vector.extract_strided_slice %240 {offsets = [192, 0], sizes = [24, 64], strides = [1, 1]} : vector<216x64xbf16> to vector<24x64xbf16>
    %c2288 = arith.constant 2288 : index
    %c0_141 = arith.constant 0 : index
    %266 = vector.load %arg2[%c2288, %c0_141] : memref<3808x128xbf16, #tpu.memory_space<vmem>>, vector<64x64xbf16>
    %cst_142 = arith.constant dense<0.000000e+00> : vector<24x64xf32>
    %267 = tpu.matmul %265, %266, %cst_142 {dimension_numbers = #tpu.dot_dimension_numbers<[1], [0], [0], [1], [0, 0, 1, 1], [], []>} : vector<24x64xbf16>, vector<64x64xbf16>, vector<24x64xf32> -> vector<24x64xf32>
    %268 = arith.addf %243, %246 : vector<24x64xf32>
    %269 = arith.addf %249, %252 : vector<24x64xf32>
    %270 = arith.addf %255, %258 : vector<24x64xf32>
    %271 = arith.addf %261, %264 : vector<24x64xf32>
    %272 = arith.addf %268, %269 : vector<24x64xf32>
    %273 = arith.addf %270, %271 : vector<24x64xf32>
    %274 = arith.addf %272, %273 : vector<24x64xf32>
    %275 = arith.addf %274, %267 : vector<24x64xf32>
    %c72 = arith.constant 72 : index
    %c0_143 = arith.constant 0 : index
    %276 = vector.load %arg3[%c72, %c0_143] : memref<136x128xf32, #tpu.memory_space<vmem>>, vector<1x64xf32>
    %277 = vector.broadcast %276 : vector<1x64xf32> to vector<24x64xf32>
    %278 = arith.addf %275, %277 : vector<24x64xf32>
    %cst_144 = arith.constant 0.000000e+00 : f32
    %279 = vector.broadcast %cst_144 : f32 to vector<24x64xf32>
    %280 = arith.maximumf %278, %279 : vector<24x64xf32>
    %281 = arith.truncf %280 : vector<24x64xf32> to vector<24x64xbf16>
    %c3576_145 = arith.constant 3576 : index
    %c0_146 = arith.constant 0 : index
    %282 = vector.load %arg2[%c3576_145, %c0_146] : memref<3808x128xbf16, #tpu.memory_space<vmem>>, vector<216x24xbf16>
    %cst_147 = arith.constant dense<0.000000e+00> : vector<216x64xf32>
    %283 = tpu.matmul %282, %281, %cst_147 {dimension_numbers = #tpu.dot_dimension_numbers<[1], [0], [0], [1], [0, 0, 1, 1], [], []>} : vector<216x24xbf16>, vector<24x64xbf16>, vector<216x64xf32> -> vector<216x64xf32>
    %284 = arith.truncf %283 : vector<216x64xf32> to vector<216x64xbf16>
    %285 = vector.extract_strided_slice %284 {offsets = [0, 0], sizes = [24, 64], strides = [1, 1]} : vector<216x64xbf16> to vector<24x64xbf16>
    %c2352 = arith.constant 2352 : index
    %c0_148 = arith.constant 0 : index
    %286 = vector.load %arg2[%c2352, %c0_148] : memref<3808x128xbf16, #tpu.memory_space<vmem>>, vector<64x128xbf16>
    %cst_149 = arith.constant dense<0.000000e+00> : vector<24x128xf32>
    %287 = tpu.matmul %285, %286, %cst_149 {dimension_numbers = #tpu.dot_dimension_numbers<[1], [0], [0], [1], [0, 0, 1, 1], [], []>} : vector<24x64xbf16>, vector<64x128xbf16>, vector<24x128xf32> -> vector<24x128xf32>
    %288 = vector.extract_strided_slice %284 {offsets = [24, 0], sizes = [24, 64], strides = [1, 1]} : vector<216x64xbf16> to vector<24x64xbf16>
    %c2416 = arith.constant 2416 : index
    %c0_150 = arith.constant 0 : index
    %289 = vector.load %arg2[%c2416, %c0_150] : memref<3808x128xbf16, #tpu.memory_space<vmem>>, vector<64x128xbf16>
    %cst_151 = arith.constant dense<0.000000e+00> : vector<24x128xf32>
    %290 = tpu.matmul %288, %289, %cst_151 {dimension_numbers = #tpu.dot_dimension_numbers<[1], [0], [0], [1], [0, 0, 1, 1], [], []>} : vector<24x64xbf16>, vector<64x128xbf16>, vector<24x128xf32> -> vector<24x128xf32>
    %291 = vector.extract_strided_slice %284 {offsets = [48, 0], sizes = [24, 64], strides = [1, 1]} : vector<216x64xbf16> to vector<24x64xbf16>
    %c2480 = arith.constant 2480 : index
    %c0_152 = arith.constant 0 : index
    %292 = vector.load %arg2[%c2480, %c0_152] : memref<3808x128xbf16, #tpu.memory_space<vmem>>, vector<64x128xbf16>
    %cst_153 = arith.constant dense<0.000000e+00> : vector<24x128xf32>
    %293 = tpu.matmul %291, %292, %cst_153 {dimension_numbers = #tpu.dot_dimension_numbers<[1], [0], [0], [1], [0, 0, 1, 1], [], []>} : vector<24x64xbf16>, vector<64x128xbf16>, vector<24x128xf32> -> vector<24x128xf32>
    %294 = vector.extract_strided_slice %284 {offsets = [72, 0], sizes = [24, 64], strides = [1, 1]} : vector<216x64xbf16> to vector<24x64xbf16>
    %c2544 = arith.constant 2544 : index
    %c0_154 = arith.constant 0 : index
    %295 = vector.load %arg2[%c2544, %c0_154] : memref<3808x128xbf16, #tpu.memory_space<vmem>>, vector<64x128xbf16>
    %cst_155 = arith.constant dense<0.000000e+00> : vector<24x128xf32>
    %296 = tpu.matmul %294, %295, %cst_155 {dimension_numbers = #tpu.dot_dimension_numbers<[1], [0], [0], [1], [0, 0, 1, 1], [], []>} : vector<24x64xbf16>, vector<64x128xbf16>, vector<24x128xf32> -> vector<24x128xf32>
    %297 = vector.extract_strided_slice %284 {offsets = [96, 0], sizes = [24, 64], strides = [1, 1]} : vector<216x64xbf16> to vector<24x64xbf16>
    %c2608 = arith.constant 2608 : index
    %c0_156 = arith.constant 0 : index
    %298 = vector.load %arg2[%c2608, %c0_156] : memref<3808x128xbf16, #tpu.memory_space<vmem>>, vector<64x128xbf16>
    %cst_157 = arith.constant dense<0.000000e+00> : vector<24x128xf32>
    %299 = tpu.matmul %297, %298, %cst_157 {dimension_numbers = #tpu.dot_dimension_numbers<[1], [0], [0], [1], [0, 0, 1, 1], [], []>} : vector<24x64xbf16>, vector<64x128xbf16>, vector<24x128xf32> -> vector<24x128xf32>
    %300 = vector.extract_strided_slice %284 {offsets = [120, 0], sizes = [24, 64], strides = [1, 1]} : vector<216x64xbf16> to vector<24x64xbf16>
    %c2672 = arith.constant 2672 : index
    %c0_158 = arith.constant 0 : index
    %301 = vector.load %arg2[%c2672, %c0_158] : memref<3808x128xbf16, #tpu.memory_space<vmem>>, vector<64x128xbf16>
    %cst_159 = arith.constant dense<0.000000e+00> : vector<24x128xf32>
    %302 = tpu.matmul %300, %301, %cst_159 {dimension_numbers = #tpu.dot_dimension_numbers<[1], [0], [0], [1], [0, 0, 1, 1], [], []>} : vector<24x64xbf16>, vector<64x128xbf16>, vector<24x128xf32> -> vector<24x128xf32>
    %303 = vector.extract_strided_slice %284 {offsets = [144, 0], sizes = [24, 64], strides = [1, 1]} : vector<216x64xbf16> to vector<24x64xbf16>
    %c2736 = arith.constant 2736 : index
    %c0_160 = arith.constant 0 : index
    %304 = vector.load %arg2[%c2736, %c0_160] : memref<3808x128xbf16, #tpu.memory_space<vmem>>, vector<64x128xbf16>
    %cst_161 = arith.constant dense<0.000000e+00> : vector<24x128xf32>
    %305 = tpu.matmul %303, %304, %cst_161 {dimension_numbers = #tpu.dot_dimension_numbers<[1], [0], [0], [1], [0, 0, 1, 1], [], []>} : vector<24x64xbf16>, vector<64x128xbf16>, vector<24x128xf32> -> vector<24x128xf32>
    %306 = vector.extract_strided_slice %284 {offsets = [168, 0], sizes = [24, 64], strides = [1, 1]} : vector<216x64xbf16> to vector<24x64xbf16>
    %c2800 = arith.constant 2800 : index
    %c0_162 = arith.constant 0 : index
    %307 = vector.load %arg2[%c2800, %c0_162] : memref<3808x128xbf16, #tpu.memory_space<vmem>>, vector<64x128xbf16>
    %cst_163 = arith.constant dense<0.000000e+00> : vector<24x128xf32>
    %308 = tpu.matmul %306, %307, %cst_163 {dimension_numbers = #tpu.dot_dimension_numbers<[1], [0], [0], [1], [0, 0, 1, 1], [], []>} : vector<24x64xbf16>, vector<64x128xbf16>, vector<24x128xf32> -> vector<24x128xf32>
    %309 = vector.extract_strided_slice %284 {offsets = [192, 0], sizes = [24, 64], strides = [1, 1]} : vector<216x64xbf16> to vector<24x64xbf16>
    %c2864 = arith.constant 2864 : index
    %c0_164 = arith.constant 0 : index
    %310 = vector.load %arg2[%c2864, %c0_164] : memref<3808x128xbf16, #tpu.memory_space<vmem>>, vector<64x128xbf16>
    %cst_165 = arith.constant dense<0.000000e+00> : vector<24x128xf32>
    %311 = tpu.matmul %309, %310, %cst_165 {dimension_numbers = #tpu.dot_dimension_numbers<[1], [0], [0], [1], [0, 0, 1, 1], [], []>} : vector<24x64xbf16>, vector<64x128xbf16>, vector<24x128xf32> -> vector<24x128xf32>
    %312 = arith.addf %287, %290 : vector<24x128xf32>
    %313 = arith.addf %293, %296 : vector<24x128xf32>
    %314 = arith.addf %299, %302 : vector<24x128xf32>
    %315 = arith.addf %305, %308 : vector<24x128xf32>
    %316 = arith.addf %312, %313 : vector<24x128xf32>
    %317 = arith.addf %314, %315 : vector<24x128xf32>
    %318 = arith.addf %316, %317 : vector<24x128xf32>
    %319 = arith.addf %318, %311 : vector<24x128xf32>
    %c80 = arith.constant 80 : index
    %c0_166 = arith.constant 0 : index
    %320 = vector.load %arg3[%c80, %c0_166] : memref<136x128xf32, #tpu.memory_space<vmem>>, vector<1x128xf32>
    %321 = vector.broadcast %320 : vector<1x128xf32> to vector<24x128xf32>
    %322 = arith.addf %319, %321 : vector<24x128xf32>
    %323 = arith.negf %322 : vector<24x128xf32>
    %324 = math.exp %323 : vector<24x128xf32>
    %cst_167 = arith.constant 1.000000e+00 : f32
    %325 = vector.broadcast %cst_167 : f32 to vector<24x128xf32>
    %326 = arith.addf %325, %324 : vector<24x128xf32>
    %327 = arith.divf %325, %326 : vector<24x128xf32>
    %328 = vector.extract_strided_slice %327 {offsets = [0, 4], sizes = [24, 1], strides = [1, 1]} : vector<24x128xf32> to vector<24x1xf32>
    %329 = vector.broadcast %328 : vector<24x1xf32> to vector<24x128xf32>
    %330 = arith.mulf %327, %329 : vector<24x128xf32>
    %c0_168 = arith.constant 0 : index
    %c0_169 = arith.constant 0 : index
    %c0_170 = arith.constant 0 : index
    %331 = vector.load %arg4[%c0_168, %c0_169, %c0_170] : memref<1x24x128xf32, #tpu.memory_space<vmem>>, vector<1x24x128xf32>
    %332 = vector.shape_cast %331 : vector<1x24x128xf32> to vector<24x128xf32>
    %333 = vector.shape_cast %330 : vector<24x128xf32> to vector<1x24x128xf32>
    tpu.vector_store %arg4[%c0_168, %c0_169, %c0_170], %333 {strides = array<i32>} : memref<1x24x128xf32, #tpu.memory_space<vmem>>, vector<1x24x128xf32>,
    %c88 = arith.constant 88 : index
    %c0_171 = arith.constant 0 : index
    %334 = vector.load %arg3[%c88, %c0_171] : memref<136x128xf32, #tpu.memory_space<vmem>>, vector<24x128xf32>
    %cst_172 = arith.constant 0.000000e+00 : f32
    %335 = vector.broadcast %cst_172 : f32 to vector<24x128xf32>
    %336 = arith.maximumf %322, %335 : vector<24x128xf32>
    %c112 = arith.constant 112 : index
    %c0_173 = arith.constant 0 : index
    %337 = vector.load %arg3[%c112, %c0_173] : memref<136x128xf32, #tpu.memory_space<vmem>>, vector<24x128xf32>
    %338 = arith.mulf %336, %337 : vector<24x128xf32>
    %339 = arith.addf %334, %338 : vector<24x128xf32>
    %c0_174 = arith.constant 0 : index
    %c0_175 = arith.constant 0 : index
    %c0_176 = arith.constant 0 : index
    %340 = vector.load %arg5[%c0_174, %c0_175, %c0_176] : memref<1x24x128xf32, #tpu.memory_space<vmem>>, vector<1x24x128xf32>
    %341 = vector.shape_cast %340 : vector<1x24x128xf32> to vector<24x128xf32>
    %342 = vector.shape_cast %339 : vector<24x128xf32> to vector<1x24x128xf32>
    tpu.vector_store %arg5[%c0_174, %c0_175, %c0_176], %342 {strides = array<i32>} : memref<1x24x128xf32, #tpu.memory_space<vmem>>, vector<1x24x128xf32>,
    return
  }
  func.func @transform_0(%arg0: i32) -> (i32, i32, i32) {
    %c0_i32 = arith.constant 0 : i32
    %c0_i32_0 = arith.constant 0 : i32
    %c0_i32_1 = arith.constant 0 : i32
    return %arg0, %c0_i32, %c0_i32_0 : i32, i32, i32
  }
  func.func @transform_1(%arg0: i32) -> (i32, i32) {
    %c0_i32 = arith.constant 0 : i32
    %c0_i32_0 = arith.constant 0 : i32
    %c0_i32_1 = arith.constant 0 : i32
    return %c0_i32, %c0_i32_0 : i32, i32
  }
  func.func @transform_2(%arg0: i32) -> (i32, i32) {
    %c0_i32 = arith.constant 0 : i32
    %c0_i32_0 = arith.constant 0 : i32
    %c0_i32_1 = arith.constant 0 : i32
    return %c0_i32, %c0_i32_0 : i32, i32
  }
  func.func @transform_3(%arg0: i32) -> (i32, i32, i32) {
    %c0_i32 = arith.constant 0 : i32
    %c0_i32_0 = arith.constant 0 : i32
    %c0_i32_1 = arith.constant 0 : i32
    return %arg0, %c0_i32, %c0_i32_0 : i32, i32, i32
  }
  func.func @transform_4(%arg0: i32) -> (i32, i32, i32) {
    %c0_i32 = arith.constant 0 : i32
    %c0_i32_0 = arith.constant 0 : i32
    %c0_i32_1 = arith.constant 0 : i32
    return %arg0, %c0_i32, %c0_i32_0 : i32, i32, i32
  }
}

</mosaic_0001>

<llo_original>
// kernel: fcos_pss_inference.1
$region0: #{fcos_pss_inference.1}
  #allocation0 [shape = 'u32[]', space=smem, size = 0x4, offset = 0x4, fixed_abs, tag = 'smem constant byte address 0x4 - core index']
  #allocation1 [shape = 'u32[72,128]{1,0:T(1,128)}', space=vmem, size = 0x9000, scoped, tag = 'internal scratch']
  %s0 = inlined_call_operand.vmem [shape: bf16[2,64,128], index: 0, kind: input, shape index: {}]
  %s1 = inlined_call_operand.vmem [shape: bf16[3808,128], index: 1, kind: input, shape index: {}]
  %s2 = inlined_call_operand.vmem [shape: f32[136,128], index: 2, kind: input, shape index: {}]
  %s3 = inlined_call_operand.vmem [shape: f32[2,24,128], index: 3, kind: output, shape index: {0}]
  %s4 = inlined_call_operand.vmem [shape: f32[2,24,128], index: 4, kind: output, shape index: {1}]
  %5 = xla_tuple %s3, %s4
  %s6 = sld [smem:[#allocation0]]
  $region53: #{fcos_pss_inference.1} parent=0
    _
  %s8 = ssub.s32 1, %s6
  %s9 = scalar_select 0, %s8, %s6
  loop: start=0, step=1, limit=4
  $region2: #{fcos_pss_inference.1} parent=0 // loop_pre_header
    _
  $region3: #{fcos_pss_inference.1} parent=0 // loop_header
    %s11 = sphi 0, %s15
    %p12 = scmp.ge.s32.totalorder %s11, 4
    %s21 = sphi 0, %s23
    %s24 = sphi 0, %s21
    %s25 = sphi 0, %s24
    %s41 = sphi 0, %s25
    %s45 = sphi 0, %s45
    %s47 = sphi 0, %s45
    %s48 = sphi 0, %s47
    %s62 = sphi 0, %s48
    %s66 = sphi 0, %s66
    %s68 = sphi 0, %s66
    %s69 = sphi 0, %s68
    %s83 = sphi 0, %s69
    %s89 = sphi 0, %s91
    %s92 = sphi 0, %s89
    %s93 = sphi 0, %s92
    %s109 = sphi 0, %s93
    %s115 = sphi 0, %s117
    %s118 = sphi 0, %s115
    %s119 = sphi 0, %s118
    %s135 = sphi 0, %s119
  $region4: #{fcos_pss_inference.1} parent=0 // loop_header_branch
    %14 = sbr.rel (%p12) target = $region8
  $region5: #{fcos_pss_inference.1} parent=0 // loop_body
    %s16 = ssub.s32 %s11, 1
    %s17 = ssub.s32 %s11, 2
    %s18 = sadd.s32 %s11, 1
    %s19 = ssub.s32 %s11, %s18
    %p20 = scmp.eq.s32.totalorder %s19, 0
    %s22 = sadd.s32 %s21, 1
    %s23 = scalar_select %p20, %s21, %s22
    %p26 = pneg %p20
    %p27 = scmp.eq.s32.totalorder %s11, 1
    %p28 = por %p26, %p27
    %p29 = scmp.ne.s32.totalorder %s21, %s24
    %p30 = scmp.eq.s32.totalorder %s11, 0
    %p31 = por %p29, %p30
    %p32 = scmp.ne.s32.totalorder %s21, %s24
    %p33 = scmp.eq.s32.totalorder %s16, 1
    %p34 = por %p32, %p33
    %p35 = scmp.ne.s32.totalorder %s24, %s25
    %p36 = scmp.eq.s32.totalorder %s16, 0
    %p37 = por %p35, %p36
    %p38 = scmp.ne.s32.totalorder %s24, %s25
    %p39 = scmp.eq.s32.totalorder %s17, 1
    %p40 = por %p38, %p39
    %p42 = scmp.ne.s32.totalorder %s25, %s41
    %p43 = scmp.eq.s32.totalorder %s17, 0
    %p44 = por %p42, %p43
    %s46 = sadd.s32 %s45, 1
    %p49 = scmp.eq.s32.totalorder %s11, 1
    %p50 = scmp.ne.s32.totalorder %s45, %s47
    %p51 = scmp.eq.s32.totalorder %s11, 0
    %p52 = por %p50, %p51
    %p53 = scmp.ne.s32.totalorder %s45, %s47
    %p54 = scmp.eq.s32.totalorder %s16, 1
    %p55 = por %p53, %p54
    %p56 = scmp.ne.s32.totalorder %s47, %s48
    %p57 = scmp.eq.s32.totalorder %s16, 0
    %p58 = por %p56, %p57
    %p59 = scmp.ne.s32.totalorder %s47, %s48
    %p60 = scmp.eq.s32.totalorder %s17, 1
    %p61 = por %p59, %p60
    %p63 = scmp.ne.s32.totalorder %s48, %s62
    %p64 = scmp.eq.s32.totalorder %s17, 0
    %p65 = por %p63, %p64
    %s67 = sadd.s32 %s66, 1
    %p70 = scmp.eq.s32.totalorder %s11, 1
    %p71 = scmp.ne.s32.totalorder %s66, %s68
    %p72 = scmp.eq.s32.totalorder %s11, 0
    %p73 = por %p71, %p72
    %p74 = scmp.ne.s32.totalorder %s66, %s68
    %p75 = scmp.eq.s32.totalorder %s16, 1
    %p76 = por %p74, %p75
    %p77 = scmp.ne.s32.totalorder %s68, %s69
    %p78 = scmp.eq.s32.totalorder %s16, 0
    %p79 = por %p77, %p78
    %p80 = scmp.ne.s32.totalorder %s68, %s69
    %p81 = scmp.eq.s32.totalorder %s17, 1
    %p82 = por %p80, %p81
    %p84 = scmp.ne.s32.totalorder %s69, %s83
    %p85 = scmp.eq.s32.totalorder %s17, 0
    %p86 = por %p84, %p85
    %s87 = ssub.s32 %s11, %s18
    %p88 = scmp.eq.s32.totalorder %s87, 0
    %s90 = sadd.s32 %s89, 1
    %s91 = scalar_select %p88, %s89, %s90
    %p94 = pneg %p88
    %p95 = scmp.eq.s32.totalorder %s11, 1
    %p96 = por %p94, %p95
    %p97 = scmp.ne.s32.totalorder %s89, %s92
    %p98 = scmp.eq.s32.totalorder %s11, 0
    %p99 = por %p97, %p98
    %p100 = scmp.ne.s32.totalorder %s89, %s92
    %p101 = scmp.eq.s32.totalorder %s16, 1
    %p102 = por %p100, %p101
    %p103 = scmp.ne.s32.totalorder %s92, %s93
    %p104 = scmp.eq.s32.totalorder %s16, 0
    %p105 = por %p103, %p104
    %p106 = scmp.ne.s32.totalorder %s92, %s93
    %p107 = scmp.eq.s32.totalorder %s17, 1
    %p108 = por %p106, %p107
    %p110 = scmp.ne.s32.totalorder %s93, %s109
    %p111 = scmp.eq.s32.totalorder %s17, 0
    %p112 = por %p110, %p111
    %s113 = ssub.s32 %s11, %s18
    %p114 = scmp.eq.s32.totalorder %s113, 0
    %s116 = sadd.s32 %s115, 1
    %s117 = scalar_select %p114, %s115, %s116
    %p120 = pneg %p114
    %p121 = scmp.eq.s32.totalorder %s11, 1
    %p122 = por %p120, %p121
    %p123 = scmp.ne.s32.totalorder %s115, %s118
    %p124 = scmp.eq.s32.totalorder %s11, 0
    %p125 = por %p123, %p124
    %p126 = scmp.ne.s32.totalorder %s115, %s118
    %p127 = scmp.eq.s32.totalorder %s16, 1
    %p128 = por %p126, %p127
    %p129 = scmp.ne.s32.totalorder %s118, %s119
    %p130 = scmp.eq.s32.totalorder %s16, 0
    %p131 = por %p129, %p130
    %p132 = scmp.ne.s32.totalorder %s118, %s119
    %p133 = scmp.eq.s32.totalorder %s17, 1
    %p134 = por %p132, %p133
    %p136 = scmp.ne.s32.totalorder %s119, %s135
    %p137 = scmp.eq.s32.totalorder %s17, 0
    %p138 = por %p136, %p137
    %p139 = scmp.le.s32.totalorder 1, %s11
    %p140 = scmp.lt.s32.totalorder %s11, 3
    %p141 = pnand %p139, %p140
    %p142 = pneg %p141
    // Predicated region
    $region9: #{fcos_pss_inference.1} parent=5 // pred_check
      _
    $region10: #{fcos_pss_inference.1} parent=5 // pred_check_branch
      %144 = sbr.rel (%p141) target = $region12
    $region11: #{fcos_pss_inference.1} parent=5 // pred_region
      %s145 = ssub.s32 %s11, 1
      // Predicated region
      $region13: #{fcos_pss_inference.1} parent=11 // pred_check
        %p146 = pneg %p58
      $region14: #{fcos_pss_inference.1} parent=11 // pred_check_branch
        %148 = sbr.rel (%p146) target = $region16
      $region15: #{fcos_pss_inference.1} parent=11 // pred_region
        _
      $region16: #{fcos_pss_inference.1} parent=11 // pred_fallthru
        _
      // Predicated region
      $region17: #{fcos_pss_inference.1} parent=11 // pred_check
        %p149 = pneg %p79
      $region18: #{fcos_pss_inference.1} parent=11 // pred_check_branch
        %151 = sbr.rel (%p149) target = $region20
      $region19: #{fcos_pss_inference.1} parent=11 // pred_region
        _
      $region20: #{fcos_pss_inference.1} parent=11 // pred_fallthru
        _
    $region12: #{fcos_pss_inference.1} parent=5 // pred_fallthru
      _
    %p152 = scmp.lt.s32.totalorder %s11, 2
    // Predicated region
    $region21: #{fcos_pss_inference.1} parent=5 // pred_check
      %p153 = pneg %p152
    $region22: #{fcos_pss_inference.1} parent=5 // pred_check_branch
      %155 = sbr.rel (%p153) target = $region24
    $region23: #{fcos_pss_inference.1} parent=5 // pred_region
      // Predicated region
      $region25: #{fcos_pss_inference.1} parent=23 // pred_check
        %p156 = pneg %p31
      $region26: #{fcos_pss_inference.1} parent=23 // pred_check_branch
        %158 = sbr.rel (%p156) target = $region28
      $region27: #{fcos_pss_inference.1} parent=23 // pred_region
        %p159 = scmp.lt.s32.totalorder %s11, 1
        %s160 = scalar_select %p159, %s11, 1
        %s161 = smul.addr %s160, 8
        %s162 = smul.addr %s161, 4
        %s163 = scalar_lea.vmem %s0, %s162
      $region28: #{fcos_pss_inference.1} parent=23 // pred_fallthru
        _
    $region24: #{fcos_pss_inference.1} parent=5 // pred_fallthru
      _
    %p164 = scmp.le.s32.totalorder 1, %s11
    %p165 = scmp.lt.s32.totalorder %s11, 3
    %p166 = pnand %p164, %p165
    %p167 = pneg %p166
    // Predicated region
    $region29: #{fcos_pss_inference.1} parent=5 // pred_check
      _
    $region30: #{fcos_pss_inference.1} parent=5 // pred_check_branch
      %169 = sbr.rel (%p166) target = $region32
    $region31: #{fcos_pss_inference.1} parent=5 // pred_region
      %s170 = ssub.s32 %s11, 1
      %p171 = scmp.lt.s32.totalorder %s16, 1
      %s172 = scalar_select %p171, %s16, 1
      %s173 = smul.addr %s172, 8
      %s174 = smul.addr %s173, 4
      %s175 = scalar_lea.vmem %s0, %s174
      %p176 = pneg %p37
      %p177 = pneg %p34
      %p178 = pneg %p58
      %p179 = pneg %p55
      %p180 = pneg %p79
      %p181 = pneg %p76
      %p182 = pneg %p105
      %p183 = pneg %p102
      %p184 = scmp.lt.s32.totalorder %s16, 1
      %s185 = scalar_select %p184, %s16, 1
      %s186 = smul.addr %s185, 3
      %s187 = smul.addr %s186, 8
      %s188 = scalar_lea.vmem %s3, %s187
      %p189 = pneg %p131
      %p190 = pneg %p128
      %p191 = scmp.lt.s32.totalorder %s16, 1
      %s192 = scalar_select %p191, %s16, 1
      %s193 = smul.addr %s192, 3
      %s194 = smul.addr %s193, 8
      %s195 = scalar_lea.vmem %s4, %s194
      %p196 = scmp.lt.s32.totalorder %s16, 1
      %s197 = scalar_select %p196, %s16, 1
      %s198 = smul.addr %s197, 8
      %s199 = smul.addr %s198, 4
      %s200 = scalar_lea.vmem %s0, %s199
      %p201 = scmp.lt.s32.totalorder %s16, 1
      %s202 = scalar_select %p201, %s16, 1
      %s203 = smul.addr %s202, 3
      %s204 = smul.addr %s203, 8
      %s205 = scalar_lea.vmem %s3, %s204
      %p206 = scmp.lt.s32.totalorder %s16, 1
      %s207 = scalar_select %p206, %s16, 1
      %s208 = smul.addr %s207, 3
      %s209 = smul.addr %s208, 8
      %s210 = scalar_lea.vmem %s4, %s209
      %v212 = vld [vmem:[%s200] sm:$0xf]
      %v213 = vld [vmem:[%s200 + $0x4] sm:$0xf]
      %v214 = vld [vmem:[%s200 + $0x8] sm:$0xf]
      %v215 = vld [vmem:[%s200 + $0xc] sm:$0xf]
      %v216 = vld [vmem:[%s200 + $0x10] sm:$0xf]
      %v217 = vld [vmem:[%s200 + $0x14] sm:$0xf]
      %v218 = vld [vmem:[%s200 + $0x18] sm:$0xf]
      %v219 = vld [vmem:[%s200 + $0x1c] sm:$0xf]
      %v220 = vld [vmem:[%s1] sm:$0xf]
      %v221 = vld [vmem:[%s1 + $0x4] sm:$0xf]
      %v222 = vld [vmem:[%s1 + $0x8] sm:$0xf]
      %v223 = vld [vmem:[%s1 + $0xc] sm:$0xf]
      %v224 = vld [vmem:[%s1 + $0x10] sm:$0xf]
      %v225 = vld [vmem:[%s1 + $0x14] sm:$0xf]
      %v226 = vld [vmem:[%s1 + $0x18] sm:$0xf]
      %v227 = vld [vmem:[%s1 + $0x1c] sm:$0xf]
      %v228 = vld [vmem:[%s1 + $0x20] sm:$0xf]
      %v229 = vld [vmem:[%s1 + $0x24] sm:$0xf]
      %v230 = vld [vmem:[%s1 + $0x28] sm:$0xf]
      %v231 = vld [vmem:[%s1 + $0x2c] sm:$0xf]
      %v232 = vld [vmem:[%s1 + $0x30] sm:$0xf]
      %v233 = vld [vmem:[%s1 + $0x34] sm:$0xf]
      %v234 = vld [vmem:[%s1 + $0x38] sm:$0xf]
      %v235 = vld [vmem:[%s1 + $0x3c] sm:$0xf]
      %v236 = vld [vmem:[%s2] sm:$0x1]
      %v237 = vperm.slane %v236, 0
      %v246 = vunpack.c.l.b16 %v212
      %v247 = vunpack.c.l.b16 %v213
      %v248 = vunpack.c.l.b16 %v214
      %v249 = vunpack.c.l.b16 %v215
      %v250 = vunpack.c.l.b16 %v216
      %v251 = vunpack.c.l.b16 %v217
      %v252 = vunpack.c.l.b16 %v218
      %v253 = vunpack.c.l.b16 %v219
      %v254 = vpack.c.b16 %v247, %v246
      %v255 = vpack.c.b16 %v249, %v248
      %v256 = vpack.c.b16 %v251, %v250
      %v257 = vpack.c.b16 %v253, %v252
      %v278 = vunpack.c.l.b16 %v220
      %v279 = vunpack.c.l.b16 %v221
      %v280 = vunpack.c.l.b16 %v222
      %v281 = vunpack.c.l.b16 %v223
      %v282 = vunpack.c.l.b16 %v224
      %v283 = vunpack.c.l.b16 %v225
      %v284 = vunpack.c.l.b16 %v226
      %v285 = vunpack.c.l.b16 %v227
      %v286 = vunpack.c.l.b16 %v228
      %v287 = vunpack.c.l.b16 %v229
      %v288 = vunpack.c.l.b16 %v230
      %v289 = vunpack.c.l.b16 %v231
      %v290 = vunpack.c.l.b16 %v232
      %v291 = vunpack.c.l.b16 %v233
      %v292 = vunpack.c.l.b16 %v234
      %v293 = vunpack.c.l.b16 %v235
      %v294 = vpack.c.b16 %v279, %v278
      %v295 = vpack.c.b16 %v281, %v280
      %v296 = vpack.c.b16 %v283, %v282
      %v297 = vpack.c.b16 %v285, %v284
      %v298 = vpack.c.b16 %v287, %v286
      %v299 = vpack.c.b16 %v289, %v288
      %v300 = vpack.c.b16 %v291, %v290
      %v301 = vpack.c.b16 %v293, %v292
      %310 = vmatpush.bf16.msra.mxu0 %v301
      %311 = vmatpush.bf16.msra.mxu0 %v300
      %312 = vmatpush.bf16.msra.mxu0 %v299
      %313 = vmatpush.bf16.msra.mxu0 %v298
      %314 = vmatpush.bf16.msra.mxu0 %v297
      %315 = vmatpush.bf16.msra.mxu0 %v296
      %316 = vmatpush.bf16.msra.mxu0 %v295
      %317 = vmatpush.bf16.msra.mxu0 %v294
      %318 = vmatmul.bf16.gmra.mxu0 %v254
      %v319 = vpop.f32.mrf.mxu0
      %v320 = vadd.f32 %v237, %v319
      %v321 = vpop.f32.mrf.mxu0
      %v322 = vadd.f32 %v237, %v321
      %323 = vmatmul.bf16.gmra.mxu0 %v255
      %v324 = vpop.f32.mrf.mxu0
      %v325 = vadd.f32 %v237, %v324
      %v326 = vpop.f32.mrf.mxu0
      %v327 = vadd.f32 %v237, %v326
      %328 = vmatmul.bf16.gmra.mxu0 %v256
      %v329 = vpop.f32.mrf.mxu0
      %v330 = vadd.f32 %v237, %v329
      %v331 = vpop.f32.mrf.mxu0
      %v332 = vadd.f32 %v237, %v331
      %333 = vmatmul.bf16.gmra.mxu0 %v257
      %v334 = vpop.f32.mrf.mxu0
      %v335 = vadd.f32 %v237, %v334
      %v336 = vpop.f32.mrf.mxu0
      %v337 = vadd.f32 %v237, %v336
      %338 = vdwg.mxu0
      %v339 = vmax.f32 %v320, 0.0
      %v340 = vmax.f32 %v322, 0.0
      %v341 = vmax.f32 %v325, 0.0
      %v342 = vmax.f32 %v327, 0.0
      %v343 = vmax.f32 %v330, 0.0
      %v344 = vmax.f32 %v332, 0.0
      %v345 = vmax.f32 %v335, 0.0
      %v346 = vmax.f32 %v337, 0.0
      %v347 = vpack.c.bf16 %v340, %v339
      %v348 = vpack.c.bf16 %v342, %v341
      %v349 = vpack.c.bf16 %v344, %v343
      %v350 = vpack.c.bf16 %v346, %v345
      %v351 = vld [vmem:[%s1 + $0x5b8] sm:$0xf]
      %v352 = vld [vmem:[%s1 + $0x5bc] sm:$0xf]
      %v353 = vld [vmem:[%s1 + $0x5c0] sm:$0xf]
      %v354 = vld [vmem:[%s1 + $0x5c4] sm:$0xf]
      %v355 = vld [vmem:[%s1 + $0x5c8] sm:$0xf]
      %v356 = vld [vmem:[%s1 + $0x5cc] sm:$0xf]
      %v357 = vld [vmem:[%s1 + $0x5d0] sm:$0xf]
      %v358 = vld [vmem:[%s1 + $0x5d4] sm:$0xf]
      %v359 = vld [vmem:[%s1 + $0x5d8] sm:$0xf]
      %v360 = vld [vmem:[%s1 + $0x5dc] sm:$0xf]
      %v361 = vld [vmem:[%s1 + $0x5e0] sm:$0xf]
      %v362 = vld [vmem:[%s1 + $0x5e4] sm:$0xf]
      %v363 = vld [vmem:[%s1 + $0x5e8] sm:$0xf]
      %v364 = vld [vmem:[%s1 + $0x5ec] sm:$0xf]
      %v365 = vld [vmem:[%s1 + $0x5f0] sm:$0xf]
      %v366 = vld [vmem:[%s1 + $0x5f4] sm:$0xf]
      %v367 = vld [vmem:[%s1 + $0x5f8] sm:$0xf]
      %v368 = vld [vmem:[%s1 + $0x5fc] sm:$0xf]
      %v387 = vunpack.c.l.b16 %v351
      %v388 = vunpack.c.l.b16 %v352
      %v389 = vunpack.c.l.b16 %v353
      %v390 = vunpack.c.l.b16 %v354
      %v391 = vunpack.c.l.b16 %v355
      %v392 = vunpack.c.l.b16 %v356
      %v393 = vunpack.c.l.b16 %v357
      %v394 = vunpack.c.l.b16 %v358
      %v395 = vunpack.c.l.b16 %v359
      %v396 = vunpack.c.l.b16 %v360
      %v397 = vunpack.c.l.b16 %v361
      %v398 = vunpack.c.l.b16 %v362
      %v399 = vunpack.c.l.b16 %v363
      %v400 = vunpack.c.l.b16 %v364
      %v401 = vunpack.c.l.b16 %v365
      %v402 = vunpack.c.l.b16 %v366
      %v403 = vunpack.c.l.b16 %v367
      %v404 = vunpack.c.l.b16 %v368
      %v405 = vpack.c.b16 %v388, %v387
      %v406 = vpack.c.b16 %v390, %v389
      %v407 = vpack.c.b16 %v392, %v391
      %v408 = vpack.c.b16 %v394, %v393
      %v409 = vpack.c.b16 %v396, %v395
      %v410 = vpack.c.b16 %v398, %v397
      %v411 = vpack.c.b16 %v400, %v399
      %v412 = vpack.c.b16 %v402, %v401
      %v413 = vpack.c.b16 %v404, %v403
      %vm414 = vcmask 523264
      %v416 = vsel %vm414, %v405, 0
      %v419 = vsel %vm414, %v406, 0
      %v422 = vsel %vm414, %v407, 0
      %v425 = vsel %vm414, %v408, 0
      %v428 = vsel %vm414, %v409, 0
      %v431 = vsel %vm414, %v410, 0
      %v434 = vsel %vm414, %v411, 0
      %v437 = vsel %vm414, %v412, 0
      %v440 = vsel %vm414, %v413, 0
      %442 = vmatpush.bf16.msra.mxu0 0
      %443 = vmatpush.bf16.msra.mxu0 0
      %444 = vmatpush.bf16.msra.mxu0 0
      %445 = vmatpush.bf16.msra.mxu0 0
      %446 = vmatpush.bf16.msra.mxu0 %v350
      %447 = vmatpush.bf16.msra.mxu0 %v349
      %448 = vmatpush.bf16.msra.mxu0 %v348
      %449 = vmatpush.bf16.msra.mxu0 %v347
      %450 = vmatmul.bf16.gmra.mxu0 %v416
      %v451 = vpop.f32.mrf.mxu0
      %v452 = vadd.f32 0.0, %v451
      %v453 = vpop.f32.mrf.mxu0
      %v454 = vadd.f32 0.0, %v453
      %455 = vmatmul.bf16.gmra.mxu0 %v419
      %v456 = vpop.f32.mrf.mxu0
      %v457 = vadd.f32 0.0, %v456
      %v458 = vpop.f32.mrf.mxu0
      %v459 = vadd.f32 0.0, %v458
      %460 = vmatmul.bf16.gmra.mxu0 %v422
      %v461 = vpop.f32.mrf.mxu0
      %v462 = vadd.f32 0.0, %v461
      %v463 = vpop.f32.mrf.mxu0
      %v464 = vadd.f32 0.0, %v463
      %465 = vmatmul.bf16.gmra.mxu0 %v425
      %v466 = vpop.f32.mrf.mxu0
      %v467 = vadd.f32 0.0, %v466
      %v468 = vpop.f32.mrf.mxu0
      %v469 = vadd.f32 0.0, %v468
      %470 = vmatmul.bf16.gmra.mxu0 %v428
      %v471 = vpop.f32.mrf.mxu0
      %v472 = vadd.f32 0.0, %v471
      %v473 = vpop.f32.mrf.mxu0
      %v474 = vadd.f32 0.0, %v473
      %475 = vmatmul.bf16.gmra.mxu0 %v431
      %v476 = vpop.f32.mrf.mxu0
      %v477 = vadd.f32 0.0, %v476
      %v478 = vpop.f32.mrf.mxu0
      %v479 = vadd.f32 0.0, %v478
      %480 = vmatmul.bf16.gmra.mxu0 %v434
      %v481 = vpop.f32.mrf.mxu0
      %v482 = vadd.f32 0.0, %v481
      %v483 = vpop.f32.mrf.mxu0
      %v484 = vadd.f32 0.0, %v483
      %485 = vmatmul.bf16.gmra.mxu0 %v437
      %v486 = vpop.f32.mrf.mxu0
      %v487 = vadd.f32 0.0, %v486
      %v488 = vpop.f32.mrf.mxu0
      %v489 = vadd.f32 0.0, %v488
      %490 = vmatmul.bf16.gmra.mxu0 %v440
      %v491 = vpop.f32.mrf.mxu0
      %v492 = vadd.f32 0.0, %v491
      %v493 = vpop.f32.mrf.mxu0
      %v494 = vadd.f32 0.0, %v493
      %495 = vdwg.mxu0
      %v496 = vpack.c.bf16 %v452, %v452
      %v497 = vpack.c.bf16 %v454, %v454
      %v498 = vpack.c.bf16 %v457, %v457
      %v499 = vpack.c.bf16 %v459, %v459
      %v500 = vpack.c.bf16 %v462, %v462
      %v501 = vpack.c.bf16 %v464, %v464
      %v502 = vpack.c.bf16 %v467, %v467
      %v503 = vpack.c.bf16 %v469, %v469
      %v504 = vpack.c.bf16 %v472, %v472
      %v505 = vpack.c.bf16 %v474, %v474
      %v506 = vpack.c.bf16 %v477, %v477
      %v507 = vpack.c.bf16 %v479, %v479
      %v508 = vpack.c.bf16 %v482, %v482
      %v509 = vpack.c.bf16 %v484, %v484
      %v510 = vpack.c.bf16 %v487, %v487
      %v511 = vpack.c.bf16 %v489, %v489
      %v512 = vpack.c.bf16 %v492, %v492
      %v513 = vpack.c.bf16 %v494, %v494
      %v514 = vld [vmem:[%s1 + $0x40] sm:$0xf]
      %v515 = vld [vmem:[%s1 + $0x44] sm:$0xf]
      %v516 = vld [vmem:[%s1 + $0x48] sm:$0xf]
      %v517 = vld [vmem:[%s1 + $0x4c] sm:$0xf]
      %v520 = vunpack.c.l.b16 %v498
      %v521 = vunpack.c.l.b16 %v499
      %v522 = vpack.c.b16 %v521, %v520
      %v525 = vunpack.c.l.b16 %v516
      %v526 = vunpack.c.l.b16 %v517
      %v527 = vpack.c.b16 %v526, %v525
      %vm529 = vcmask 130048
      %v531 = vsel %vm529, %v522, 0
      %533 = vmatpush.bf16.msra.mxu0 0
      %534 = vmatpush.bf16.msra.mxu0 0
      %535 = vmatpush.bf16.msra.mxu0 0
      %536 = vmatpush.bf16.msra.mxu0 0
      %537 = vmatpush.bf16.msra.mxu0 0
      %538 = vmatpush.bf16.msra.mxu0 0
      %539 = vmatpush.bf16.msra.mxu0 0
      %540 = vmatpush.bf16.msra.mxu0 %v527
      %541 = vmatmul.bf16.gmra.mxu0 %v531
      %v542 = vpop.f32.mrf.mxu0
      %v543 = vadd.f32 0.0, %v542
      %v544 = vpop.f32.mrf.mxu0
      %v545 = vadd.f32 0.0, %v544
      %546 = vdwg.mxu0
      %v547 = vld [vmem:[%s1 + $0x50] sm:$0xf]
      %v548 = vld [vmem:[%s1 + $0x54] sm:$0xf]
      %v549 = vld [vmem:[%s1 + $0x58] sm:$0xf]
      %v550 = vld [vmem:[%s1 + $0x5c] sm:$0xf]
      %v553 = vunpack.c.l.b16 %v502
      %v554 = vunpack.c.l.b16 %v503
      %v555 = vpack.c.b16 %v554, %v553
      %v558 = vunpack.c.l.b16 %v549
      %v559 = vunpack.c.l.b16 %v550
      %v560 = vpack.c.b16 %v559, %v558
      %v563 = vsel %vm529, %v555, 0
      %565 = vmatpush.bf16.msra.mxu0 0
      %566 = vmatpush.bf16.msra.mxu0 0
      %567 = vmatpush.bf16.msra.mxu0 0
      %568 = vmatpush.bf16.msra.mxu0 0
      %569 = vmatpush.bf16.msra.mxu0 0
      %570 = vmatpush.bf16.msra.mxu0 0
      %571 = vmatpush.bf16.msra.mxu0 0
      %572 = vmatpush.bf16.msra.mxu0 %v560
      %573 = vmatmul.bf16.gmra.mxu0 %v563
      %v574 = vpop.f32.mrf.mxu0
      %v575 = vadd.f32 0.0, %v574
      %v576 = vpop.f32.mrf.mxu0
      %v577 = vadd.f32 0.0, %v576
      %578 = vdwg.mxu0
      %v579 = vld [vmem:[%s1 + $0x60] sm:$0xf]
      %v580 = vld [vmem:[%s1 + $0x64] sm:$0xf]
      %v581 = vld [vmem:[%s1 + $0x68] sm:$0xf]
      %v582 = vld [vmem:[%s1 + $0x6c] sm:$0xf]
      %v585 = vunpack.c.l.b16 %v506
      %v586 = vunpack.c.l.b16 %v507
      %v587 = vpack.c.b16 %v586, %v585
      %v590 = vunpack.c.l.b16 %v581
      %v591 = vunpack.c.l.b16 %v582
      %v592 = vpack.c.b16 %v591, %v590
      %v595 = vsel %vm529, %v587, 0
      %597 = vmatpush.bf16.msra.mxu0 0
      %598 = vmatpush.bf16.msra.mxu0 0
      %599 = vmatpush.bf16.msra.mxu0 0
      %600 = vmatpush.bf16.msra.mxu0 0
      %601 = vmatpush.bf16.msra.mxu0 0
      %602 = vmatpush.bf16.msra.mxu0 0
      %603 = vmatpush.bf16.msra.mxu0 0
      %604 = vmatpush.bf16.msra.mxu0 %v592
      %605 = vmatmul.bf16.gmra.mxu0 %v595
      %v606 = vpop.f32.mrf.mxu0
      %v607 = vadd.f32 0.0, %v606
      %v608 = vpop.f32.mrf.mxu0
      %v609 = vadd.f32 0.0, %v608
      %610 = vdwg.mxu0
      %v611 = vld [vmem:[%s1 + $0x70] sm:$0xf]
      %v612 = vld [vmem:[%s1 + $0x74] sm:$0xf]
      %v613 = vld [vmem:[%s1 + $0x78] sm:$0xf]
      %v614 = vld [vmem:[%s1 + $0x7c] sm:$0xf]
      %v617 = vunpack.c.l.b16 %v510
      %v618 = vunpack.c.l.b16 %v511
      %v619 = vpack.c.b16 %v618, %v617
      %v622 = vunpack.c.l.b16 %v613
      %v623 = vunpack.c.l.b16 %v614
      %v624 = vpack.c.b16 %v623, %v622
      %v627 = vsel %vm529, %v619, 0
      %629 = vmatpush.bf16.msra.mxu0 0
      %630 = vmatpush.bf16.msra.mxu0 0
      %631 = vmatpush.bf16.msra.mxu0 0
      %632 = vmatpush.bf16.msra.mxu0 0
      %633 = vmatpush.bf16.msra.mxu0 0
      %634 = vmatpush.bf16.msra.mxu0 0
      %635 = vmatpush.bf16.msra.mxu0 0
      %636 = vmatpush.bf16.msra.mxu0 %v624
      %637 = vmatmul.bf16.gmra.mxu0 %v627
      %v638 = vpop.f32.mrf.mxu0
      %v639 = vadd.f32 0.0, %v638
      %v640 = vpop.f32.mrf.mxu0
      %v641 = vadd.f32 0.0, %v640
      %642 = vdwg.mxu0
      %v643 = vld [vmem:[%s1 + $0x80] sm:$0xf]
      %v644 = vld [vmem:[%s1 + $0x84] sm:$0xf]
      %v647 = vunpack.c.l.b16 %v512
      %v648 = vunpack.c.l.b16 %v513
      %v649 = vpack.c.b16 %v648, %v647
      %v652 = vunpack.c.l.b16 %v643
      %v653 = vunpack.c.l.b16 %v644
      %v654 = vpack.c.b16 %v653, %v652
      %v657 = vsel %vm529, %v649, 0
      %659 = vmatpush.bf16.msra.mxu0 0
      %660 = vmatpush.bf16.msra.mxu0 0
      %661 = vmatpush.bf16.msra.mxu0 0
      %662 = vmatpush.bf16.msra.mxu0 0
      %663 = vmatpush.bf16.msra.mxu0 0
      %664 = vmatpush.bf16.msra.mxu0 0
      %665 = vmatpush.bf16.msra.mxu0 0
      %666 = vmatpush.bf16.msra.mxu0 %v654
      %667 = vmatmul.bf16.gmra.mxu0 %v657
      %v668 = vpop.f32.mrf.mxu0
      %v669 = vadd.f32 0.0, %v668
      %v670 = vpop.f32.mrf.mxu0
      %v671 = vadd.f32 0.0, %v670
      %672 = vdwg.mxu0
      %v675 = vunpack.c.l.b16 %v496
      %v676 = vunpack.c.l.b16 %v497
      %v677 = vpack.c.b16 %v676, %v675
      %v680 = vunpack.c.l.b16 %v514
      %v681 = vunpack.c.l.b16 %v515
      %v682 = vpack.c.b16 %v681, %v680
      %v685 = vsel %vm529, %v677, 0
      %687 = vmatpush.bf16.msra.mxu0 0
      %688 = vmatpush.bf16.msra.mxu0 0
      %689 = vmatpush.bf16.msra.mxu0 0
      %690 = vmatpush.bf16.msra.mxu0 0
      %691 = vmatpush.bf16.msra.mxu0 0
      %692 = vmatpush.bf16.msra.mxu0 0
      %693 = vmatpush.bf16.msra.mxu0 0
      %694 = vmatpush.bf16.msra.mxu0 %v682
      %695 = vmatmul.bf16.gmra.mxu0 %v685
      %v696 = vpop.f32.mrf.mxu0
      %v697 = vadd.f32 %v543, %v696
      %v698 = vpop.f32.mrf.mxu0
      %v699 = vadd.f32 %v545, %v698
      %700 = vdwg.mxu0
      %v703 = vunpack.c.l.b16 %v500
      %v704 = vunpack.c.l.b16 %v501
      %v705 = vpack.c.b16 %v704, %v703
      %v708 = vunpack.c.l.b16 %v547
      %v709 = vunpack.c.l.b16 %v548
      %v710 = vpack.c.b16 %v709, %v708
      %v713 = vsel %vm529, %v705, 0
      %715 = vmatpush.bf16.msra.mxu0 0
      %716 = vmatpush.bf16.msra.mxu0 0
      %717 = vmatpush.bf16.msra.mxu0 0
      %718 = vmatpush.bf16.msra.mxu0 0
      %719 = vmatpush.bf16.msra.mxu0 0
      %720 = vmatpush.bf16.msra.mxu0 0
      %721 = vmatpush.bf16.msra.mxu0 0
      %722 = vmatpush.bf16.msra.mxu0 %v710
      %723 = vmatmul.bf16.gmra.mxu0 %v713
      %v724 = vpop.f32.mrf.mxu0
      %v725 = vadd.f32 %v575, %v724
      %v726 = vpop.f32.mrf.mxu0
      %v727 = vadd.f32 %v577, %v726
      %728 = vdwg.mxu0
      %v731 = vunpack.c.l.b16 %v504
      %v732 = vunpack.c.l.b16 %v505
      %v733 = vpack.c.b16 %v732, %v731
      %v736 = vunpack.c.l.b16 %v579
      %v737 = vunpack.c.l.b16 %v580
      %v738 = vpack.c.b16 %v737, %v736
      %v741 = vsel %vm529, %v733, 0
      %743 = vmatpush.bf16.msra.mxu0 0
      %744 = vmatpush.bf16.msra.mxu0 0
      %745 = vmatpush.bf16.msra.mxu0 0
      %746 = vmatpush.bf16.msra.mxu0 0
      %747 = vmatpush.bf16.msra.mxu0 0
      %748 = vmatpush.bf16.msra.mxu0 0
      %749 = vmatpush.bf16.msra.mxu0 0
      %750 = vmatpush.bf16.msra.mxu0 %v738
      %751 = vmatmul.bf16.gmra.mxu0 %v741
      %v752 = vpop.f32.mrf.mxu0
      %v753 = vadd.f32 %v607, %v752
      %v754 = vpop.f32.mrf.mxu0
      %v755 = vadd.f32 %v609, %v754
      %756 = vdwg.mxu0
      %v759 = vunpack.c.l.b16 %v508
      %v760 = vunpack.c.l.b16 %v509
      %v761 = vpack.c.b16 %v760, %v759
      %v764 = vunpack.c.l.b16 %v611
      %v765 = vunpack.c.l.b16 %v612
      %v766 = vpack.c.b16 %v765, %v764
      %v769 = vsel %vm529, %v761, 0
      %771 = vmatpush.bf16.msra.mxu0 0
      %772 = vmatpush.bf16.msra.mxu0 0
      %773 = vmatpush.bf16.msra.mxu0 0
      %774 = vmatpush.bf16.msra.mxu0 0
      %775 = vmatpush.bf16.msra.mxu0 0
      %776 = vmatpush.bf16.msra.mxu0 0
      %777 = vmatpush.bf16.msra.mxu0 0
      %778 = vmatpush.bf16.msra.mxu0 %v766
      %779 = vmatmul.bf16.gmra.mxu0 %v769
      %v780 = vpop.f32.mrf.mxu0
      %v781 = vadd.f32 %v639, %v780
      %v782 = vpop.f32.mrf.mxu0
      %v783 = vadd.f32 %v641, %v782
      %784 = vdwg.mxu0
      %v785 = vadd.f32 %v697, %v725
      %v786 = vadd.f32 %v699, %v727
      %v787 = vadd.f32 %v753, %v781
      %v788 = vadd.f32 %v755, %v783
      %v789 = vadd.f32 %v785, %v787
      %v790 = vadd.f32 %v786, %v788
      %v791 = vadd.f32 %v789, %v669
      %v792 = vadd.f32 %v790, %v671
      %v793 = vld [vmem:[%s2 + $0x8] sm:$0x1]
      %v794 = vperm.slane %v793, 0
      %v795 = vadd.f32 %v791, %v794
      %v796 = vadd.f32 %v792, %v794
      %v797 = vmax.f32 %v795, 0.0
      %v798 = vmax.f32 %v796, 0.0
      %v799 = vpack.c.bf16 %v798, %v797
      %v800 = vld [vmem:[%s1 + $0x600] sm:$0xf]
      %v801 = vld [vmem:[%s1 + $0x604] sm:$0xf]
      %v802 = vld [vmem:[%s1 + $0x608] sm:$0xf]
      %v803 = vld [vmem:[%s1 + $0x60c] sm:$0xf]
      %v804 = vld [vmem:[%s1 + $0x610] sm:$0xf]
      %v805 = vld [vmem:[%s1 + $0x614] sm:$0xf]
      %v806 = vld [vmem:[%s1 + $0x618] sm:$0xf]
      %v807 = vld [vmem:[%s1 + $0x61c] sm:$0xf]
      %v808 = vld [vmem:[%s1 + $0x620] sm:$0xf]
      %v818 = vunpack.c.l.b16 %v800
      %v819 = vunpack.c.l.b16 %v801
      %v820 = vunpack.c.l.b16 %v802
      %v821 = vunpack.c.l.b16 %v803
      %v822 = vunpack.c.l.b16 %v804
      %v823 = vunpack.c.l.b16 %v805
      %v824 = vunpack.c.l.b16 %v806
      %v825 = vunpack.c.l.b16 %v807
      %v826 = vunpack.c.l.b16 %v808
      %v827 = vpack.c.b16 %v819, %v818
      %v828 = vpack.c.b16 %v821, %v820
      %v829 = vpack.c.b16 %v823, %v822
      %v830 = vpack.c.b16 %v825, %v824
      %v831 = vpack.c.b16 %v826, %v826
      %v833 = vsel %vm529, %v827, 0
      %v836 = vsel %vm529, %v828, 0
      %v839 = vsel %vm529, %v829, 0
      %v842 = vsel %vm529, %v830, 0
      %v845 = vsel %vm529, %v831, 0
      %847 = vmatpush.bf16.msra.mxu0 0
      %848 = vmatpush.bf16.msra.mxu0 0
      %849 = vmatpush.bf16.msra.mxu0 0
      %850 = vmatpush.bf16.msra.mxu0 0
      %851 = vmatpush.bf16.msra.mxu0 0
      %852 = vmatpush.bf16.msra.mxu0 0
      %853 = vmatpush.bf16.msra.mxu0 0
      %854 = vmatpush.bf16.msra.mxu0 %v799
      %855 = vmatmul.bf16.gmra.mxu0 %v833
      %v856 = vpop.f32.mrf.mxu0
      %v857 = vadd.f32 0.0, %v856
      %v858 = vpop.f32.mrf.mxu0
      %v859 = vadd.f32 0.0, %v858
      %860 = vmatmul.bf16.gmra.mxu0 %v836
      %v861 = vpop.f32.mrf.mxu0
      %v862 = vadd.f32 0.0, %v861
      %v863 = vpop.f32.mrf.mxu0
      %v864 = vadd.f32 0.0, %v863
      %865 = vmatmul.bf16.gmra.mxu0 %v839
      %v866 = vpop.f32.mrf.mxu0
      %v867 = vadd.f32 0.0, %v866
      %v868 = vpop.f32.mrf.mxu0
      %v869 = vadd.f32 0.0, %v868
      %870 = vmatmul.bf16.gmra.mxu0 %v842
      %v871 = vpop.f32.mrf.mxu0
      %v872 = vadd.f32 0.0, %v871
      %v873 = vpop.f32.mrf.mxu0
      %v874 = vadd.f32 0.0, %v873
      %875 = vmatmul.bf16.gmra.mxu0 %v845
      %v876 = vpop.f32.mrf.mxu0
      %v877 = vadd.f32 0.0, %v876
      %v878 = vpop.f32.mrf.mxu0
      %879 = vdwg.mxu0
      %v880 = vpack.c.bf16 %v857, %v857
      %v881 = vpack.c.bf16 %v859, %v859
      %v882 = vpack.c.bf16 %v862, %v862
      %v883 = vpack.c.bf16 %v864, %v864
      %v884 = vpack.c.bf16 %v867, %v867
      %v885 = vpack.c.bf16 %v869, %v869
      %v886 = vpack.c.bf16 %v872, %v872
      %v887 = vpack.c.bf16 %v874, %v874
      %v888 = vpack.c.bf16 %v877, %v877
      %v889 = vld [vmem:[%s1 + $0x88] sm:$0xf]
      %v890 = vld [vmem:[%s1 + $0x8c] sm:$0xf]
      %v891 = vld [vmem:[%s1 + $0x90] sm:$0xf]
      %v892 = vld [vmem:[%s1 + $0x94] sm:$0xf]
      %v893 = vld [vmem:[%s1 + $0x98] sm:$0xf]
      %v894 = vld [vmem:[%s1 + $0x9c] sm:$0xf]
      %v895 = vld [vmem:[%s1 + $0xa0] sm:$0xf]
      %v896 = vld [vmem:[%s1 + $0xa4] sm:$0xf]
      %v901 = vunpack.c.l.b16 %v893
      %v902 = vunpack.c.l.b16 %v894
      %v903 = vunpack.c.l.b16 %v895
      %v904 = vunpack.c.l.b16 %v896
      %v905 = vpack.c.b16 %v902, %v901
      %v906 = vpack.c.b16 %v904, %v903
      %vm909 = vcmask 261120
      %v911 = vsel %vm909, %v881, 0
      %913 = vmatpush.bf16.msra.mxu0 0
      %914 = vmatpush.bf16.msra.mxu0 0
      %915 = vmatpush.bf16.msra.mxu0 0
      %916 = vmatpush.bf16.msra.mxu0 0
      %917 = vmatpush.bf16.msra.mxu0 0
      %918 = vmatpush.bf16.msra.mxu0 0
      %919 = vmatpush.bf16.msra.mxu0 %v906
      %920 = vmatpush.bf16.msra.mxu0 %v905
      %921 = vmatmul.bf16.gmra.mxu0 %v911
      %v922 = vpop.f32.mrf.mxu0
      %v923 = vadd.f32 0.0, %v922
      %v924 = vpop.f32.mrf.mxu0
      %925 = vdwg.mxu0
      %v926 = vld [vmem:[%s1 + $0xa8] sm:$0xf]
      %v927 = vld [vmem:[%s1 + $0xac] sm:$0xf]
      %v928 = vld [vmem:[%s1 + $0xb0] sm:$0xf]
      %v929 = vld [vmem:[%s1 + $0xb4] sm:$0xf]
      %v930 = vld [vmem:[%s1 + $0xb8] sm:$0xf]
      %v931 = vld [vmem:[%s1 + $0xbc] sm:$0xf]
      %v932 = vld [vmem:[%s1 + $0xc0] sm:$0xf]
      %v933 = vld [vmem:[%s1 + $0xc4] sm:$0xf]
      %v938 = vunpack.c.l.b16 %v930
      %v939 = vunpack.c.l.b16 %v931
      %v940 = vunpack.c.l.b16 %v932
      %v941 = vunpack.c.l.b16 %v933
      %v942 = vpack.c.b16 %v939, %v938
      %v943 = vpack.c.b16 %v941, %v940
      %v947 = vsel %vm909, %v883, 0
      %949 = vmatpush.bf16.msra.mxu0 0
      %950 = vmatpush.bf16.msra.mxu0 0
      %951 = vmatpush.bf16.msra.mxu0 0
      %952 = vmatpush.bf16.msra.mxu0 0
      %953 = vmatpush.bf16.msra.mxu0 0
      %954 = vmatpush.bf16.msra.mxu0 0
      %955 = vmatpush.bf16.msra.mxu0 %v943
      %956 = vmatpush.bf16.msra.mxu0 %v942
      %957 = vmatmul.bf16.gmra.mxu0 %v947
      %v958 = vpop.f32.mrf.mxu0
      %v959 = vadd.f32 0.0, %v958
      %v960 = vpop.f32.mrf.mxu0
      %961 = vdwg.mxu0
      %v962 = vld [vmem:[%s1 + $0xc8] sm:$0xf]
      %v963 = vld [vmem:[%s1 + $0xcc] sm:$0xf]
      %v964 = vld [vmem:[%s1 + $0xd0] sm:$0xf]
      %v965 = vld [vmem:[%s1 + $0xd4] sm:$0xf]
      %v966 = vld [vmem:[%s1 + $0xd8] sm:$0xf]
      %v967 = vld [vmem:[%s1 + $0xdc] sm:$0xf]
      %v968 = vld [vmem:[%s1 + $0xe0] sm:$0xf]
      %v969 = vld [vmem:[%s1 + $0xe4] sm:$0xf]
      %v974 = vunpack.c.l.b16 %v966
      %v975 = vunpack.c.l.b16 %v967
      %v976 = vunpack.c.l.b16 %v968
      %v977 = vunpack.c.l.b16 %v969
      %v978 = vpack.c.b16 %v975, %v974
      %v979 = vpack.c.b16 %v977, %v976
      %v983 = vsel %vm909, %v885, 0
      %985 = vmatpush.bf16.msra.mxu0 0
      %986 = vmatpush.bf16.msra.mxu0 0
      %987 = vmatpush.bf16.msra.mxu0 0
      %988 = vmatpush.bf16.msra.mxu0 0
      %989 = vmatpush.bf16.msra.mxu0 0
      %990 = vmatpush.bf16.msra.mxu0 0
      %991 = vmatpush.bf16.msra.mxu0 %v979
      %992 = vmatpush.bf16.msra.mxu0 %v978
      %993 = vmatmul.bf16.gmra.mxu0 %v983
      %v994 = vpop.f32.mrf.mxu0
      %v995 = vadd.f32 0.0, %v994
      %v996 = vpop.f32.mrf.mxu0
      %997 = vdwg.mxu0
      %v998 = vld [vmem:[%s1 + $0xe8] sm:$0xf]
      %v999 = vld [vmem:[%s1 + $0xec] sm:$0xf]
      %v1000 = vld [vmem:[%s1 + $0xf0] sm:$0xf]
      %v1001 = vld [vmem:[%s1 + $0xf4] sm:$0xf]
      %v1002 = vld [vmem:[%s1 + $0xf8] sm:$0xf]
      %v1003 = vld [vmem:[%s1 + $0xfc] sm:$0xf]
      %v1004 = vld [vmem:[%s1 + $0x100] sm:$0xf]
      %v1005 = vld [vmem:[%s1 + $0x104] sm:$0xf]
      %v1010 = vunpack.c.l.b16 %v1002
      %v1011 = vunpack.c.l.b16 %v1003
      %v1012 = vunpack.c.l.b16 %v1004
      %v1013 = vunpack.c.l.b16 %v1005
      %v1014 = vpack.c.b16 %v1011, %v1010
      %v1015 = vpack.c.b16 %v1013, %v1012
      %v1019 = vsel %vm909, %v887, 0
      %1021 = vmatpush.bf16.msra.mxu0 0
      %1022 = vmatpush.bf16.msra.mxu0 0
      %1023 = vmatpush.bf16.msra.mxu0 0
      %1024 = vmatpush.bf16.msra.mxu0 0
      %1025 = vmatpush.bf16.msra.mxu0 0
      %1026 = vmatpush.bf16.msra.mxu0 0
      %1027 = vmatpush.bf16.msra.mxu0 %v1015
      %1028 = vmatpush.bf16.msra.mxu0 %v1014
      %1029 = vmatmul.bf16.gmra.mxu0 %v1019
      %v1030 = vpop.f32.mrf.mxu0
      %v1031 = vadd.f32 0.0, %v1030
      %v1032 = vpop.f32.mrf.mxu0
      %1033 = vdwg.mxu0
      %v1034 = vld [vmem:[%s1 + $0x108] sm:$0xf]
      %v1035 = vld [vmem:[%s1 + $0x10c] sm:$0xf]
      %v1036 = vld [vmem:[%s1 + $0x110] sm:$0xf]
      %v1037 = vld [vmem:[%s1 + $0x114] sm:$0xf]
      %v1042 = vunpack.c.l.b16 %v1034
      %v1043 = vunpack.c.l.b16 %v1035
      %v1044 = vunpack.c.l.b16 %v1036
      %v1045 = vunpack.c.l.b16 %v1037
      %v1046 = vpack.c.b16 %v1043, %v1042
      %v1047 = vpack.c.b16 %v1045, %v1044
      %v1051 = vsel %vm909, %v888, 0
      %1053 = vmatpush.bf16.msra.mxu0 0
      %1054 = vmatpush.bf16.msra.mxu0 0
      %1055 = vmatpush.bf16.msra.mxu0 0
      %1056 = vmatpush.bf16.msra.mxu0 0
      %1057 = vmatpush.bf16.msra.mxu0 0
      %1058 = vmatpush.bf16.msra.mxu0 0
      %1059 = vmatpush.bf16.msra.mxu0 %v1047
      %1060 = vmatpush.bf16.msra.mxu0 %v1046
      %1061 = vmatmul.bf16.gmra.mxu0 %v1051
      %v1062 = vpop.f32.mrf.mxu0
      %v1063 = vadd.f32 0.0, %v1062
      %v1064 = vpop.f32.mrf.mxu0
      %1065 = vdwg.mxu0
      %v1070 = vunpack.c.l.b16 %v889
      %v1071 = vunpack.c.l.b16 %v890
      %v1072 = vunpack.c.l.b16 %v891
      %v1073 = vunpack.c.l.b16 %v892
      %v1074 = vpack.c.b16 %v1071, %v1070
      %v1075 = vpack.c.b16 %v1073, %v1072
      %v1079 = vsel %vm909, %v880, 0
      %1081 = vmatpush.bf16.msra.mxu0 0
      %1082 = vmatpush.bf16.msra.mxu0 0
      %1083 = vmatpush.bf16.msra.mxu0 0
      %1084 = vmatpush.bf16.msra.mxu0 0
      %1085 = vmatpush.bf16.msra.mxu0 0
      %1086 = vmatpush.bf16.msra.mxu0 0
      %1087 = vmatpush.bf16.msra.mxu0 %v1075
      %1088 = vmatpush.bf16.msra.mxu0 %v1074
      %1089 = vmatmul.bf16.gmra.mxu0 %v1079
      %v1090 = vpop.f32.mrf.mxu0
      %v1091 = vadd.f32 %v923, %v1090
      %v1092 = vpop.f32.mrf.mxu0
      %1093 = vdwg.mxu0
      %v1098 = vunpack.c.l.b16 %v926
      %v1099 = vunpack.c.l.b16 %v927
      %v1100 = vunpack.c.l.b16 %v928
      %v1101 = vunpack.c.l.b16 %v929
      %v1102 = vpack.c.b16 %v1099, %v1098
      %v1103 = vpack.c.b16 %v1101, %v1100
      %v1107 = vsel %vm909, %v882, 0
      %1109 = vmatpush.bf16.msra.mxu0 0
      %1110 = vmatpush.bf16.msra.mxu0 0
      %1111 = vmatpush.bf16.msra.mxu0 0
      %1112 = vmatpush.bf16.msra.mxu0 0
      %1113 = vmatpush.bf16.msra.mxu0 0
      %1114 = vmatpush.bf16.msra.mxu0 0
      %1115 = vmatpush.bf16.msra.mxu0 %v1103
      %1116 = vmatpush.bf16.msra.mxu0 %v1102
      %1117 = vmatmul.bf16.gmra.mxu0 %v1107
      %v1118 = vpop.f32.mrf.mxu0
      %v1119 = vadd.f32 %v959, %v1118
      %v1120 = vpop.f32.mrf.mxu0
      %1121 = vdwg.mxu0
      %v1126 = vunpack.c.l.b16 %v962
      %v1127 = vunpack.c.l.b16 %v963
      %v1128 = vunpack.c.l.b16 %v964
      %v1129 = vunpack.c.l.b16 %v965
      %v1130 = vpack.c.b16 %v1127, %v1126
      %v1131 = vpack.c.b16 %v1129, %v1128
      %v1135 = vsel %vm909, %v884, 0
      %1137 = vmatpush.bf16.msra.mxu0 0
      %1138 = vmatpush.bf16.msra.mxu0 0
      %1139 = vmatpush.bf16.msra.mxu0 0
      %1140 = vmatpush.bf16.msra.mxu0 0
      %1141 = vmatpush.bf16.msra.mxu0 0
      %1142 = vmatpush.bf16.msra.mxu0 0
      %1143 = vmatpush.bf16.msra.mxu0 %v1131
      %1144 = vmatpush.bf16.msra.mxu0 %v1130
      %1145 = vmatmul.bf16.gmra.mxu0 %v1135
      %v1146 = vpop.f32.mrf.mxu0
      %v1147 = vadd.f32 %v995, %v1146
      %v1148 = vpop.f32.mrf.mxu0
      %1149 = vdwg.mxu0
      %v1154 = vunpack.c.l.b16 %v998
      %v1155 = vunpack.c.l.b16 %v999
      %v1156 = vunpack.c.l.b16 %v1000
      %v1157 = vunpack.c.l.b16 %v1001
      %v1158 = vpack.c.b16 %v1155, %v1154
      %v1159 = vpack.c.b16 %v1157, %v1156
      %v1163 = vsel %vm909, %v886, 0
      %1165 = vmatpush.bf16.msra.mxu0 0
      %1166 = vmatpush.bf16.msra.mxu0 0
      %1167 = vmatpush.bf16.msra.mxu0 0
      %1168 = vmatpush.bf16.msra.mxu0 0
      %1169 = vmatpush.bf16.msra.mxu0 0
      %1170 = vmatpush.bf16.msra.mxu0 0
      %1171 = vmatpush.bf16.msra.mxu0 %v1159
      %1172 = vmatpush.bf16.msra.mxu0 %v1158
      %1173 = vmatmul.bf16.gmra.mxu0 %v1163
      %v1174 = vpop.f32.mrf.mxu0
      %v1175 = vadd.f32 %v1031, %v1174
      %v1176 = vpop.f32.mrf.mxu0
      %1177 = vdwg.mxu0
      %v1178 = vadd.f32 %v1091, %v1119
      %v1179 = vadd.f32 %v1147, %v1175
      %v1180 = vadd.f32 %v1178, %v1179
      %v1181 = vadd.f32 %v1180, %v1063
      %v1182 = vld [vmem:[%s2 + $0x10] sm:$0x1]
      %v1183 = vperm.slane %v1182, 0
      %v1184 = vadd.f32 %v1181, %v1183
      %v1185 = vmax.f32 %v1184, 0.0
      %v1186 = vpack.c.bf16 %v1185, %v1185
      %v1187 = vld [vmem:[%s1 + $0x128] sm:$0xf]
      %v1188 = vld [vmem:[%s1 + $0x12c] sm:$0xf]
      %v1189 = vld [vmem:[%s1 + $0x130] sm:$0xf]
      %v1190 = vld [vmem:[%s1 + $0x134] sm:$0xf]
      %v1191 = vld [vmem:[%s2 + $0x20] sm:$0x1]
      %v1192 = vperm.slane %v1191, 0
      %v1197 = vunpack.c.l.b16 %v1187
      %v1198 = vunpack.c.l.b16 %v1188
      %v1199 = vunpack.c.l.b16 %v1189
      %v1200 = vunpack.c.l.b16 %v1190
      %v1201 = vpack.c.b16 %v1198, %v1197
      %v1202 = vpack.c.b16 %v1200, %v1199
      %v1206 = vsel %vm909, %v1186, 0
      %1208 = vmatpush.bf16.msra.mxu0 0
      %1209 = vmatpush.bf16.msra.mxu0 0
      %1210 = vmatpush.bf16.msra.mxu0 0
      %1211 = vmatpush.bf16.msra.mxu0 0
      %1212 = vmatpush.bf16.msra.mxu0 0
      %1213 = vmatpush.bf16.msra.mxu0 0
      %1214 = vmatpush.bf16.msra.mxu0 %v1202
      %1215 = vmatpush.bf16.msra.mxu0 %v1201
      %1216 = vmatmul.bf16.gmra.mxu0 %v1206
      %v1217 = vpop.f32.mrf.mxu0
      %v1218 = vadd.f32 %v1192, %v1217
      %v1219 = vpop.f32.mrf.mxu0
      %1220 = vdwg.mxu0
      %v1221 = vpack.c.bf16 %v1218, %v1218
      %v1222 = vld [vmem:[%s1 + $0x118] sm:$0xf]
      %v1223 = vld [vmem:[%s1 + $0x11c] sm:$0xf]
      %v1224 = vld [vmem:[%s1 + $0x120] sm:$0xf]
      %v1225 = vld [vmem:[%s1 + $0x124] sm:$0xf]
      %v1226 = vld [vmem:[%s2 + $0x18] sm:$0x1]
      %v1227 = vperm.slane %v1226, 0
      %v1232 = vunpack.c.l.b16 %v1222
      %v1233 = vunpack.c.l.b16 %v1223
      %v1234 = vunpack.c.l.b16 %v1224
      %v1235 = vunpack.c.l.b16 %v1225
      %v1236 = vpack.c.b16 %v1233, %v1232
      %v1237 = vpack.c.b16 %v1235, %v1234
      %v1241 = vsel %vm909, %v799, 0
      %1243 = vmatpush.bf16.msra.mxu0 0
      %1244 = vmatpush.bf16.msra.mxu0 0
      %1245 = vmatpush.bf16.msra.mxu0 0
      %1246 = vmatpush.bf16.msra.mxu0 0
      %1247 = vmatpush.bf16.msra.mxu0 0
      %1248 = vmatpush.bf16.msra.mxu0 0
      %1249 = vmatpush.bf16.msra.mxu0 %v1237
      %1250 = vmatpush.bf16.msra.mxu0 %v1236
      %1251 = vmatmul.bf16.gmra.mxu0 %v1241
      %v1252 = vpop.f32.mrf.mxu0
      %v1253 = vadd.f32 %v1227, %v1252
      %v1254 = vpop.f32.mrf.mxu0
      %v1255 = vadd.f32 %v1227, %v1254
      %1256 = vdwg.mxu0
      %v1257 = vld [vmem:[%s1 + $0x768] sm:$0xf]
      %v1258 = vld [vmem:[%s1 + $0x76c] sm:$0xf]
      %v1261 = vunpack.c.l.b16 %v1257
      %v1262 = vunpack.c.l.b16 %v1258
      %v1263 = vpack.c.b16 %v1262, %v1261
      %vm1264 = vcmask 64512
      %v1266 = vsel %vm1264, %v1263, 0
      %vm1268 = vcmask 1043456
      %v1270 = vsel %vm1268, %v1221, 0
      %1272 = vmatpush.bf16.msra.mxu0 0
      %1273 = vmatpush.bf16.msra.mxu0 0
      %1274 = vmatpush.bf16.msra.mxu0 0
      %1275 = vmatpush.bf16.msra.mxu0 0
      %1276 = vmatpush.bf16.msra.mxu0 0
      %1277 = vmatpush.bf16.msra.mxu0 0
      %1278 = vmatpush.bf16.msra.mxu0 0
      %1279 = vmatpush.bf16.msra.mxu0 %v1270
      %1280 = vmatmul.bf16.gmra.mxu0 %v1266
      %v1281 = vpop.f32.mrf.mxu0
      %v1282 = vadd.f32 0.0, %v1281
      %v1283 = vpop.f32.mrf.mxu0
      %v1284 = vadd.f32 0.0, %v1283
      %1285 = vdwg.mxu0
      %v1286 = vadd.f32 %v1253, %v1282
      %v1287 = vadd.f32 %v1255, %v1284
      %v1288 = vpack.c.bf16 %v1287, %v1286
      %v1289 = vld [vmem:[%s1 + $0x624] sm:$0xf]
      %v1290 = vld [vmem:[%s1 + $0x628] sm:$0xf]
      %v1291 = vld [vmem:[%s1 + $0x62c] sm:$0xf]
      %v1292 = vld [vmem:[%s1 + $0x630] sm:$0xf]
      %v1293 = vld [vmem:[%s1 + $0x634] sm:$0xf]
      %v1294 = vld [vmem:[%s1 + $0x638] sm:$0xf]
      %v1295 = vld [vmem:[%s1 + $0x63c] sm:$0xf]
      %v1296 = vld [vmem:[%s1 + $0x640] sm:$0xf]
      %v1297 = vld [vmem:[%s1 + $0x644] sm:$0xf]
      %v1298 = vld [vmem:[%s1 + $0x648] sm:$0xf]
      %v1299 = vld [vmem:[%s1 + $0x64c] sm:$0xf]
      %v1300 = vld [vmem:[%s1 + $0x650] sm:$0xf]
      %v1301 = vld [vmem:[%s1 + $0x654] sm:$0xf]
      %v1302 = vld [vmem:[%s1 + $0x658] sm:$0xf]
      %v1303 = vld [vmem:[%s1 + $0x65c] sm:$0xf]
      %v1304 = vld [vmem:[%s1 + $0x660] sm:$0xf]
      %v1305 = vld [vmem:[%s1 + $0x664] sm:$0xf]
      %v1306 = vld [vmem:[%s1 + $0x668] sm:$0xf]
      %v1307 = vld [vmem:[%s1 + $0x66c] sm:$0xf]
      %v1308 = vld [vmem:[%s1 + $0x670] sm:$0xf]
      %v1309 = vld [vmem:[%s1 + $0x674] sm:$0xf]
      %v1310 = vld [vmem:[%s1 + $0x678] sm:$0xf]
      %v1311 = vld [vmem:[%s1 + $0x67c] sm:$0xf]
      %v1312 = vld [vmem:[%s1 + $0x680] sm:$0xf]
      %v1313 = vld [vmem:[%s1 + $0x684] sm:$0xf]
      %v1314 = vld [vmem:[%s1 + $0x688] sm:$0xf]
      %v1315 = vld [vmem:[%s1 + $0x68c] sm:$0xf]
      %v1343 = vunpack.c.l.b16 %v1289
      %v1344 = vunpack.c.l.b16 %v1290
      %v1345 = vunpack.c.l.b16 %v1291
      %v1346 = vunpack.c.l.b16 %v1292
      %v1347 = vunpack.c.l.b16 %v1293
      %v1348 = vunpack.c.l.b16 %v1294
      %v1349 = vunpack.c.l.b16 %v1295
      %v1350 = vunpack.c.l.b16 %v1296
      %v1351 = vunpack.c.l.b16 %v1297
      %v1352 = vunpack.c.l.b16 %v1298
      %v1353 = vunpack.c.l.b16 %v1299
      %v1354 = vunpack.c.l.b16 %v1300
      %v1355 = vunpack.c.l.b16 %v1301
      %v1356 = vunpack.c.l.b16 %v1302
      %v1357 = vunpack.c.l.b16 %v1303
      %v1358 = vunpack.c.l.b16 %v1304
      %v1359 = vunpack.c.l.b16 %v1305
      %v1360 = vunpack.c.l.b16 %v1306
      %v1361 = vunpack.c.l.b16 %v1307
      %v1362 = vunpack.c.l.b16 %v1308
      %v1363 = vunpack.c.l.b16 %v1309
      %v1364 = vunpack.c.l.b16 %v1310
      %v1365 = vunpack.c.l.b16 %v1311
      %v1366 = vunpack.c.l.b16 %v1312
      %v1367 = vunpack.c.l.b16 %v1313
      %v1368 = vunpack.c.l.b16 %v1314
      %v1369 = vunpack.c.l.b16 %v1315
      %v1370 = vpack.c.b16 %v1344, %v1343
      %v1371 = vpack.c.b16 %v1346, %v1345
      %v1372 = vpack.c.b16 %v1348, %v1347
      %v1373 = vpack.c.b16 %v1350, %v1349
      %v1374 = vpack.c.b16 %v1352, %v1351
      %v1375 = vpack.c.b16 %v1354, %v1353
      %v1376 = vpack.c.b16 %v1356, %v1355
      %v1377 = vpack.c.b16 %v1358, %v1357
      %v1378 = vpack.c.b16 %v1360, %v1359
      %v1379 = vpack.c.b16 %v1362, %v1361
      %v1380 = vpack.c.b16 %v1364, %v1363
      %v1381 = vpack.c.b16 %v1366, %v1365
      %v1382 = vpack.c.b16 %v1368, %v1367
      %v1383 = vpack.c.b16 %v1369, %v1369
      %v1385 = vsel %vm529, %v1370, 0
      %v1388 = vsel %vm529, %v1371, 0
      %v1391 = vsel %vm529, %v1372, 0
      %v1394 = vsel %vm529, %v1373, 0
      %v1397 = vsel %vm529, %v1374, 0
      %v1400 = vsel %vm529, %v1375, 0
      %v1403 = vsel %vm529, %v1376, 0
      %v1406 = vsel %vm529, %v1377, 0
      %v1409 = vsel %vm529, %v1378, 0
      %v1412 = vsel %vm529, %v1379, 0
      %v1415 = vsel %vm529, %v1380, 0
      %v1418 = vsel %vm529, %v1381, 0
      %v1421 = vsel %vm529, %v1382, 0
      %v1424 = vsel %vm529, %v1383, 0
      %1426 = vmatpush.bf16.msra.mxu0 0
      %1427 = vmatpush.bf16.msra.mxu0 0
      %1428 = vmatpush.bf16.msra.mxu0 0
      %1429 = vmatpush.bf16.msra.mxu0 0
      %1430 = vmatpush.bf16.msra.mxu0 0
      %1431 = vmatpush.bf16.msra.mxu0 0
      %1432 = vmatpush.bf16.msra.mxu0 0
      %1433 = vmatpush.bf16.msra.mxu0 %v1288
      %1434 = vmatmul.bf16.gmra.mxu0 %v1385
      %v1435 = vpop.f32.mrf.mxu0
      %v1436 = vadd.f32 0.0, %v1435
      %v1437 = vpop.f32.mrf.mxu0
      %v1438 = vadd.f32 0.0, %v1437
      %1439 = vmatmul.bf16.gmra.mxu0 %v1388
      %v1440 = vpop.f32.mrf.mxu0
      %v1441 = vadd.f32 0.0, %v1440
      %v1442 = vpop.f32.mrf.mxu0
      %v1443 = vadd.f32 0.0, %v1442
      %1444 = vmatmul.bf16.gmra.mxu0 %v1391
      %v1445 = vpop.f32.mrf.mxu0
      %v1446 = vadd.f32 0.0, %v1445
      %v1447 = vpop.f32.mrf.mxu0
      %v1448 = vadd.f32 0.0, %v1447
      %1449 = vmatmul.bf16.gmra.mxu0 %v1394
      %v1450 = vpop.f32.mrf.mxu0
      %v1451 = vadd.f32 0.0, %v1450
      %v1452 = vpop.f32.mrf.mxu0
      %v1453 = vadd.f32 0.0, %v1452
      %1454 = vmatmul.bf16.gmra.mxu0 %v1397
      %v1455 = vpop.f32.mrf.mxu0
      %v1456 = vadd.f32 0.0, %v1455
      %v1457 = vpop.f32.mrf.mxu0
      %v1458 = vadd.f32 0.0, %v1457
      %1459 = vmatmul.bf16.gmra.mxu0 %v1400
      %v1460 = vpop.f32.mrf.mxu0
      %v1461 = vadd.f32 0.0, %v1460
      %v1462 = vpop.f32.mrf.mxu0
      %v1463 = vadd.f32 0.0, %v1462
      %1464 = vmatmul.bf16.gmra.mxu0 %v1403
      %v1465 = vpop.f32.mrf.mxu0
      %v1466 = vadd.f32 0.0, %v1465
      %v1467 = vpop.f32.mrf.mxu0
      %v1468 = vadd.f32 0.0, %v1467
      %1469 = vmatmul.bf16.gmra.mxu0 %v1406
      %v1470 = vpop.f32.mrf.mxu0
      %v1471 = vadd.f32 0.0, %v1470
      %v1472 = vpop.f32.mrf.mxu0
      %v1473 = vadd.f32 0.0, %v1472
      %1474 = vmatmul.bf16.gmra.mxu0 %v1409
      %v1475 = vpop.f32.mrf.mxu0
      %v1476 = vadd.f32 0.0, %v1475
      %v1477 = vpop.f32.mrf.mxu0
      %v1478 = vadd.f32 0.0, %v1477
      %1479 = vmatmul.bf16.gmra.mxu0 %v1412
      %v1480 = vpop.f32.mrf.mxu0
      %v1481 = vadd.f32 0.0, %v1480
      %v1482 = vpop.f32.mrf.mxu0
      %v1483 = vadd.f32 0.0, %v1482
      %1484 = vmatmul.bf16.gmra.mxu0 %v1415
      %v1485 = vpop.f32.mrf.mxu0
      %v1486 = vadd.f32 0.0, %v1485
      %v1487 = vpop.f32.mrf.mxu0
      %v1488 = vadd.f32 0.0, %v1487
      %1489 = vmatmul.bf16.gmra.mxu0 %v1418
      %v1490 = vpop.f32.mrf.mxu0
      %v1491 = vadd.f32 0.0, %v1490
      %v1492 = vpop.f32.mrf.mxu0
      %v1493 = vadd.f32 0.0, %v1492
      %1494 = vmatmul.bf16.gmra.mxu0 %v1421
      %v1495 = vpop.f32.mrf.mxu0
      %v1496 = vadd.f32 0.0, %v1495
      %v1497 = vpop.f32.mrf.mxu0
      %v1498 = vadd.f32 0.0, %v1497
      %1499 = vmatmul.bf16.gmra.mxu0 %v1424
      %v1500 = vpop.f32.mrf.mxu0
      %v1501 = vadd.f32 0.0, %v1500
      %v1502 = vpop.f32.mrf.mxu0
      %1503 = vdwg.mxu0
      %v1504 = vpack.c.bf16 %v1436, %v1436
      %v1505 = vpack.c.bf16 %v1438, %v1438
      %v1506 = vpack.c.bf16 %v1441, %v1441
      %v1507 = vpack.c.bf16 %v1443, %v1443
      %v1508 = vpack.c.bf16 %v1446, %v1446
      %v1509 = vpack.c.bf16 %v1448, %v1448
      %v1510 = vpack.c.bf16 %v1451, %v1451
      %v1511 = vpack.c.bf16 %v1453, %v1453
      %v1512 = vpack.c.bf16 %v1456, %v1456
      %v1513 = vpack.c.bf16 %v1458, %v1458
      %v1514 = vpack.c.bf16 %v1461, %v1461
      %v1515 = vpack.c.bf16 %v1463, %v1463
      %v1516 = vpack.c.bf16 %v1466, %v1466
      %v1517 = vpack.c.bf16 %v1468, %v1468
      %v1518 = vpack.c.bf16 %v1471, %v1471
      %v1519 = vpack.c.bf16 %v1473, %v1473
      %v1520 = vpack.c.bf16 %v1476, %v1476
      %v1521 = vpack.c.bf16 %v1478, %v1478
      %v1522 = vpack.c.bf16 %v1481, %v1481
      %v1523 = vpack.c.bf16 %v1483, %v1483
      %v1524 = vpack.c.bf16 %v1486, %v1486
      %v1525 = vpack.c.bf16 %v1488, %v1488
      %v1526 = vpack.c.bf16 %v1491, %v1491
      %v1527 = vpack.c.bf16 %v1493, %v1493
      %v1528 = vpack.c.bf16 %v1496, %v1496
      %v1529 = vpack.c.bf16 %v1498, %v1498
      %v1530 = vpack.c.bf16 %v1501, %v1501
      %v1531 = vld [vmem:[%s1 + $0x138] sm:$0xf]
      %v1532 = vld [vmem:[%s1 + $0x13c] sm:$0xf]
      %v1533 = vld [vmem:[%s1 + $0x140] sm:$0xf]
      %v1534 = vld [vmem:[%s1 + $0x144] sm:$0xf]
      %v1535 = vld [vmem:[%s1 + $0x148] sm:$0xf]
      %v1536 = vld [vmem:[%s1 + $0x14c] sm:$0xf]
      %v1537 = vld [vmem:[%s1 + $0x150] sm:$0xf]
      %v1538 = vld [vmem:[%s1 + $0x154] sm:$0xf]
      %v1542 = vunpack.c.l.b16 %v1507
      %v1543 = vunpack.c.l.b16 %v1508
      %v1544 = vunpack.c.l.b16 %v1509
      %v1545 = vpack.c.b16 %v1543, %v1542
      %v1546 = vpack.c.b16 %v1544, %v1544
      %v1551 = vunpack.c.l.b16 %v1535
      %v1552 = vunpack.c.l.b16 %v1536
      %v1553 = vunpack.c.l.b16 %v1537
      %v1554 = vunpack.c.l.b16 %v1538
      %v1555 = vpack.c.b16 %v1552, %v1551
      %v1556 = vpack.c.b16 %v1554, %v1553
      %v1560 = vsel %vm909, %v1545, 0
      %v1563 = vsel %vm909, %v1546, 0
      %1565 = vmatpush.bf16.msra.mxu0 0
      %1566 = vmatpush.bf16.msra.mxu0 0
      %1567 = vmatpush.bf16.msra.mxu0 0
      %1568 = vmatpush.bf16.msra.mxu0 0
      %1569 = vmatpush.bf16.msra.mxu0 0
      %1570 = vmatpush.bf16.msra.mxu0 0
      %1571 = vmatpush.bf16.msra.mxu0 %v1556
      %1572 = vmatpush.bf16.msra.mxu0 %v1555
      %1573 = vmatmul.bf16.gmra.mxu0 %v1560
      %v1574 = vpop.f32.mrf.mxu0
      %v1575 = vadd.f32 0.0, %v1574
      %v1576 = vpop.f32.mrf.mxu0
      %v1577 = vadd.f32 0.0, %v1576
      %1578 = vmatmul.bf16.gmra.mxu0 %v1563
      %v1579 = vpop.f32.mrf.mxu0
      %v1580 = vadd.f32 0.0, %v1579
      %v1581 = vpop.f32.mrf.mxu0
      %1582 = vdwg.mxu0
      %v1583 = vld [vmem:[%s1 + $0x158] sm:$0xf]
      %v1584 = vld [vmem:[%s1 + $0x15c] sm:$0xf]
      %v1585 = vld [vmem:[%s1 + $0x160] sm:$0xf]
      %v1586 = vld [vmem:[%s1 + $0x164] sm:$0xf]
      %v1587 = vld [vmem:[%s1 + $0x168] sm:$0xf]
      %v1588 = vld [vmem:[%s1 + $0x16c] sm:$0xf]
      %v1589 = vld [vmem:[%s1 + $0x170] sm:$0xf]
      %v1590 = vld [vmem:[%s1 + $0x174] sm:$0xf]
      %v1594 = vunpack.c.l.b16 %v1513
      %v1595 = vunpack.c.l.b16 %v1514
      %v1596 = vunpack.c.l.b16 %v1515
      %v1597 = vpack.c.b16 %v1595, %v1594
      %v1598 = vpack.c.b16 %v1596, %v1596
      %v1603 = vunpack.c.l.b16 %v1587
      %v1604 = vunpack.c.l.b16 %v1588
      %v1605 = vunpack.c.l.b16 %v1589
      %v1606 = vunpack.c.l.b16 %v1590
      %v1607 = vpack.c.b16 %v1604, %v1603
      %v1608 = vpack.c.b16 %v1606, %v1605
      %v1612 = vsel %vm909, %v1597, 0
      %v1615 = vsel %vm909, %v1598, 0
      %1617 = vmatpush.bf16.msra.mxu0 0
      %1618 = vmatpush.bf16.msra.mxu0 0
      %1619 = vmatpush.bf16.msra.mxu0 0
      %1620 = vmatpush.bf16.msra.mxu0 0
      %1621 = vmatpush.bf16.msra.mxu0 0
      %1622 = vmatpush.bf16.msra.mxu0 0
      %1623 = vmatpush.bf16.msra.mxu0 %v1608
      %1624 = vmatpush.bf16.msra.mxu0 %v1607
      %1625 = vmatmul.bf16.gmra.mxu0 %v1612
      %v1626 = vpop.f32.mrf.mxu0
      %v1627 = vadd.f32 0.0, %v1626
      %v1628 = vpop.f32.mrf.mxu0
      %v1629 = vadd.f32 0.0, %v1628
      %1630 = vmatmul.bf16.gmra.mxu0 %v1615
      %v1631 = vpop.f32.mrf.mxu0
      %v1632 = vadd.f32 0.0, %v1631
      %v1633 = vpop.f32.mrf.mxu0
      %1634 = vdwg.mxu0
      %v1635 = vld [vmem:[%s1 + $0x178] sm:$0xf]
      %v1636 = vld [vmem:[%s1 + $0x17c] sm:$0xf]
      %v1637 = vld [vmem:[%s1 + $0x180] sm:$0xf]
      %v1638 = vld [vmem:[%s1 + $0x184] sm:$0xf]
      %v1639 = vld [vmem:[%s1 + $0x188] sm:$0xf]
      %v1640 = vld [vmem:[%s1 + $0x18c] sm:$0xf]
      %v1641 = vld [vmem:[%s1 + $0x190] sm:$0xf]
      %v1642 = vld [vmem:[%s1 + $0x194] sm:$0xf]
      %v1646 = vunpack.c.l.b16 %v1519
      %v1647 = vunpack.c.l.b16 %v1520
      %v1648 = vunpack.c.l.b16 %v1521
      %v1649 = vpack.c.b16 %v1647, %v1646
      %v1650 = vpack.c.b16 %v1648, %v1648
      %v1655 = vunpack.c.l.b16 %v1639
      %v1656 = vunpack.c.l.b16 %v1640
      %v1657 = vunpack.c.l.b16 %v1641
      %v1658 = vunpack.c.l.b16 %v1642
      %v1659 = vpack.c.b16 %v1656, %v1655
      %v1660 = vpack.c.b16 %v1658, %v1657
      %v1664 = vsel %vm909, %v1649, 0
      %v1667 = vsel %vm909, %v1650, 0
      %1669 = vmatpush.bf16.msra.mxu0 0
      %1670 = vmatpush.bf16.msra.mxu0 0
      %1671 = vmatpush.bf16.msra.mxu0 0
      %1672 = vmatpush.bf16.msra.mxu0 0
      %1673 = vmatpush.bf16.msra.mxu0 0
      %1674 = vmatpush.bf16.msra.mxu0 0
      %1675 = vmatpush.bf16.msra.mxu0 %v1660
      %1676 = vmatpush.bf16.msra.mxu0 %v1659
      %1677 = vmatmul.bf16.gmra.mxu0 %v1664
      %v1678 = vpop.f32.mrf.mxu0
      %v1679 = vadd.f32 0.0, %v1678
      %v1680 = vpop.f32.mrf.mxu0
      %v1681 = vadd.f32 0.0, %v1680
      %1682 = vmatmul.bf16.gmra.mxu0 %v1667
      %v1683 = vpop.f32.mrf.mxu0
      %v1684 = vadd.f32 0.0, %v1683
      %v1685 = vpop.f32.mrf.mxu0
      %1686 = vdwg.mxu0
      %v1687 = vld [vmem:[%s1 + $0x198] sm:$0xf]
      %v1688 = vld [vmem:[%s1 + $0x19c] sm:$0xf]
      %v1689 = vld [vmem:[%s1 + $0x1a0] sm:$0xf]
      %v1690 = vld [vmem:[%s1 + $0x1a4] sm:$0xf]
      %v1691 = vld [vmem:[%s1 + $0x1a8] sm:$0xf]
      %v1692 = vld [vmem:[%s1 + $0x1ac] sm:$0xf]
      %v1693 = vld [vmem:[%s1 + $0x1b0] sm:$0xf]
      %v1694 = vld [vmem:[%s1 + $0x1b4] sm:$0xf]
      %v1698 = vunpack.c.l.b16 %v1525
      %v1699 = vunpack.c.l.b16 %v1526
      %v1700 = vunpack.c.l.b16 %v1527
      %v1701 = vpack.c.b16 %v1699, %v1698
      %v1702 = vpack.c.b16 %v1700, %v1700
      %v1707 = vunpack.c.l.b16 %v1691
      %v1708 = vunpack.c.l.b16 %v1692
      %v1709 = vunpack.c.l.b16 %v1693
      %v1710 = vunpack.c.l.b16 %v1694
      %v1711 = vpack.c.b16 %v1708, %v1707
      %v1712 = vpack.c.b16 %v1710, %v1709
      %v1716 = vsel %vm909, %v1701, 0
      %v1719 = vsel %vm909, %v1702, 0
      %1721 = vmatpush.bf16.msra.mxu0 0
      %1722 = vmatpush.bf16.msra.mxu0 0
      %1723 = vmatpush.bf16.msra.mxu0 0
      %1724 = vmatpush.bf16.msra.mxu0 0
      %1725 = vmatpush.bf16.msra.mxu0 0
      %1726 = vmatpush.bf16.msra.mxu0 0
      %1727 = vmatpush.bf16.msra.mxu0 %v1712
      %1728 = vmatpush.bf16.msra.mxu0 %v1711
      %1729 = vmatmul.bf16.gmra.mxu0 %v1716
      %v1730 = vpop.f32.mrf.mxu0
      %v1731 = vadd.f32 0.0, %v1730
      %v1732 = vpop.f32.mrf.mxu0
      %v1733 = vadd.f32 0.0, %v1732
      %1734 = vmatmul.bf16.gmra.mxu0 %v1719
      %v1735 = vpop.f32.mrf.mxu0
      %v1736 = vadd.f32 0.0, %v1735
      %v1737 = vpop.f32.mrf.mxu0
      %1738 = vdwg.mxu0
      %v1739 = vld [vmem:[%s1 + $0x1b8] sm:$0xf]
      %v1740 = vld [vmem:[%s1 + $0x1bc] sm:$0xf]
      %v1741 = vld [vmem:[%s1 + $0x1c0] sm:$0xf]
      %v1742 = vld [vmem:[%s1 + $0x1c4] sm:$0xf]
      %v1746 = vunpack.c.l.b16 %v1528
      %v1747 = vunpack.c.l.b16 %v1529
      %v1748 = vunpack.c.l.b16 %v1530
      %v1749 = vpack.c.b16 %v1747, %v1746
      %v1750 = vpack.c.b16 %v1748, %v1748
      %v1755 = vunpack.c.l.b16 %v1739
      %v1756 = vunpack.c.l.b16 %v1740
      %v1757 = vunpack.c.l.b16 %v1741
      %v1758 = vunpack.c.l.b16 %v1742
      %v1759 = vpack.c.b16 %v1756, %v1755
      %v1760 = vpack.c.b16 %v1758, %v1757
      %v1764 = vsel %vm909, %v1749, 0
      %v1767 = vsel %vm909, %v1750, 0
      %1769 = vmatpush.bf16.msra.mxu0 0
      %1770 = vmatpush.bf16.msra.mxu0 0
      %1771 = vmatpush.bf16.msra.mxu0 0
      %1772 = vmatpush.bf16.msra.mxu0 0
      %1773 = vmatpush.bf16.msra.mxu0 0
      %1774 = vmatpush.bf16.msra.mxu0 0
      %1775 = vmatpush.bf16.msra.mxu0 %v1760
      %1776 = vmatpush.bf16.msra.mxu0 %v1759
      %1777 = vmatmul.bf16.gmra.mxu0 %v1764
      %v1778 = vpop.f32.mrf.mxu0
      %v1779 = vadd.f32 0.0, %v1778
      %v1780 = vpop.f32.mrf.mxu0
      %v1781 = vadd.f32 0.0, %v1780
      %1782 = vmatmul.bf16.gmra.mxu0 %v1767
      %v1783 = vpop.f32.mrf.mxu0
      %v1784 = vadd.f32 0.0, %v1783
      %v1785 = vpop.f32.mrf.mxu0
      %1786 = vdwg.mxu0
      %v1790 = vunpack.c.l.b16 %v1504
      %v1791 = vunpack.c.l.b16 %v1505
      %v1792 = vunpack.c.l.b16 %v1506
      %v1793 = vpack.c.b16 %v1791, %v1790
      %v1794 = vpack.c.b16 %v1792, %v1792
      %v1799 = vunpack.c.l.b16 %v1531
      %v1800 = vunpack.c.l.b16 %v1532
      %v1801 = vunpack.c.l.b16 %v1533
      %v1802 = vunpack.c.l.b16 %v1534
      %v1803 = vpack.c.b16 %v1800, %v1799
      %v1804 = vpack.c.b16 %v1802, %v1801
      %v1808 = vsel %vm909, %v1793, 0
      %v1811 = vsel %vm909, %v1794, 0
      %1813 = vmatpush.bf16.msra.mxu0 0
      %1814 = vmatpush.bf16.msra.mxu0 0
      %1815 = vmatpush.bf16.msra.mxu0 0
      %1816 = vmatpush.bf16.msra.mxu0 0
      %1817 = vmatpush.bf16.msra.mxu0 0
      %1818 = vmatpush.bf16.msra.mxu0 0
      %1819 = vmatpush.bf16.msra.mxu0 %v1804
      %1820 = vmatpush.bf16.msra.mxu0 %v1803
      %1821 = vmatmul.bf16.gmra.mxu0 %v1808
      %v1822 = vpop.f32.mrf.mxu0
      %v1823 = vadd.f32 %v1575, %v1822
      %v1824 = vpop.f32.mrf.mxu0
      %v1825 = vadd.f32 %v1577, %v1824
      %1826 = vmatmul.bf16.gmra.mxu0 %v1811
      %v1827 = vpop.f32.mrf.mxu0
      %v1828 = vadd.f32 %v1580, %v1827
      %v1829 = vpop.f32.mrf.mxu0
      %1830 = vdwg.mxu0
      %v1834 = vunpack.c.l.b16 %v1510
      %v1835 = vunpack.c.l.b16 %v1511
      %v1836 = vunpack.c.l.b16 %v1512
      %v1837 = vpack.c.b16 %v1835, %v1834
      %v1838 = vpack.c.b16 %v1836, %v1836
      %v1843 = vunpack.c.l.b16 %v1583
      %v1844 = vunpack.c.l.b16 %v1584
      %v1845 = vunpack.c.l.b16 %v1585
      %v1846 = vunpack.c.l.b16 %v1586
      %v1847 = vpack.c.b16 %v1844, %v1843
      %v1848 = vpack.c.b16 %v1846, %v1845
      %v1852 = vsel %vm909, %v1837, 0
      %v1855 = vsel %vm909, %v1838, 0
      %1857 = vmatpush.bf16.msra.mxu0 0
      %1858 = vmatpush.bf16.msra.mxu0 0
      %1859 = vmatpush.bf16.msra.mxu0 0
      %1860 = vmatpush.bf16.msra.mxu0 0
      %1861 = vmatpush.bf16.msra.mxu0 0
      %1862 = vmatpush.bf16.msra.mxu0 0
      %1863 = vmatpush.bf16.msra.mxu0 %v1848
      %1864 = vmatpush.bf16.msra.mxu0 %v1847
      %1865 = vmatmul.bf16.gmra.mxu0 %v1852
      %v1866 = vpop.f32.mrf.mxu0
      %v1867 = vadd.f32 %v1627, %v1866
      %v1868 = vpop.f32.mrf.mxu0
      %v1869 = vadd.f32 %v1629, %v1868
      %1870 = vmatmul.bf16.gmra.mxu0 %v1855
      %v1871 = vpop.f32.mrf.mxu0
      %v1872 = vadd.f32 %v1632, %v1871
      %v1873 = vpop.f32.mrf.mxu0
      %1874 = vdwg.mxu0
      %v1878 = vunpack.c.l.b16 %v1516
      %v1879 = vunpack.c.l.b16 %v1517
      %v1880 = vunpack.c.l.b16 %v1518
      %v1881 = vpack.c.b16 %v1879, %v1878
      %v1882 = vpack.c.b16 %v1880, %v1880
      %v1887 = vunpack.c.l.b16 %v1635
      %v1888 = vunpack.c.l.b16 %v1636
      %v1889 = vunpack.c.l.b16 %v1637
      %v1890 = vunpack.c.l.b16 %v1638
      %v1891 = vpack.c.b16 %v1888, %v1887
      %v1892 = vpack.c.b16 %v1890, %v1889
      %v1896 = vsel %vm909, %v1881, 0
      %v1899 = vsel %vm909, %v1882, 0
      %1901 = vmatpush.bf16.msra.mxu0 0
      %1902 = vmatpush.bf16.msra.mxu0 0
      %1903 = vmatpush.bf16.msra.mxu0 0
      %1904 = vmatpush.bf16.msra.mxu0 0
      %1905 = vmatpush.bf16.msra.mxu0 0
      %1906 = vmatpush.bf16.msra.mxu0 0
      %1907 = vmatpush.bf16.msra.mxu0 %v1892
      %1908 = vmatpush.bf16.msra.mxu0 %v1891
      %1909 = vmatmul.bf16.gmra.mxu0 %v1896
      %v1910 = vpop.f32.mrf.mxu0
      %v1911 = vadd.f32 %v1679, %v1910
      %v1912 = vpop.f32.mrf.mxu0
      %v1913 = vadd.f32 %v1681, %v1912
      %1914 = vmatmul.bf16.gmra.mxu0 %v1899
      %v1915 = vpop.f32.mrf.mxu0
      %v1916 = vadd.f32 %v1684, %v1915
      %v1917 = vpop.f32.mrf.mxu0
      %1918 = vdwg.mxu0
      %v1922 = vunpack.c.l.b16 %v1522
      %v1923 = vunpack.c.l.b16 %v1523
      %v1924 = vunpack.c.l.b16 %v1524
      %v1925 = vpack.c.b16 %v1923, %v1922
      %v1926 = vpack.c.b16 %v1924, %v1924
      %v1931 = vunpack.c.l.b16 %v1687
      %v1932 = vunpack.c.l.b16 %v1688
      %v1933 = vunpack.c.l.b16 %v1689
      %v1934 = vunpack.c.l.b16 %v1690
      %v1935 = vpack.c.b16 %v1932, %v1931
      %v1936 = vpack.c.b16 %v1934, %v1933
      %v1940 = vsel %vm909, %v1925, 0
      %v1943 = vsel %vm909, %v1926, 0
      %1945 = vmatpush.bf16.msra.mxu0 0
      %1946 = vmatpush.bf16.msra.mxu0 0
      %1947 = vmatpush.bf16.msra.mxu0 0
      %1948 = vmatpush.bf16.msra.mxu0 0
      %1949 = vmatpush.bf16.msra.mxu0 0
      %1950 = vmatpush.bf16.msra.mxu0 0
      %1951 = vmatpush.bf16.msra.mxu0 %v1936
      %1952 = vmatpush.bf16.msra.mxu0 %v1935
      %1953 = vmatmul.bf16.gmra.mxu0 %v1940
      %v1954 = vpop.f32.mrf.mxu0
      %v1955 = vadd.f32 %v1731, %v1954
      %v1956 = vpop.f32.mrf.mxu0
      %v1957 = vadd.f32 %v1733, %v1956
      %1958 = vmatmul.bf16.gmra.mxu0 %v1943
      %v1959 = vpop.f32.mrf.mxu0
      %v1960 = vadd.f32 %v1736, %v1959
      %v1961 = vpop.f32.mrf.mxu0
      %1962 = vdwg.mxu0
      %v1963 = vadd.f32 %v1823, %v1867
      %v1964 = vadd.f32 %v1825, %v1869
      %v1965 = vadd.f32 %v1828, %v1872
      %v1966 = vadd.f32 %v1911, %v1955
      %v1967 = vadd.f32 %v1913, %v1957
      %v1968 = vadd.f32 %v1916, %v1960
      %v1969 = vadd.f32 %v1963, %v1966
      %v1970 = vadd.f32 %v1964, %v1967
      %v1971 = vadd.f32 %v1965, %v1968
      %v1972 = vadd.f32 %v1969, %v1779
      %v1973 = vadd.f32 %v1970, %v1781
      %v1974 = vadd.f32 %v1971, %v1784
      %v1975 = vld [vmem:[%s1 + $0x690] sm:$0xf]
      %v1976 = vld [vmem:[%s1 + $0x694] sm:$0xf]
      %v1977 = vld [vmem:[%s1 + $0x698] sm:$0xf]
      %v1978 = vld [vmem:[%s1 + $0x69c] sm:$0xf]
      %v1979 = vld [vmem:[%s1 + $0x6a0] sm:$0xf]
      %v1980 = vld [vmem:[%s1 + $0x6a4] sm:$0xf]
      %v1981 = vld [vmem:[%s1 + $0x6a8] sm:$0xf]
      %v1982 = vld [vmem:[%s1 + $0x6ac] sm:$0xf]
      %v1983 = vld [vmem:[%s1 + $0x6b0] sm:$0xf]
      %v1984 = vld [vmem:[%s1 + $0x6b4] sm:$0xf]
      %v1985 = vld [vmem:[%s1 + $0x6b8] sm:$0xf]
      %v1986 = vld [vmem:[%s1 + $0x6bc] sm:$0xf]
      %v1987 = vld [vmem:[%s1 + $0x6c0] sm:$0xf]
      %v1988 = vld [vmem:[%s1 + $0x6c4] sm:$0xf]
      %v1989 = vld [vmem:[%s1 + $0x6c8] sm:$0xf]
      %v1990 = vld [vmem:[%s1 + $0x6cc] sm:$0xf]
      %v1991 = vld [vmem:[%s1 + $0x6d0] sm:$0xf]
      %v1992 = vld [vmem:[%s1 + $0x6d4] sm:$0xf]
      %v1993 = vld [vmem:[%s1 + $0x6d8] sm:$0xf]
      %v1994 = vld [vmem:[%s1 + $0x6dc] sm:$0xf]
      %v1995 = vld [vmem:[%s1 + $0x6e0] sm:$0xf]
      %v1996 = vld [vmem:[%s1 + $0x6e4] sm:$0xf]
      %v1997 = vld [vmem:[%s1 + $0x6e8] sm:$0xf]
      %v1998 = vld [vmem:[%s1 + $0x6ec] sm:$0xf]
      %v1999 = vld [vmem:[%s1 + $0x6f0] sm:$0xf]
      %v2000 = vld [vmem:[%s1 + $0x6f4] sm:$0xf]
      %v2001 = vld [vmem:[%s1 + $0x6f8] sm:$0xf]
      %v2029 = vunpack.c.l.b16 %v1975
      %v2030 = vunpack.c.l.b16 %v1976
      %v2031 = vunpack.c.l.b16 %v1977
      %v2032 = vunpack.c.l.b16 %v1978
      %v2033 = vunpack.c.l.b16 %v1979
      %v2034 = vunpack.c.l.b16 %v1980
      %v2035 = vunpack.c.l.b16 %v1981
      %v2036 = vunpack.c.l.b16 %v1982
      %v2037 = vunpack.c.l.b16 %v1983
      %v2038 = vunpack.c.l.b16 %v1984
      %v2039 = vunpack.c.l.b16 %v1985
      %v2040 = vunpack.c.l.b16 %v1986
      %v2041 = vunpack.c.l.b16 %v1987
      %v2042 = vunpack.c.l.b16 %v1988
      %v2043 = vunpack.c.l.b16 %v1989
      %v2044 = vunpack.c.l.b16 %v1990
      %v2045 = vunpack.c.l.b16 %v1991
      %v2046 = vunpack.c.l.b16 %v1992
      %v2047 = vunpack.c.l.b16 %v1993
      %v2048 = vunpack.c.l.b16 %v1994
      %v2049 = vunpack.c.l.b16 %v1995
      %v2050 = vunpack.c.l.b16 %v1996
      %v2051 = vunpack.c.l.b16 %v1997
      %v2052 = vunpack.c.l.b16 %v1998
      %v2053 = vunpack.c.l.b16 %v1999
      %v2054 = vunpack.c.l.b16 %v2000
      %v2055 = vunpack.c.l.b16 %v2001
      %v2056 = vpack.c.b16 %v2030, %v2029
      %v2057 = vpack.c.b16 %v2032, %v2031
      %v2058 = vpack.c.b16 %v2034, %v2033
      %v2059 = vpack.c.b16 %v2036, %v2035
      %v2060 = vpack.c.b16 %v2038, %v2037
      %v2061 = vpack.c.b16 %v2040, %v2039
      %v2062 = vpack.c.b16 %v2042, %v2041
      %v2063 = vpack.c.b16 %v2044, %v2043
      %v2064 = vpack.c.b16 %v2046, %v2045
      %v2065 = vpack.c.b16 %v2048, %v2047
      %v2066 = vpack.c.b16 %v2050, %v2049
      %v2067 = vpack.c.b16 %v2052, %v2051
      %v2068 = vpack.c.b16 %v2054, %v2053
      %v2069 = vpack.c.b16 %v2055, %v2055
      %v2071 = vsel %vm1264, %v2056, 0
      %v2074 = vsel %vm1264, %v2057, 0
      %v2077 = vsel %vm1264, %v2058, 0
      %v2080 = vsel %vm1264, %v2059, 0
      %v2083 = vsel %vm1264, %v2060, 0
      %v2086 = vsel %vm1264, %v2061, 0
      %v2089 = vsel %vm1264, %v2062, 0
      %v2092 = vsel %vm1264, %v2063, 0
      %v2095 = vsel %vm1264, %v2064, 0
      %v2098 = vsel %vm1264, %v2065, 0
      %v2101 = vsel %vm1264, %v2066, 0
      %v2104 = vsel %vm1264, %v2067, 0
      %v2107 = vsel %vm1264, %v2068, 0
      %v2110 = vsel %vm1264, %v2069, 0
      %2112 = vmatpush.bf16.msra.mxu0 0
      %2113 = vmatpush.bf16.msra.mxu0 0
      %2114 = vmatpush.bf16.msra.mxu0 0
      %2115 = vmatpush.bf16.msra.mxu0 0
      %2116 = vmatpush.bf16.msra.mxu0 0
      %2117 = vmatpush.bf16.msra.mxu0 0
      %2118 = vmatpush.bf16.msra.mxu0 0
      %2119 = vmatpush.bf16.msra.mxu0 %v1270
      %2120 = vmatmul.bf16.gmra.mxu0 %v2071
      %v2121 = vpop.f32.mrf.mxu0
      %v2122 = vadd.f32 0.0, %v2121
      %v2123 = vpop.f32.mrf.mxu0
      %v2124 = vadd.f32 0.0, %v2123
      %2125 = vmatmul.bf16.gmra.mxu0 %v2074
      %v2126 = vpop.f32.mrf.mxu0
      %v2127 = vadd.f32 0.0, %v2126
      %v2128 = vpop.f32.mrf.mxu0
      %v2129 = vadd.f32 0.0, %v2128
      %2130 = vmatmul.bf16.gmra.mxu0 %v2077
      %v2131 = vpop.f32.mrf.mxu0
      %v2132 = vadd.f32 0.0, %v2131
      %v2133 = vpop.f32.mrf.mxu0
      %v2134 = vadd.f32 0.0, %v2133
      %2135 = vmatmul.bf16.gmra.mxu0 %v2080
      %v2136 = vpop.f32.mrf.mxu0
      %v2137 = vadd.f32 0.0, %v2136
      %v2138 = vpop.f32.mrf.mxu0
      %v2139 = vadd.f32 0.0, %v2138
      %2140 = vmatmul.bf16.gmra.mxu0 %v2083
      %v2141 = vpop.f32.mrf.mxu0
      %v2142 = vadd.f32 0.0, %v2141
      %v2143 = vpop.f32.mrf.mxu0
      %v2144 = vadd.f32 0.0, %v2143
      %2145 = vmatmul.bf16.gmra.mxu0 %v2086
      %v2146 = vpop.f32.mrf.mxu0
      %v2147 = vadd.f32 0.0, %v2146
      %v2148 = vpop.f32.mrf.mxu0
      %v2149 = vadd.f32 0.0, %v2148
      %2150 = vmatmul.bf16.gmra.mxu0 %v2089
      %v2151 = vpop.f32.mrf.mxu0
      %v2152 = vadd.f32 0.0, %v2151
      %v2153 = vpop.f32.mrf.mxu0
      %v2154 = vadd.f32 0.0, %v2153
      %2155 = vmatmul.bf16.gmra.mxu0 %v2092
      %v2156 = vpop.f32.mrf.mxu0
      %v2157 = vadd.f32 0.0, %v2156
      %v2158 = vpop.f32.mrf.mxu0
      %v2159 = vadd.f32 0.0, %v2158
      %2160 = vmatmul.bf16.gmra.mxu0 %v2095
      %v2161 = vpop.f32.mrf.mxu0
      %v2162 = vadd.f32 0.0, %v2161
      %v2163 = vpop.f32.mrf.mxu0
      %v2164 = vadd.f32 0.0, %v2163
      %2165 = vmatmul.bf16.gmra.mxu0 %v2098
      %v2166 = vpop.f32.mrf.mxu0
      %v2167 = vadd.f32 0.0, %v2166
      %v2168 = vpop.f32.mrf.mxu0
      %v2169 = vadd.f32 0.0, %v2168
      %2170 = vmatmul.bf16.gmra.mxu0 %v2101
      %v2171 = vpop.f32.mrf.mxu0
      %v2172 = vadd.f32 0.0, %v2171
      %v2173 = vpop.f32.mrf.mxu0
      %v2174 = vadd.f32 0.0, %v2173
      %2175 = vmatmul.bf16.gmra.mxu0 %v2104
      %v2176 = vpop.f32.mrf.mxu0
      %v2177 = vadd.f32 0.0, %v2176
      %v2178 = vpop.f32.mrf.mxu0
      %v2179 = vadd.f32 0.0, %v2178
      %2180 = vmatmul.bf16.gmra.mxu0 %v2107
      %v2181 = vpop.f32.mrf.mxu0
      %v2182 = vadd.f32 0.0, %v2181
      %v2183 = vpop.f32.mrf.mxu0
      %v2184 = vadd.f32 0.0, %v2183
      %2185 = vmatmul.bf16.gmra.mxu0 %v2110
      %v2186 = vpop.f32.mrf.mxu0
      %v2187 = vadd.f32 0.0, %v2186
      %v2188 = vpop.f32.mrf.mxu0
      %2189 = vdwg.mxu0
      %v2190 = vpack.c.bf16 %v2122, %v2122
      %v2191 = vpack.c.bf16 %v2124, %v2124
      %v2192 = vpack.c.bf16 %v2127, %v2127
      %v2193 = vpack.c.bf16 %v2129, %v2129
      %v2194 = vpack.c.bf16 %v2132, %v2132
      %v2195 = vpack.c.bf16 %v2134, %v2134
      %v2196 = vpack.c.bf16 %v2137, %v2137
      %v2197 = vpack.c.bf16 %v2139, %v2139
      %v2198 = vpack.c.bf16 %v2142, %v2142
      %v2199 = vpack.c.bf16 %v2144, %v2144
      %v2200 = vpack.c.bf16 %v2147, %v2147
      %v2201 = vpack.c.bf16 %v2149, %v2149
      %v2202 = vpack.c.bf16 %v2152, %v2152
      %v2203 = vpack.c.bf16 %v2154, %v2154
      %v2204 = vpack.c.bf16 %v2157, %v2157
      %v2205 = vpack.c.bf16 %v2159, %v2159
      %v2206 = vpack.c.bf16 %v2162, %v2162
      %v2207 = vpack.c.bf16 %v2164, %v2164
      %v2208 = vpack.c.bf16 %v2167, %v2167
      %v2209 = vpack.c.bf16 %v2169, %v2169
      %v2210 = vpack.c.bf16 %v2172, %v2172
      %v2211 = vpack.c.bf16 %v2174, %v2174
      %v2212 = vpack.c.bf16 %v2177, %v2177
      %v2213 = vpack.c.bf16 %v2179, %v2179
      %v2214 = vpack.c.bf16 %v2182, %v2182
      %v2215 = vpack.c.bf16 %v2184, %v2184
      %v2216 = vpack.c.bf16 %v2187, %v2187
      %v2217 = vld [vmem:[%s1 + $0x1c8] sm:$0xf]
      %v2218 = vld [vmem:[%s1 + $0x1cc] sm:$0xf]
      %v2219 = vld [vmem:[%s1 + $0x1d0] sm:$0xf]
      %v2220 = vld [vmem:[%s1 + $0x1d4] sm:$0xf]
      %v2221 = vld [vmem:[%s1 + $0x1d8] sm:$0xf]
      %v2222 = vld [vmem:[%s1 + $0x1dc] sm:$0xf]
      %v2223 = vld [vmem:[%s1 + $0x1e0] sm:$0xf]
      %v2224 = vld [vmem:[%s1 + $0x1e4] sm:$0xf]
      %v2228 = vunpack.c.l.b16 %v2193
      %v2229 = vunpack.c.l.b16 %v2194
      %v2230 = vunpack.c.l.b16 %v2195
      %v2231 = vpack.c.b16 %v2229, %v2228
      %v2232 = vpack.c.b16 %v2230, %v2230
      %v2237 = vunpack.c.l.b16 %v2221
      %v2238 = vunpack.c.l.b16 %v2222
      %v2239 = vunpack.c.l.b16 %v2223
      %v2240 = vunpack.c.l.b16 %v2224
      %v2241 = vpack.c.b16 %v2238, %v2237
      %v2242 = vpack.c.b16 %v2240, %v2239
      %v2246 = vsel %vm909, %v2231, 0
      %v2249 = vsel %vm909, %v2232, 0
      %2251 = vmatpush.bf16.msra.mxu0 0
      %2252 = vmatpush.bf16.msra.mxu0 0
      %2253 = vmatpush.bf16.msra.mxu0 0
      %2254 = vmatpush.bf16.msra.mxu0 0
      %2255 = vmatpush.bf16.msra.mxu0 0
      %2256 = vmatpush.bf16.msra.mxu0 0
      %2257 = vmatpush.bf16.msra.mxu0 %v2242
      %2258 = vmatpush.bf16.msra.mxu0 %v2241
      %2259 = vmatmul.bf16.gmra.mxu0 %v2246
      %v2260 = vpop.f32.mrf.mxu0
      %v2261 = vadd.f32 0.0, %v2260
      %v2262 = vpop.f32.mrf.mxu0
      %v2263 = vadd.f32 0.0, %v2262
      %2264 = vmatmul.bf16.gmra.mxu0 %v2249
      %v2265 = vpop.f32.mrf.mxu0
      %v2266 = vadd.f32 0.0, %v2265
      %v2267 = vpop.f32.mrf.mxu0
      %2268 = vdwg.mxu0
      %v2269 = vld [vmem:[%s1 + $0x1e8] sm:$0xf]
      %v2270 = vld [vmem:[%s1 + $0x1ec] sm:$0xf]
      %v2271 = vld [vmem:[%s1 + $0x1f0] sm:$0xf]
      %v2272 = vld [vmem:[%s1 + $0x1f4] sm:$0xf]
      %v2273 = vld [vmem:[%s1 + $0x1f8] sm:$0xf]
      %v2274 = vld [vmem:[%s1 + $0x1fc] sm:$0xf]
      %v2275 = vld [vmem:[%s1 + $0x200] sm:$0xf]
      %v2276 = vld [vmem:[%s1 + $0x204] sm:$0xf]
      %v2280 = vunpack.c.l.b16 %v2199
      %v2281 = vunpack.c.l.b16 %v2200
      %v2282 = vunpack.c.l.b16 %v2201
      %v2283 = vpack.c.b16 %v2281, %v2280
      %v2284 = vpack.c.b16 %v2282, %v2282
      %v2289 = vunpack.c.l.b16 %v2273
      %v2290 = vunpack.c.l.b16 %v2274
      %v2291 = vunpack.c.l.b16 %v2275
      %v2292 = vunpack.c.l.b16 %v2276
      %v2293 = vpack.c.b16 %v2290, %v2289
      %v2294 = vpack.c.b16 %v2292, %v2291
      %v2298 = vsel %vm909, %v2283, 0
      %v2301 = vsel %vm909, %v2284, 0
      %2303 = vmatpush.bf16.msra.mxu0 0
      %2304 = vmatpush.bf16.msra.mxu0 0
      %2305 = vmatpush.bf16.msra.mxu0 0
      %2306 = vmatpush.bf16.msra.mxu0 0
      %2307 = vmatpush.bf16.msra.mxu0 0
      %2308 = vmatpush.bf16.msra.mxu0 0
      %2309 = vmatpush.bf16.msra.mxu0 %v2294
      %2310 = vmatpush.bf16.msra.mxu0 %v2293
      %2311 = vmatmul.bf16.gmra.mxu0 %v2298
      %v2312 = vpop.f32.mrf.mxu0
      %v2313 = vadd.f32 0.0, %v2312
      %v2314 = vpop.f32.mrf.mxu0
      %v2315 = vadd.f32 0.0, %v2314
      %2316 = vmatmul.bf16.gmra.mxu0 %v2301
      %v2317 = vpop.f32.mrf.mxu0
      %v2318 = vadd.f32 0.0, %v2317
      %v2319 = vpop.f32.mrf.mxu0
      %2320 = vdwg.mxu0
      %v2321 = vld [vmem:[%s1 + $0x208] sm:$0xf]
      %v2322 = vld [vmem:[%s1 + $0x20c] sm:$0xf]
      %v2323 = vld [vmem:[%s1 + $0x210] sm:$0xf]
      %v2324 = vld [vmem:[%s1 + $0x214] sm:$0xf]
      %v2325 = vld [vmem:[%s1 + $0x218] sm:$0xf]
      %v2326 = vld [vmem:[%s1 + $0x21c] sm:$0xf]
      %v2327 = vld [vmem:[%s1 + $0x220] sm:$0xf]
      %v2328 = vld [vmem:[%s1 + $0x224] sm:$0xf]
      %v2332 = vunpack.c.l.b16 %v2205
      %v2333 = vunpack.c.l.b16 %v2206
      %v2334 = vunpack.c.l.b16 %v2207
      %v2335 = vpack.c.b16 %v2333, %v2332
      %v2336 = vpack.c.b16 %v2334, %v2334
      %v2341 = vunpack.c.l.b16 %v2325
      %v2342 = vunpack.c.l.b16 %v2326
      %v2343 = vunpack.c.l.b16 %v2327
      %v2344 = vunpack.c.l.b16 %v2328
      %v2345 = vpack.c.b16 %v2342, %v2341
      %v2346 = vpack.c.b16 %v2344, %v2343
      %v2350 = vsel %vm909, %v2335, 0
      %v2353 = vsel %vm909, %v2336, 0
      %2355 = vmatpush.bf16.msra.mxu0 0
      %2356 = vmatpush.bf16.msra.mxu0 0
      %2357 = vmatpush.bf16.msra.mxu0 0
      %2358 = vmatpush.bf16.msra.mxu0 0
      %2359 = vmatpush.bf16.msra.mxu0 0
      %2360 = vmatpush.bf16.msra.mxu0 0
      %2361 = vmatpush.bf16.msra.mxu0 %v2346
      %2362 = vmatpush.bf16.msra.mxu0 %v2345
      %2363 = vmatmul.bf16.gmra.mxu0 %v2350
      %v2364 = vpop.f32.mrf.mxu0
      %v2365 = vadd.f32 0.0, %v2364
      %v2366 = vpop.f32.mrf.mxu0
      %v2367 = vadd.f32 0.0, %v2366
      %2368 = vmatmul.bf16.gmra.mxu0 %v2353
      %v2369 = vpop.f32.mrf.mxu0
      %v2370 = vadd.f32 0.0, %v2369
      %v2371 = vpop.f32.mrf.mxu0
      %2372 = vdwg.mxu0
      %v2373 = vld [vmem:[%s1 + $0x228] sm:$0xf]
      %v2374 = vld [vmem:[%s1 + $0x22c] sm:$0xf]
      %v2375 = vld [vmem:[%s1 + $0x230] sm:$0xf]
      %v2376 = vld [vmem:[%s1 + $0x234] sm:$0xf]
      %v2377 = vld [vmem:[%s1 + $0x238] sm:$0xf]
      %v2378 = vld [vmem:[%s1 + $0x23c] sm:$0xf]
      %v2379 = vld [vmem:[%s1 + $0x240] sm:$0xf]
      %v2380 = vld [vmem:[%s1 + $0x244] sm:$0xf]
      %v2384 = vunpack.c.l.b16 %v2211
      %v2385 = vunpack.c.l.b16 %v2212
      %v2386 = vunpack.c.l.b16 %v2213
      %v2387 = vpack.c.b16 %v2385, %v2384
      %v2388 = vpack.c.b16 %v2386, %v2386
      %v2393 = vunpack.c.l.b16 %v2377
      %v2394 = vunpack.c.l.b16 %v2378
      %v2395 = vunpack.c.l.b16 %v2379
      %v2396 = vunpack.c.l.b16 %v2380
      %v2397 = vpack.c.b16 %v2394, %v2393
      %v2398 = vpack.c.b16 %v2396, %v2395
      %v2402 = vsel %vm909, %v2387, 0
      %v2405 = vsel %vm909, %v2388, 0
      %2407 = vmatpush.bf16.msra.mxu0 0
      %2408 = vmatpush.bf16.msra.mxu0 0
      %2409 = vmatpush.bf16.msra.mxu0 0
      %2410 = vmatpush.bf16.msra.mxu0 0
      %2411 = vmatpush.bf16.msra.mxu0 0
      %2412 = vmatpush.bf16.msra.mxu0 0
      %2413 = vmatpush.bf16.msra.mxu0 %v2398
      %2414 = vmatpush.bf16.msra.mxu0 %v2397
      %2415 = vmatmul.bf16.gmra.mxu0 %v2402
      %v2416 = vpop.f32.mrf.mxu0
      %v2417 = vadd.f32 0.0, %v2416
      %v2418 = vpop.f32.mrf.mxu0
      %v2419 = vadd.f32 0.0, %v2418
      %2420 = vmatmul.bf16.gmra.mxu0 %v2405
      %v2421 = vpop.f32.mrf.mxu0
      %v2422 = vadd.f32 0.0, %v2421
      %v2423 = vpop.f32.mrf.mxu0
      %2424 = vdwg.mxu0
      %v2425 = vld [vmem:[%s1 + $0x248] sm:$0xf]
      %v2426 = vld [vmem:[%s1 + $0x24c] sm:$0xf]
      %v2427 = vld [vmem:[%s1 + $0x250] sm:$0xf]
      %v2428 = vld [vmem:[%s1 + $0x254] sm:$0xf]
      %v2432 = vunpack.c.l.b16 %v2214
      %v2433 = vunpack.c.l.b16 %v2215
      %v2434 = vunpack.c.l.b16 %v2216
      %v2435 = vpack.c.b16 %v2433, %v2432
      %v2436 = vpack.c.b16 %v2434, %v2434
      %v2441 = vunpack.c.l.b16 %v2425
      %v2442 = vunpack.c.l.b16 %v2426
      %v2443 = vunpack.c.l.b16 %v2427
      %v2444 = vunpack.c.l.b16 %v2428
      %v2445 = vpack.c.b16 %v2442, %v2441
      %v2446 = vpack.c.b16 %v2444, %v2443
      %v2450 = vsel %vm909, %v2435, 0
      %v2453 = vsel %vm909, %v2436, 0
      %2455 = vmatpush.bf16.msra.mxu0 0
      %2456 = vmatpush.bf16.msra.mxu0 0
      %2457 = vmatpush.bf16.msra.mxu0 0
      %2458 = vmatpush.bf16.msra.mxu0 0
      %2459 = vmatpush.bf16.msra.mxu0 0
      %2460 = vmatpush.bf16.msra.mxu0 0
      %2461 = vmatpush.bf16.msra.mxu0 %v2446
      %2462 = vmatpush.bf16.msra.mxu0 %v2445
      %2463 = vmatmul.bf16.gmra.mxu0 %v2450
      %v2464 = vpop.f32.mrf.mxu0
      %v2465 = vadd.f32 0.0, %v2464
      %v2466 = vpop.f32.mrf.mxu0
      %v2467 = vadd.f32 0.0, %v2466
      %2468 = vmatmul.bf16.gmra.mxu0 %v2453
      %v2469 = vpop.f32.mrf.mxu0
      %v2470 = vadd.f32 0.0, %v2469
      %v2471 = vpop.f32.mrf.mxu0
      %2472 = vdwg.mxu0
      %v2476 = vunpack.c.l.b16 %v2190
      %v2477 = vunpack.c.l.b16 %v2191
      %v2478 = vunpack.c.l.b16 %v2192
      %v2479 = vpack.c.b16 %v2477, %v2476
      %v2480 = vpack.c.b16 %v2478, %v2478
      %v2485 = vunpack.c.l.b16 %v2217
      %v2486 = vunpack.c.l.b16 %v2218
      %v2487 = vunpack.c.l.b16 %v2219
      %v2488 = vunpack.c.l.b16 %v2220
      %v2489 = vpack.c.b16 %v2486, %v2485
      %v2490 = vpack.c.b16 %v2488, %v2487
      %v2494 = vsel %vm909, %v2479, 0
      %v2497 = vsel %vm909, %v2480, 0
      %2499 = vmatpush.bf16.msra.mxu0 0
      %2500 = vmatpush.bf16.msra.mxu0 0
      %2501 = vmatpush.bf16.msra.mxu0 0
      %2502 = vmatpush.bf16.msra.mxu0 0
      %2503 = vmatpush.bf16.msra.mxu0 0
      %2504 = vmatpush.bf16.msra.mxu0 0
      %2505 = vmatpush.bf16.msra.mxu0 %v2490
      %2506 = vmatpush.bf16.msra.mxu0 %v2489
      %2507 = vmatmul.bf16.gmra.mxu0 %v2494
      %v2508 = vpop.f32.mrf.mxu0
      %v2509 = vadd.f32 %v2261, %v2508
      %v2510 = vpop.f32.mrf.mxu0
      %v2511 = vadd.f32 %v2263, %v2510
      %2512 = vmatmul.bf16.gmra.mxu0 %v2497
      %v2513 = vpop.f32.mrf.mxu0
      %v2514 = vadd.f32 %v2266, %v2513
      %v2515 = vpop.f32.mrf.mxu0
      %2516 = vdwg.mxu0
      %v2520 = vunpack.c.l.b16 %v2196
      %v2521 = vunpack.c.l.b16 %v2197
      %v2522 = vunpack.c.l.b16 %v2198
      %v2523 = vpack.c.b16 %v2521, %v2520
      %v2524 = vpack.c.b16 %v2522, %v2522
      %v2529 = vunpack.c.l.b16 %v2269
      %v2530 = vunpack.c.l.b16 %v2270
      %v2531 = vunpack.c.l.b16 %v2271
      %v2532 = vunpack.c.l.b16 %v2272
      %v2533 = vpack.c.b16 %v2530, %v2529
      %v2534 = vpack.c.b16 %v2532, %v2531
      %v2538 = vsel %vm909, %v2523, 0
      %v2541 = vsel %vm909, %v2524, 0
      %2543 = vmatpush.bf16.msra.mxu0 0
      %2544 = vmatpush.bf16.msra.mxu0 0
      %2545 = vmatpush.bf16.msra.mxu0 0
      %2546 = vmatpush.bf16.msra.mxu0 0
      %2547 = vmatpush.bf16.msra.mxu0 0
      %2548 = vmatpush.bf16.msra.mxu0 0
      %2549 = vmatpush.bf16.msra.mxu0 %v2534
      %2550 = vmatpush.bf16.msra.mxu0 %v2533
      %2551 = vmatmul.bf16.gmra.mxu0 %v2538
      %v2552 = vpop.f32.mrf.mxu0
      %v2553 = vadd.f32 %v2313, %v2552
      %v2554 = vpop.f32.mrf.mxu0
      %v2555 = vadd.f32 %v2315, %v2554
      %2556 = vmatmul.bf16.gmra.mxu0 %v2541
      %v2557 = vpop.f32.mrf.mxu0
      %v2558 = vadd.f32 %v2318, %v2557
      %v2559 = vpop.f32.mrf.mxu0
      %2560 = vdwg.mxu0
      %v2564 = vunpack.c.l.b16 %v2202
      %v2565 = vunpack.c.l.b16 %v2203
      %v2566 = vunpack.c.l.b16 %v2204
      %v2567 = vpack.c.b16 %v2565, %v2564
      %v2568 = vpack.c.b16 %v2566, %v2566
      %v2573 = vunpack.c.l.b16 %v2321
      %v2574 = vunpack.c.l.b16 %v2322
      %v2575 = vunpack.c.l.b16 %v2323
      %v2576 = vunpack.c.l.b16 %v2324
      %v2577 = vpack.c.b16 %v2574, %v2573
      %v2578 = vpack.c.b16 %v2576, %v2575
      %v2582 = vsel %vm909, %v2567, 0
      %v2585 = vsel %vm909, %v2568, 0
      %2587 = vmatpush.bf16.msra.mxu0 0
      %2588 = vmatpush.bf16.msra.mxu0 0
      %2589 = vmatpush.bf16.msra.mxu0 0
      %2590 = vmatpush.bf16.msra.mxu0 0
      %2591 = vmatpush.bf16.msra.mxu0 0
      %2592 = vmatpush.bf16.msra.mxu0 0
      %2593 = vmatpush.bf16.msra.mxu0 %v2578
      %2594 = vmatpush.bf16.msra.mxu0 %v2577
      %2595 = vmatmul.bf16.gmra.mxu0 %v2582
      %v2596 = vpop.f32.mrf.mxu0
      %v2597 = vadd.f32 %v2365, %v2596
      %v2598 = vpop.f32.mrf.mxu0
      %v2599 = vadd.f32 %v2367, %v2598
      %2600 = vmatmul.bf16.gmra.mxu0 %v2585
      %v2601 = vpop.f32.mrf.mxu0
      %v2602 = vadd.f32 %v2370, %v2601
      %v2603 = vpop.f32.mrf.mxu0
      %2604 = vdwg.mxu0
      %v2608 = vunpack.c.l.b16 %v2208
      %v2609 = vunpack.c.l.b16 %v2209
      %v2610 = vunpack.c.l.b16 %v2210
      %v2611 = vpack.c.b16 %v2609, %v2608
      %v2612 = vpack.c.b16 %v2610, %v2610
      %v2617 = vunpack.c.l.b16 %v2373
      %v2618 = vunpack.c.l.b16 %v2374
      %v2619 = vunpack.c.l.b16 %v2375
      %v2620 = vunpack.c.l.b16 %v2376
      %v2621 = vpack.c.b16 %v2618, %v2617
      %v2622 = vpack.c.b16 %v2620, %v2619
      %v2626 = vsel %vm909, %v2611, 0
      %v2629 = vsel %vm909, %v2612, 0
      %2631 = vmatpush.bf16.msra.mxu0 0
      %2632 = vmatpush.bf16.msra.mxu0 0
      %2633 = vmatpush.bf16.msra.mxu0 0
      %2634 = vmatpush.bf16.msra.mxu0 0
      %2635 = vmatpush.bf16.msra.mxu0 0
      %2636 = vmatpush.bf16.msra.mxu0 0
      %2637 = vmatpush.bf16.msra.mxu0 %v2622
      %2638 = vmatpush.bf16.msra.mxu0 %v2621
      %2639 = vmatmul.bf16.gmra.mxu0 %v2626
      %v2640 = vpop.f32.mrf.mxu0
      %v2641 = vadd.f32 %v2417, %v2640
      %v2642 = vpop.f32.mrf.mxu0
      %v2643 = vadd.f32 %v2419, %v2642
      %2644 = vmatmul.bf16.gmra.mxu0 %v2629
      %v2645 = vpop.f32.mrf.mxu0
      %v2646 = vadd.f32 %v2422, %v2645
      %v2647 = vpop.f32.mrf.mxu0
      %2648 = vdwg.mxu0
      %v2649 = vadd.f32 %v2509, %v2553
      %v2650 = vadd.f32 %v2511, %v2555
      %v2651 = vadd.f32 %v2514, %v2558
      %v2652 = vadd.f32 %v2597, %v2641
      %v2653 = vadd.f32 %v2599, %v2643
      %v2654 = vadd.f32 %v2602, %v2646
      %v2655 = vadd.f32 %v2649, %v2652
      %v2656 = vadd.f32 %v2650, %v2653
      %v2657 = vadd.f32 %v2651, %v2654
      %v2658 = vadd.f32 %v2655, %v2465
      %v2659 = vadd.f32 %v2656, %v2467
      %v2660 = vadd.f32 %v2657, %v2470
      %v2661 = vadd.f32 %v1972, %v2658
      %v2662 = vadd.f32 %v1973, %v2659
      %v2663 = vadd.f32 %v1974, %v2660
      %v2664 = vld [vmem:[%s2 + $0x28] sm:$0xff]
      %v2665 = vld [vmem:[%s2 + $0x30] sm:$0xff]
      %v2666 = vld [vmem:[%s2 + $0x38] sm:$0xff]
      %v2667 = vadd.f32 %v2661, %v2664
      %v2668 = vadd.f32 %v2662, %v2665
      %v2669 = vadd.f32 %v2663, %v2666
      %v2670 = vpack.c.bf16 %v2668, %v2667
      %v2671 = vpack.c.bf16 %v2669, %v2669
      %v2672 = vld [vmem:[%s1 + $0x6fc] sm:$0xf]
      %v2673 = vld [vmem:[%s1 + $0x700] sm:$0xf]
      %v2674 = vld [vmem:[%s1 + $0x704] sm:$0xf]
      %v2675 = vld [vmem:[%s1 + $0x708] sm:$0xf]
      %v2676 = vld [vmem:[%s1 + $0x70c] sm:$0xf]
      %v2677 = vld [vmem:[%s1 + $0x710] sm:$0xf]
      %v2678 = vld [vmem:[%s1 + $0x714] sm:$0xf]
      %v2679 = vld [vmem:[%s1 + $0x718] sm:$0xf]
      %v2680 = vld [vmem:[%s1 + $0x71c] sm:$0xf]
      %v2681 = vld [vmem:[%s1 + $0x720] sm:$0xf]
      %v2682 = vld [vmem:[%s1 + $0x724] sm:$0xf]
      %v2683 = vld [vmem:[%s1 + $0x728] sm:$0xf]
      %v2684 = vld [vmem:[%s1 + $0x72c] sm:$0xf]
      %v2685 = vld [vmem:[%s1 + $0x730] sm:$0xf]
      %v2686 = vld [vmem:[%s1 + $0x734] sm:$0xf]
      %v2687 = vld [vmem:[%s1 + $0x738] sm:$0xf]
      %v2688 = vld [vmem:[%s1 + $0x73c] sm:$0xf]
      %v2689 = vld [vmem:[%s1 + $0x740] sm:$0xf]
      %v2690 = vld [vmem:[%s1 + $0x744] sm:$0xf]
      %v2691 = vld [vmem:[%s1 + $0x748] sm:$0xf]
      %v2692 = vld [vmem:[%s1 + $0x74c] sm:$0xf]
      %v2693 = vld [vmem:[%s1 + $0x750] sm:$0xf]
      %v2694 = vld [vmem:[%s1 + $0x754] sm:$0xf]
      %v2695 = vld [vmem:[%s1 + $0x758] sm:$0xf]
      %v2696 = vld [vmem:[%s1 + $0x75c] sm:$0xf]
      %v2697 = vld [vmem:[%s1 + $0x760] sm:$0xf]
      %v2698 = vld [vmem:[%s1 + $0x764] sm:$0xf]
      %v2726 = vunpack.c.l.b16 %v2672
      %v2727 = vunpack.c.l.b16 %v2673
      %v2728 = vunpack.c.l.b16 %v2674
      %v2729 = vunpack.c.l.b16 %v2675
      %v2730 = vunpack.c.l.b16 %v2676
      %v2731 = vunpack.c.l.b16 %v2677
      %v2732 = vunpack.c.l.b16 %v2678
      %v2733 = vunpack.c.l.b16 %v2679
      %v2734 = vunpack.c.l.b16 %v2680
      %v2735 = vunpack.c.l.b16 %v2681
      %v2736 = vunpack.c.l.b16 %v2682
      %v2737 = vunpack.c.l.b16 %v2683
      %v2738 = vunpack.c.l.b16 %v2684
      %v2739 = vunpack.c.l.b16 %v2685
      %v2740 = vunpack.c.l.b16 %v2686
      %v2741 = vunpack.c.l.b16 %v2687
      %v2742 = vunpack.c.l.b16 %v2688
      %v2743 = vunpack.c.l.b16 %v2689
      %v2744 = vunpack.c.l.b16 %v2690
      %v2745 = vunpack.c.l.b16 %v2691
      %v2746 = vunpack.c.l.b16 %v2692
      %v2747 = vunpack.c.l.b16 %v2693
      %v2748 = vunpack.c.l.b16 %v2694
      %v2749 = vunpack.c.l.b16 %v2695
      %v2750 = vunpack.c.l.b16 %v2696
      %v2751 = vunpack.c.l.b16 %v2697
      %v2752 = vunpack.c.l.b16 %v2698
      %v2753 = vpack.c.b16 %v2727, %v2726
      %v2754 = vpack.c.b16 %v2729, %v2728
      %v2755 = vpack.c.b16 %v2731, %v2730
      %v2756 = vpack.c.b16 %v2733, %v2732
      %v2757 = vpack.c.b16 %v2735, %v2734
      %v2758 = vpack.c.b16 %v2737, %v2736
      %v2759 = vpack.c.b16 %v2739, %v2738
      %v2760 = vpack.c.b16 %v2741, %v2740
      %v2761 = vpack.c.b16 %v2743, %v2742
      %v2762 = vpack.c.b16 %v2745, %v2744
      %v2763 = vpack.c.b16 %v2747, %v2746
      %v2764 = vpack.c.b16 %v2749, %v2748
      %v2765 = vpack.c.b16 %v2751, %v2750
      %v2766 = vpack.c.b16 %v2752, %v2752
      %vm2767 = vcmask 195584
      %v2769 = vsel %vm2767, %v2753, 0
      %v2772 = vsel %vm2767, %v2754, 0
      %v2775 = vsel %vm2767, %v2755, 0
      %v2778 = vsel %vm2767, %v2756, 0
      %v2781 = vsel %vm2767, %v2757, 0
      %v2784 = vsel %vm2767, %v2758, 0
      %v2787 = vsel %vm2767, %v2759, 0
      %v2790 = vsel %vm2767, %v2760, 0
      %v2793 = vsel %vm2767, %v2761, 0
      %v2796 = vsel %vm2767, %v2762, 0
      %v2799 = vsel %vm2767, %v2763, 0
      %v2802 = vsel %vm2767, %v2764, 0
      %v2805 = vsel %vm2767, %v2765, 0
      %v2808 = vsel %vm2767, %v2766, 0
      %v2811 = vsel %vm1268, %v2671, 0
      %2813 = vmatpush.bf16.msra.mxu0 0
      %2814 = vmatpush.bf16.msra.mxu0 0
      %2815 = vmatpush.bf16.msra.mxu0 0
      %2816 = vmatpush.bf16.msra.mxu0 0
      %2817 = vmatpush.bf16.msra.mxu0 0
      %2818 = vmatpush.bf16.msra.mxu0 0
      %2819 = vmatpush.bf16.msra.mxu0 %v2811
      %2820 = vmatpush.bf16.msra.mxu0 %v2670
      %2821 = vmatmul.bf16.gmra.mxu0 %v2769
      %v2822 = vpop.f32.mrf.mxu0
      %v2823 = vadd.f32 0.0, %v2822
      %v2824 = vpop.f32.mrf.mxu0
      %v2825 = vadd.f32 0.0, %v2824
      %2826 = vmatmul.bf16.gmra.mxu0 %v2772
      %v2827 = vpop.f32.mrf.mxu0
      %v2828 = vadd.f32 0.0, %v2827
      %v2829 = vpop.f32.mrf.mxu0
      %v2830 = vadd.f32 0.0, %v2829
      %2831 = vmatmul.bf16.gmra.mxu0 %v2775
      %v2832 = vpop.f32.mrf.mxu0
      %v2833 = vadd.f32 0.0, %v2832
      %v2834 = vpop.f32.mrf.mxu0
      %v2835 = vadd.f32 0.0, %v2834
      %2836 = vmatmul.bf16.gmra.mxu0 %v2778
      %v2837 = vpop.f32.mrf.mxu0
      %v2838 = vadd.f32 0.0, %v2837
      %v2839 = vpop.f32.mrf.mxu0
      %v2840 = vadd.f32 0.0, %v2839
      %2841 = vmatmul.bf16.gmra.mxu0 %v2781
      %v2842 = vpop.f32.mrf.mxu0
      %v2843 = vadd.f32 0.0, %v2842
      %v2844 = vpop.f32.mrf.mxu0
      %v2845 = vadd.f32 0.0, %v2844
      %2846 = vmatmul.bf16.gmra.mxu0 %v2784
      %v2847 = vpop.f32.mrf.mxu0
      %v2848 = vadd.f32 0.0, %v2847
      %v2849 = vpop.f32.mrf.mxu0
      %v2850 = vadd.f32 0.0, %v2849
      %2851 = vmatmul.bf16.gmra.mxu0 %v2787
      %v2852 = vpop.f32.mrf.mxu0
      %v2853 = vadd.f32 0.0, %v2852
      %v2854 = vpop.f32.mrf.mxu0
      %v2855 = vadd.f32 0.0, %v2854
      %2856 = vmatmul.bf16.gmra.mxu0 %v2790
      %v2857 = vpop.f32.mrf.mxu0
      %v2858 = vadd.f32 0.0, %v2857
      %v2859 = vpop.f32.mrf.mxu0
      %v2860 = vadd.f32 0.0, %v2859
      %2861 = vmatmul.bf16.gmra.mxu0 %v2793
      %v2862 = vpop.f32.mrf.mxu0
      %v2863 = vadd.f32 0.0, %v2862
      %v2864 = vpop.f32.mrf.mxu0
      %v2865 = vadd.f32 0.0, %v2864
      %2866 = vmatmul.bf16.gmra.mxu0 %v2796
      %v2867 = vpop.f32.mrf.mxu0
      %v2868 = vadd.f32 0.0, %v2867
      %v2869 = vpop.f32.mrf.mxu0
      %v2870 = vadd.f32 0.0, %v2869
      %2871 = vmatmul.bf16.gmra.mxu0 %v2799
      %v2872 = vpop.f32.mrf.mxu0
      %v2873 = vadd.f32 0.0, %v2872
      %v2874 = vpop.f32.mrf.mxu0
      %v2875 = vadd.f32 0.0, %v2874
      %2876 = vmatmul.bf16.gmra.mxu0 %v2802
      %v2877 = vpop.f32.mrf.mxu0
      %v2878 = vadd.f32 0.0, %v2877
      %v2879 = vpop.f32.mrf.mxu0
      %v2880 = vadd.f32 0.0, %v2879
      %2881 = vmatmul.bf16.gmra.mxu0 %v2805
      %v2882 = vpop.f32.mrf.mxu0
      %v2883 = vadd.f32 0.0, %v2882
      %v2884 = vpop.f32.mrf.mxu0
      %v2885 = vadd.f32 0.0, %v2884
      %2886 = vmatmul.bf16.gmra.mxu0 %v2808
      %v2887 = vpop.f32.mrf.mxu0
      %v2888 = vadd.f32 0.0, %v2887
      %v2889 = vpop.f32.mrf.mxu0
      %2890 = vdwg.mxu0
      %v2891 = vpack.c.bf16 %v2823, %v2823
      %v2892 = vpack.c.bf16 %v2825, %v2825
      %v2893 = vpack.c.bf16 %v2828, %v2828
      %v2894 = vpack.c.bf16 %v2830, %v2830
      %v2895 = vpack.c.bf16 %v2833, %v2833
      %v2896 = vpack.c.bf16 %v2835, %v2835
      %v2897 = vpack.c.bf16 %v2838, %v2838
      %v2898 = vpack.c.bf16 %v2840, %v2840
      %v2899 = vpack.c.bf16 %v2843, %v2843
      %v2900 = vpack.c.bf16 %v2845, %v2845
      %v2901 = vpack.c.bf16 %v2848, %v2848
      %v2902 = vpack.c.bf16 %v2850, %v2850
      %v2903 = vpack.c.bf16 %v2853, %v2853
      %v2904 = vpack.c.bf16 %v2855, %v2855
      %v2905 = vpack.c.bf16 %v2858, %v2858
      %v2906 = vpack.c.bf16 %v2860, %v2860
      %v2907 = vpack.c.bf16 %v2863, %v2863
      %v2908 = vpack.c.bf16 %v2865, %v2865
      %v2909 = vpack.c.bf16 %v2868, %v2868
      %v2910 = vpack.c.bf16 %v2870, %v2870
      %v2911 = vpack.c.bf16 %v2873, %v2873
      %v2912 = vpack.c.bf16 %v2875, %v2875
      %v2913 = vpack.c.bf16 %v2878, %v2878
      %v2914 = vpack.c.bf16 %v2880, %v2880
      %v2915 = vpack.c.bf16 %v2883, %v2883
      %v2916 = vpack.c.bf16 %v2885, %v2885
      %v2917 = vpack.c.bf16 %v2888, %v2888
      %v2918 = vld [vmem:[%s1 + $0x258] sm:$0xf]
      %v2919 = vld [vmem:[%s1 + $0x25c] sm:$0xf]
      %v2920 = vld [vmem:[%s1 + $0x260] sm:$0xf]
      %v2921 = vld [vmem:[%s1 + $0x264] sm:$0xf]
      %v2922 = vld [vmem:[%s1 + $0x268] sm:$0xf]
      %v2923 = vld [vmem:[%s1 + $0x26c] sm:$0xf]
      %v2924 = vld [vmem:[%s1 + $0x270] sm:$0xf]
      %v2925 = vld [vmem:[%s1 + $0x274] sm:$0xf]
      %v2926 = vld [vmem:[%s1 + $0x278] sm:$0xf]
      %v2927 = vld [vmem:[%s1 + $0x27c] sm:$0xf]
      %v2928 = vld [vmem:[%s1 + $0x280] sm:$0xf]
      %v2929 = vld [vmem:[%s1 + $0x284] sm:$0xf]
      %v2930 = vld [vmem:[%s1 + $0x288] sm:$0xf]
      %v2931 = vld [vmem:[%s1 + $0x28c] sm:$0xf]
      %v2932 = vld [vmem:[%s1 + $0x290] sm:$0xf]
      %v2933 = vld [vmem:[%s1 + $0x294] sm:$0xf]
      %v2937 = vunpack.c.l.b16 %v2894
      %v2938 = vunpack.c.l.b16 %v2895
      %v2939 = vunpack.c.l.b16 %v2896
      %v2940 = vpack.c.b16 %v2938, %v2937
      %v2941 = vpack.c.b16 %v2939, %v2939
      %v2950 = vunpack.c.l.b16 %v2926
      %v2951 = vunpack.c.l.b16 %v2927
      %v2952 = vunpack.c.l.b16 %v2928
      %v2953 = vunpack.c.l.b16 %v2929
      %v2954 = vunpack.c.l.b16 %v2930
      %v2955 = vunpack.c.l.b16 %v2931
      %v2956 = vunpack.c.l.b16 %v2932
      %v2957 = vunpack.c.l.b16 %v2933
      %v2958 = vpack.c.b16 %v2951, %v2950
      %v2959 = vpack.c.b16 %v2953, %v2952
      %v2960 = vpack.c.b16 %v2955, %v2954
      %v2961 = vpack.c.b16 %v2957, %v2956
      %v2967 = vsel %vm414, %v2940, 0
      %v2970 = vsel %vm414, %v2941, 0
      %2972 = vmatpush.bf16.msra.mxu0 0
      %2973 = vmatpush.bf16.msra.mxu0 0
      %2974 = vmatpush.bf16.msra.mxu0 0
      %2975 = vmatpush.bf16.msra.mxu0 0
      %2976 = vmatpush.bf16.msra.mxu0 %v2961
      %2977 = vmatpush.bf16.msra.mxu0 %v2960
      %2978 = vmatpush.bf16.msra.mxu0 %v2959
      %2979 = vmatpush.bf16.msra.mxu0 %v2958
      %2980 = vmatmul.bf16.gmra.mxu0 %v2967
      %v2981 = vpop.f32.mrf.mxu0
      %v2982 = vadd.f32 0.0, %v2981
      %v2983 = vpop.f32.mrf.mxu0
      %v2984 = vadd.f32 0.0, %v2983
      %2985 = vmatmul.bf16.gmra.mxu0 %v2970
      %v2986 = vpop.f32.mrf.mxu0
      %v2987 = vadd.f32 0.0, %v2986
      %v2988 = vpop.f32.mrf.mxu0
      %2989 = vdwg.mxu0
      %v2990 = vld [vmem:[%s1 + $0x298] sm:$0xf]
      %v2991 = vld [vmem:[%s1 + $0x29c] sm:$0xf]
      %v2992 = vld [vmem:[%s1 + $0x2a0] sm:$0xf]
      %v2993 = vld [vmem:[%s1 + $0x2a4] sm:$0xf]
      %v2994 = vld [vmem:[%s1 + $0x2a8] sm:$0xf]
      %v2995 = vld [vmem:[%s1 + $0x2ac] sm:$0xf]
      %v2996 = vld [vmem:[%s1 + $0x2b0] sm:$0xf]
      %v2997 = vld [vmem:[%s1 + $0x2b4] sm:$0xf]
      %v2998 = vld [vmem:[%s1 + $0x2b8] sm:$0xf]
      %v2999 = vld [vmem:[%s1 + $0x2bc] sm:$0xf]
      %v3000 = vld [vmem:[%s1 + $0x2c0] sm:$0xf]
      %v3001 = vld [vmem:[%s1 + $0x2c4] sm:$0xf]
      %v3002 = vld [vmem:[%s1 + $0x2c8] sm:$0xf]
      %v3003 = vld [vmem:[%s1 + $0x2cc] sm:$0xf]
      %v3004 = vld [vmem:[%s1 + $0x2d0] sm:$0xf]
      %v3005 = vld [vmem:[%s1 + $0x2d4] sm:$0xf]
      %v3009 = vunpack.c.l.b16 %v2900
      %v3010 = vunpack.c.l.b16 %v2901
      %v3011 = vunpack.c.l.b16 %v2902
      %v3012 = vpack.c.b16 %v3010, %v3009
      %v3013 = vpack.c.b16 %v3011, %v3011
      %v3022 = vunpack.c.l.b16 %v2998
      %v3023 = vunpack.c.l.b16 %v2999
      %v3024 = vunpack.c.l.b16 %v3000
      %v3025 = vunpack.c.l.b16 %v3001
      %v3026 = vunpack.c.l.b16 %v3002
      %v3027 = vunpack.c.l.b16 %v3003
      %v3028 = vunpack.c.l.b16 %v3004
      %v3029 = vunpack.c.l.b16 %v3005
      %v3030 = vpack.c.b16 %v3023, %v3022
      %v3031 = vpack.c.b16 %v3025, %v3024
      %v3032 = vpack.c.b16 %v3027, %v3026
      %v3033 = vpack.c.b16 %v3029, %v3028
      %v3039 = vsel %vm414, %v3012, 0
      %v3042 = vsel %vm414, %v3013, 0
      %3044 = vmatpush.bf16.msra.mxu0 0
      %3045 = vmatpush.bf16.msra.mxu0 0
      %3046 = vmatpush.bf16.msra.mxu0 0
      %3047 = vmatpush.bf16.msra.mxu0 0
      %3048 = vmatpush.bf16.msra.mxu0 %v3033
      %3049 = vmatpush.bf16.msra.mxu0 %v3032
      %3050 = vmatpush.bf16.msra.mxu0 %v3031
      %3051 = vmatpush.bf16.msra.mxu0 %v3030
      %3052 = vmatmul.bf16.gmra.mxu0 %v3039
      %v3053 = vpop.f32.mrf.mxu0
      %v3054 = vadd.f32 0.0, %v3053
      %v3055 = vpop.f32.mrf.mxu0
      %v3056 = vadd.f32 0.0, %v3055
      %3057 = vmatmul.bf16.gmra.mxu0 %v3042
      %v3058 = vpop.f32.mrf.mxu0
      %v3059 = vadd.f32 0.0, %v3058
      %v3060 = vpop.f32.mrf.mxu0
      %3061 = vdwg.mxu0
      %v3062 = vld [vmem:[%s1 + $0x2d8] sm:$0xf]
      %v3063 = vld [vmem:[%s1 + $0x2dc] sm:$0xf]
      %v3064 = vld [vmem:[%s1 + $0x2e0] sm:$0xf]
      %v3065 = vld [vmem:[%s1 + $0x2e4] sm:$0xf]
      %v3066 = vld [vmem:[%s1 + $0x2e8] sm:$0xf]
      %v3067 = vld [vmem:[%s1 + $0x2ec] sm:$0xf]
      %v3068 = vld [vmem:[%s1 + $0x2f0] sm:$0xf]
      %v3069 = vld [vmem:[%s1 + $0x2f4] sm:$0xf]
      %v3070 = vld [vmem:[%s1 + $0x2f8] sm:$0xf]
      %v3071 = vld [vmem:[%s1 + $0x2fc] sm:$0xf]
      %v3072 = vld [vmem:[%s1 + $0x300] sm:$0xf]
      %v3073 = vld [vmem:[%s1 + $0x304] sm:$0xf]
      %v3074 = vld [vmem:[%s1 + $0x308] sm:$0xf]
      %v3075 = vld [vmem:[%s1 + $0x30c] sm:$0xf]
      %v3076 = vld [vmem:[%s1 + $0x310] sm:$0xf]
      %v3077 = vld [vmem:[%s1 + $0x314] sm:$0xf]
      %v3081 = vunpack.c.l.b16 %v2906
      %v3082 = vunpack.c.l.b16 %v2907
      %v3083 = vunpack.c.l.b16 %v2908
      %v3084 = vpack.c.b16 %v3082, %v3081
      %v3085 = vpack.c.b16 %v3083, %v3083
      %v3094 = vunpack.c.l.b16 %v3070
      %v3095 = vunpack.c.l.b16 %v3071
      %v3096 = vunpack.c.l.b16 %v3072
      %v3097 = vunpack.c.l.b16 %v3073
      %v3098 = vunpack.c.l.b16 %v3074
      %v3099 = vunpack.c.l.b16 %v3075
      %v3100 = vunpack.c.l.b16 %v3076
      %v3101 = vunpack.c.l.b16 %v3077
      %v3102 = vpack.c.b16 %v3095, %v3094
      %v3103 = vpack.c.b16 %v3097, %v3096
      %v3104 = vpack.c.b16 %v3099, %v3098
      %v3105 = vpack.c.b16 %v3101, %v3100
      %v3111 = vsel %vm414, %v3084, 0
      %v3114 = vsel %vm414, %v3085, 0
      %3116 = vmatpush.bf16.msra.mxu0 0
      %3117 = vmatpush.bf16.msra.mxu0 0
      %3118 = vmatpush.bf16.msra.mxu0 0
      %3119 = vmatpush.bf16.msra.mxu0 0
      %3120 = vmatpush.bf16.msra.mxu0 %v3105
      %3121 = vmatpush.bf16.msra.mxu0 %v3104
      %3122 = vmatpush.bf16.msra.mxu0 %v3103
      %3123 = vmatpush.bf16.msra.mxu0 %v3102
      %3124 = vmatmul.bf16.gmra.mxu0 %v3111
      %v3125 = vpop.f32.mrf.mxu0
      %v3126 = vadd.f32 0.0, %v3125
      %v3127 = vpop.f32.mrf.mxu0
      %v3128 = vadd.f32 0.0, %v3127
      %3129 = vmatmul.bf16.gmra.mxu0 %v3114
      %v3130 = vpop.f32.mrf.mxu0
      %v3131 = vadd.f32 0.0, %v3130
      %v3132 = vpop.f32.mrf.mxu0
      %3133 = vdwg.mxu0
      %v3134 = vld [vmem:[%s1 + $0x318] sm:$0xf]
      %v3135 = vld [vmem:[%s1 + $0x31c] sm:$0xf]
      %v3136 = vld [vmem:[%s1 + $0x320] sm:$0xf]
      %v3137 = vld [vmem:[%s1 + $0x324] sm:$0xf]
      %v3138 = vld [vmem:[%s1 + $0x328] sm:$0xf]
      %v3139 = vld [vmem:[%s1 + $0x32c] sm:$0xf]
      %v3140 = vld [vmem:[%s1 + $0x330] sm:$0xf]
      %v3141 = vld [vmem:[%s1 + $0x334] sm:$0xf]
      %v3142 = vld [vmem:[%s1 + $0x338] sm:$0xf]
      %v3143 = vld [vmem:[%s1 + $0x33c] sm:$0xf]
      %v3144 = vld [vmem:[%s1 + $0x340] sm:$0xf]
      %v3145 = vld [vmem:[%s1 + $0x344] sm:$0xf]
      %v3146 = vld [vmem:[%s1 + $0x348] sm:$0xf]
      %v3147 = vld [vmem:[%s1 + $0x34c] sm:$0xf]
      %v3148 = vld [vmem:[%s1 + $0x350] sm:$0xf]
      %v3149 = vld [vmem:[%s1 + $0x354] sm:$0xf]
      %v3153 = vunpack.c.l.b16 %v2912
      %v3154 = vunpack.c.l.b16 %v2913
      %v3155 = vunpack.c.l.b16 %v2914
      %v3156 = vpack.c.b16 %v3154, %v3153
      %v3157 = vpack.c.b16 %v3155, %v3155
      %v3166 = vunpack.c.l.b16 %v3142
      %v3167 = vunpack.c.l.b16 %v3143
      %v3168 = vunpack.c.l.b16 %v3144
      %v3169 = vunpack.c.l.b16 %v3145
      %v3170 = vunpack.c.l.b16 %v3146
      %v3171 = vunpack.c.l.b16 %v3147
      %v3172 = vunpack.c.l.b16 %v3148
      %v3173 = vunpack.c.l.b16 %v3149
      %v3174 = vpack.c.b16 %v3167, %v3166
      %v3175 = vpack.c.b16 %v3169, %v3168
      %v3176 = vpack.c.b16 %v3171, %v3170
      %v3177 = vpack.c.b16 %v3173, %v3172
      %v3183 = vsel %vm414, %v3156, 0
      %v3186 = vsel %vm414, %v3157, 0
      %3188 = vmatpush.bf16.msra.mxu0 0
      %3189 = vmatpush.bf16.msra.mxu0 0
      %3190 = vmatpush.bf16.msra.mxu0 0
      %3191 = vmatpush.bf16.msra.mxu0 0
      %3192 = vmatpush.bf16.msra.mxu0 %v3177
      %3193 = vmatpush.bf16.msra.mxu0 %v3176
      %3194 = vmatpush.bf16.msra.mxu0 %v3175
      %3195 = vmatpush.bf16.msra.mxu0 %v3174
      %3196 = vmatmul.bf16.gmra.mxu0 %v3183
      %v3197 = vpop.f32.mrf.mxu0
      %v3198 = vadd.f32 0.0, %v3197
      %v3199 = vpop.f32.mrf.mxu0
      %v3200 = vadd.f32 0.0, %v3199
      %3201 = vmatmul.bf16.gmra.mxu0 %v3186
      %v3202 = vpop.f32.mrf.mxu0
      %v3203 = vadd.f32 0.0, %v3202
      %v3204 = vpop.f32.mrf.mxu0
      %3205 = vdwg.mxu0
      %v3206 = vld [vmem:[%s1 + $0x358] sm:$0xf]
      %v3207 = vld [vmem:[%s1 + $0x35c] sm:$0xf]
      %v3208 = vld [vmem:[%s1 + $0x360] sm:$0xf]
      %v3209 = vld [vmem:[%s1 + $0x364] sm:$0xf]
      %v3210 = vld [vmem:[%s1 + $0x368] sm:$0xf]
      %v3211 = vld [vmem:[%s1 + $0x36c] sm:$0xf]
      %v3212 = vld [vmem:[%s1 + $0x370] sm:$0xf]
      %v3213 = vld [vmem:[%s1 + $0x374] sm:$0xf]
      %v3217 = vunpack.c.l.b16 %v2915
      %v3218 = vunpack.c.l.b16 %v2916
      %v3219 = vunpack.c.l.b16 %v2917
      %v3220 = vpack.c.b16 %v3218, %v3217
      %v3221 = vpack.c.b16 %v3219, %v3219
      %v3230 = vunpack.c.l.b16 %v3206
      %v3231 = vunpack.c.l.b16 %v3207
      %v3232 = vunpack.c.l.b16 %v3208
      %v3233 = vunpack.c.l.b16 %v3209
      %v3234 = vunpack.c.l.b16 %v3210
      %v3235 = vunpack.c.l.b16 %v3211
      %v3236 = vunpack.c.l.b16 %v3212
      %v3237 = vunpack.c.l.b16 %v3213
      %v3238 = vpack.c.b16 %v3231, %v3230
      %v3239 = vpack.c.b16 %v3233, %v3232
      %v3240 = vpack.c.b16 %v3235, %v3234
      %v3241 = vpack.c.b16 %v3237, %v3236
      %v3247 = vsel %vm414, %v3220, 0
      %v3250 = vsel %vm414, %v3221, 0
      %3252 = vmatpush.bf16.msra.mxu0 0
      %3253 = vmatpush.bf16.msra.mxu0 0
      %3254 = vmatpush.bf16.msra.mxu0 0
      %3255 = vmatpush.bf16.msra.mxu0 0
      %3256 = vmatpush.bf16.msra.mxu0 %v3241
      %3257 = vmatpush.bf16.msra.mxu0 %v3240
      %3258 = vmatpush.bf16.msra.mxu0 %v3239
      %3259 = vmatpush.bf16.msra.mxu0 %v3238
      %3260 = vmatmul.bf16.gmra.mxu0 %v3247
      %v3261 = vpop.f32.mrf.mxu0
      %v3262 = vadd.f32 0.0, %v3261
      %v3263 = vpop.f32.mrf.mxu0
      %v3264 = vadd.f32 0.0, %v3263
      %3265 = vmatmul.bf16.gmra.mxu0 %v3250
      %v3266 = vpop.f32.mrf.mxu0
      %v3267 = vadd.f32 0.0, %v3266
      %v3268 = vpop.f32.mrf.mxu0
      %3269 = vdwg.mxu0
      %v3273 = vunpack.c.l.b16 %v2891
      %v3274 = vunpack.c.l.b16 %v2892
      %v3275 = vunpack.c.l.b16 %v2893
      %v3276 = vpack.c.b16 %v3274, %v3273
      %v3277 = vpack.c.b16 %v3275, %v3275
      %v3286 = vunpack.c.l.b16 %v2918
      %v3287 = vunpack.c.l.b16 %v2919
      %v3288 = vunpack.c.l.b16 %v2920
      %v3289 = vunpack.c.l.b16 %v2921
      %v3290 = vunpack.c.l.b16 %v2922
      %v3291 = vunpack.c.l.b16 %v2923
      %v3292 = vunpack.c.l.b16 %v2924
      %v3293 = vunpack.c.l.b16 %v2925
      %v3294 = vpack.c.b16 %v3287, %v3286
      %v3295 = vpack.c.b16 %v3289, %v3288
      %v3296 = vpack.c.b16 %v3291, %v3290
      %v3297 = vpack.c.b16 %v3293, %v3292
      %v3303 = vsel %vm414, %v3276, 0
      %v3306 = vsel %vm414, %v3277, 0
      %3308 = vmatpush.bf16.msra.mxu0 0
      %3309 = vmatpush.bf16.msra.mxu0 0
      %3310 = vmatpush.bf16.msra.mxu0 0
      %3311 = vmatpush.bf16.msra.mxu0 0
      %3312 = vmatpush.bf16.msra.mxu0 %v3297
      %3313 = vmatpush.bf16.msra.mxu0 %v3296
      %3314 = vmatpush.bf16.msra.mxu0 %v3295
      %3315 = vmatpush.bf16.msra.mxu0 %v3294
      %3316 = vmatmul.bf16.gmra.mxu0 %v3303
      %v3317 = vpop.f32.mrf.mxu0
      %v3318 = vadd.f32 %v2982, %v3317
      %v3319 = vpop.f32.mrf.mxu0
      %v3320 = vadd.f32 %v2984, %v3319
      %3321 = vmatmul.bf16.gmra.mxu0 %v3306
      %v3322 = vpop.f32.mrf.mxu0
      %v3323 = vadd.f32 %v2987, %v3322
      %v3324 = vpop.f32.mrf.mxu0
      %3325 = vdwg.mxu0
      %v3329 = vunpack.c.l.b16 %v2897
      %v3330 = vunpack.c.l.b16 %v2898
      %v3331 = vunpack.c.l.b16 %v2899
      %v3332 = vpack.c.b16 %v3330, %v3329
      %v3333 = vpack.c.b16 %v3331, %v3331
      %v3342 = vunpack.c.l.b16 %v2990
      %v3343 = vunpack.c.l.b16 %v2991
      %v3344 = vunpack.c.l.b16 %v2992
      %v3345 = vunpack.c.l.b16 %v2993
      %v3346 = vunpack.c.l.b16 %v2994
      %v3347 = vunpack.c.l.b16 %v2995
      %v3348 = vunpack.c.l.b16 %v2996
      %v3349 = vunpack.c.l.b16 %v2997
      %v3350 = vpack.c.b16 %v3343, %v3342
      %v3351 = vpack.c.b16 %v3345, %v3344
      %v3352 = vpack.c.b16 %v3347, %v3346
      %v3353 = vpack.c.b16 %v3349, %v3348
      %v3359 = vsel %vm414, %v3332, 0
      %v3362 = vsel %vm414, %v3333, 0
      %3364 = vmatpush.bf16.msra.mxu0 0
      %3365 = vmatpush.bf16.msra.mxu0 0
      %3366 = vmatpush.bf16.msra.mxu0 0
      %3367 = vmatpush.bf16.msra.mxu0 0
      %3368 = vmatpush.bf16.msra.mxu0 %v3353
      %3369 = vmatpush.bf16.msra.mxu0 %v3352
      %3370 = vmatpush.bf16.msra.mxu0 %v3351
      %3371 = vmatpush.bf16.msra.mxu0 %v3350
      %3372 = vmatmul.bf16.gmra.mxu0 %v3359
      %v3373 = vpop.f32.mrf.mxu0
      %v3374 = vadd.f32 %v3054, %v3373
      %v3375 = vpop.f32.mrf.mxu0
      %v3376 = vadd.f32 %v3056, %v3375
      %3377 = vmatmul.bf16.gmra.mxu0 %v3362
      %v3378 = vpop.f32.mrf.mxu0
      %v3379 = vadd.f32 %v3059, %v3378
      %v3380 = vpop.f32.mrf.mxu0
      %3381 = vdwg.mxu0
      %v3385 = vunpack.c.l.b16 %v2903
      %v3386 = vunpack.c.l.b16 %v2904
      %v3387 = vunpack.c.l.b16 %v2905
      %v3388 = vpack.c.b16 %v3386, %v3385
      %v3389 = vpack.c.b16 %v3387, %v3387
      %v3398 = vunpack.c.l.b16 %v3062
      %v3399 = vunpack.c.l.b16 %v3063
      %v3400 = vunpack.c.l.b16 %v3064
      %v3401 = vunpack.c.l.b16 %v3065
      %v3402 = vunpack.c.l.b16 %v3066
      %v3403 = vunpack.c.l.b16 %v3067
      %v3404 = vunpack.c.l.b16 %v3068
      %v3405 = vunpack.c.l.b16 %v3069
      %v3406 = vpack.c.b16 %v3399, %v3398
      %v3407 = vpack.c.b16 %v3401, %v3400
      %v3408 = vpack.c.b16 %v3403, %v3402
      %v3409 = vpack.c.b16 %v3405, %v3404
      %v3415 = vsel %vm414, %v3388, 0
      %v3418 = vsel %vm414, %v3389, 0
      %3420 = vmatpush.bf16.msra.mxu0 0
      %3421 = vmatpush.bf16.msra.mxu0 0
      %3422 = vmatpush.bf16.msra.mxu0 0
      %3423 = vmatpush.bf16.msra.mxu0 0
      %3424 = vmatpush.bf16.msra.mxu0 %v3409
      %3425 = vmatpush.bf16.msra.mxu0 %v3408
      %3426 = vmatpush.bf16.msra.mxu0 %v3407
      %3427 = vmatpush.bf16.msra.mxu0 %v3406
      %3428 = vmatmul.bf16.gmra.mxu0 %v3415
      %v3429 = vpop.f32.mrf.mxu0
      %v3430 = vadd.f32 %v3126, %v3429
      %v3431 = vpop.f32.mrf.mxu0
      %v3432 = vadd.f32 %v3128, %v3431
      %3433 = vmatmul.bf16.gmra.mxu0 %v3418
      %v3434 = vpop.f32.mrf.mxu0
      %v3435 = vadd.f32 %v3131, %v3434
      %v3436 = vpop.f32.mrf.mxu0
      %3437 = vdwg.mxu0
      %v3441 = vunpack.c.l.b16 %v2909
      %v3442 = vunpack.c.l.b16 %v2910
      %v3443 = vunpack.c.l.b16 %v2911
      %v3444 = vpack.c.b16 %v3442, %v3441
      %v3445 = vpack.c.b16 %v3443, %v3443
      %v3454 = vunpack.c.l.b16 %v3134
      %v3455 = vunpack.c.l.b16 %v3135
      %v3456 = vunpack.c.l.b16 %v3136
      %v3457 = vunpack.c.l.b16 %v3137
      %v3458 = vunpack.c.l.b16 %v3138
      %v3459 = vunpack.c.l.b16 %v3139
      %v3460 = vunpack.c.l.b16 %v3140
      %v3461 = vunpack.c.l.b16 %v3141
      %v3462 = vpack.c.b16 %v3455, %v3454
      %v3463 = vpack.c.b16 %v3457, %v3456
      %v3464 = vpack.c.b16 %v3459, %v3458
      %v3465 = vpack.c.b16 %v3461, %v3460
      %v3471 = vsel %vm414, %v3444, 0
      %v3474 = vsel %vm414, %v3445, 0
      %3476 = vmatpush.bf16.msra.mxu0 0
      %3477 = vmatpush.bf16.msra.mxu0 0
      %3478 = vmatpush.bf16.msra.mxu0 0
      %3479 = vmatpush.bf16.msra.mxu0 0
      %3480 = vmatpush.bf16.msra.mxu0 %v3465
      %3481 = vmatpush.bf16.msra.mxu0 %v3464
      %3482 = vmatpush.bf16.msra.mxu0 %v3463
      %3483 = vmatpush.bf16.msra.mxu0 %v3462
      %3484 = vmatmul.bf16.gmra.mxu0 %v3471
      %v3485 = vpop.f32.mrf.mxu0
      %v3486 = vadd.f32 %v3198, %v3485
      %v3487 = vpop.f32.mrf.mxu0
      %v3488 = vadd.f32 %v3200, %v3487
      %3489 = vmatmul.bf16.gmra.mxu0 %v3474
      %v3490 = vpop.f32.mrf.mxu0
      %v3491 = vadd.f32 %v3203, %v3490
      %v3492 = vpop.f32.mrf.mxu0
      %3493 = vdwg.mxu0
      %v3494 = vadd.f32 %v3318, %v3374
      %v3495 = vadd.f32 %v3320, %v3376
      %v3496 = vadd.f32 %v3323, %v3379
      %v3497 = vadd.f32 %v3430, %v3486
      %v3498 = vadd.f32 %v3432, %v3488
      %v3499 = vadd.f32 %v3435, %v3491
      %v3500 = vadd.f32 %v3494, %v3497
      %v3501 = vadd.f32 %v3495, %v3498
      %v3502 = vadd.f32 %v3496, %v3499
      %v3503 = vadd.f32 %v3500, %v3262
      %v3504 = vadd.f32 %v3501, %v3264
      %v3505 = vadd.f32 %v3502, %v3267
      %v3506 = vld [vmem:[%s2 + $0x40] sm:$0x1]
      %v3507 = vperm.slane %v3506, 0
      %v3508 = vadd.f32 %v3503, %v3507
      %v3509 = vadd.f32 %v3504, %v3507
      %v3510 = vadd.f32 %v3505, %v3507
      %v3511 = vmax.f32 %v3508, 0.0
      %v3512 = vmax.f32 %v3509, 0.0
      %v3513 = vmax.f32 %v3510, 0.0
      %v3514 = vpack.c.bf16 %v3512, %v3511
      %v3515 = vpack.c.bf16 %v3513, %v3513
      %v3517 = vsel %vm1268, %v3515, 0
      %3519 = vmatpush.bf16.msra.mxu0 0
      %3520 = vmatpush.bf16.msra.mxu0 0
      %3521 = vmatpush.bf16.msra.mxu0 0
      %3522 = vmatpush.bf16.msra.mxu0 0
      %3523 = vmatpush.bf16.msra.mxu0 0
      %3524 = vmatpush.bf16.msra.mxu0 0
      %3525 = vmatpush.bf16.msra.mxu0 %v3517
      %3526 = vmatpush.bf16.msra.mxu0 %v3514
      %3527 = vmatmul.bf16.gmra.mxu0 %v2769
      %v3528 = vpop.f32.mrf.mxu0
      %v3529 = vadd.f32 0.0, %v3528
      %v3530 = vpop.f32.mrf.mxu0
      %v3531 = vadd.f32 0.0, %v3530
      %3532 = vmatmul.bf16.gmra.mxu0 %v2772
      %v3533 = vpop.f32.mrf.mxu0
      %v3534 = vadd.f32 0.0, %v3533
      %v3535 = vpop.f32.mrf.mxu0
      %v3536 = vadd.f32 0.0, %v3535
      %3537 = vmatmul.bf16.gmra.mxu0 %v2775
      %v3538 = vpop.f32.mrf.mxu0
      %v3539 = vadd.f32 0.0, %v3538
      %v3540 = vpop.f32.mrf.mxu0
      %v3541 = vadd.f32 0.0, %v3540
      %3542 = vmatmul.bf16.gmra.mxu0 %v2778
      %v3543 = vpop.f32.mrf.mxu0
      %v3544 = vadd.f32 0.0, %v3543
      %v3545 = vpop.f32.mrf.mxu0
      %v3546 = vadd.f32 0.0, %v3545
      %3547 = vmatmul.bf16.gmra.mxu0 %v2781
      %v3548 = vpop.f32.mrf.mxu0
      %v3549 = vadd.f32 0.0, %v3548
      %v3550 = vpop.f32.mrf.mxu0
      %v3551 = vadd.f32 0.0, %v3550
      %3552 = vmatmul.bf16.gmra.mxu0 %v2784
      %v3553 = vpop.f32.mrf.mxu0
      %v3554 = vadd.f32 0.0, %v3553
      %v3555 = vpop.f32.mrf.mxu0
      %v3556 = vadd.f32 0.0, %v3555
      %3557 = vmatmul.bf16.gmra.mxu0 %v2787
      %v3558 = vpop.f32.mrf.mxu0
      %v3559 = vadd.f32 0.0, %v3558
      %v3560 = vpop.f32.mrf.mxu0
      %v3561 = vadd.f32 0.0, %v3560
      %3562 = vmatmul.bf16.gmra.mxu0 %v2790
      %v3563 = vpop.f32.mrf.mxu0
      %v3564 = vadd.f32 0.0, %v3563
      %v3565 = vpop.f32.mrf.mxu0
      %v3566 = vadd.f32 0.0, %v3565
      %3567 = vmatmul.bf16.gmra.mxu0 %v2793
      %v3568 = vpop.f32.mrf.mxu0
      %v3569 = vadd.f32 0.0, %v3568
      %v3570 = vpop.f32.mrf.mxu0
      %v3571 = vadd.f32 0.0, %v3570
      %3572 = vmatmul.bf16.gmra.mxu0 %v2796
      %v3573 = vpop.f32.mrf.mxu0
      %v3574 = vadd.f32 0.0, %v3573
      %v3575 = vpop.f32.mrf.mxu0
      %v3576 = vadd.f32 0.0, %v3575
      %3577 = vmatmul.bf16.gmra.mxu0 %v2799
      %v3578 = vpop.f32.mrf.mxu0
      %v3579 = vadd.f32 0.0, %v3578
      %v3580 = vpop.f32.mrf.mxu0
      %v3581 = vadd.f32 0.0, %v3580
      %3582 = vmatmul.bf16.gmra.mxu0 %v2802
      %v3583 = vpop.f32.mrf.mxu0
      %v3584 = vadd.f32 0.0, %v3583
      %v3585 = vpop.f32.mrf.mxu0
      %v3586 = vadd.f32 0.0, %v3585
      %3587 = vmatmul.bf16.gmra.mxu0 %v2805
      %v3588 = vpop.f32.mrf.mxu0
      %v3589 = vadd.f32 0.0, %v3588
      %v3590 = vpop.f32.mrf.mxu0
      %v3591 = vadd.f32 0.0, %v3590
      %3592 = vmatmul.bf16.gmra.mxu0 %v2808
      %v3593 = vpop.f32.mrf.mxu0
      %v3594 = vadd.f32 0.0, %v3593
      %v3595 = vpop.f32.mrf.mxu0
      %3596 = vdwg.mxu0
      %v3597 = vpack.c.bf16 %v3529, %v3529
      %v3598 = vpack.c.bf16 %v3531, %v3531
      %v3599 = vpack.c.bf16 %v3534, %v3534
      %v3600 = vpack.c.bf16 %v3536, %v3536
      %v3601 = vpack.c.bf16 %v3539, %v3539
      %v3602 = vpack.c.bf16 %v3541, %v3541
      %v3603 = vpack.c.bf16 %v3544, %v3544
      %v3604 = vpack.c.bf16 %v3546, %v3546
      %v3605 = vpack.c.bf16 %v3549, %v3549
      %v3606 = vpack.c.bf16 %v3551, %v3551
      %v3607 = vpack.c.bf16 %v3554, %v3554
      %v3608 = vpack.c.bf16 %v3556, %v3556
      %v3609 = vpack.c.bf16 %v3559, %v3559
      %v3610 = vpack.c.bf16 %v3561, %v3561
      %v3611 = vpack.c.bf16 %v3564, %v3564
      %v3612 = vpack.c.bf16 %v3566, %v3566
      %v3613 = vpack.c.bf16 %v3569, %v3569
      %v3614 = vpack.c.bf16 %v3571, %v3571
      %v3615 = vpack.c.bf16 %v3574, %v3574
      %v3616 = vpack.c.bf16 %v3576, %v3576
      %v3617 = vpack.c.bf16 %v3579, %v3579
      %v3618 = vpack.c.bf16 %v3581, %v3581
      %v3619 = vpack.c.bf16 %v3584, %v3584
      %v3620 = vpack.c.bf16 %v3586, %v3586
      %v3621 = vpack.c.bf16 %v3589, %v3589
      %v3622 = vpack.c.bf16 %v3591, %v3591
      %v3623 = vpack.c.bf16 %v3594, %v3594
      %v3624 = vld [vmem:[%s1 + $0x378] sm:$0xf]
      %v3625 = vld [vmem:[%s1 + $0x37c] sm:$0xf]
      %v3626 = vld [vmem:[%s1 + $0x380] sm:$0xf]
      %v3627 = vld [vmem:[%s1 + $0x384] sm:$0xf]
      %v3628 = vld [vmem:[%s1 + $0x388] sm:$0xf]
      %v3629 = vld [vmem:[%s1 + $0x38c] sm:$0xf]
      %v3630 = vld [vmem:[%s1 + $0x390] sm:$0xf]
      %v3631 = vld [vmem:[%s1 + $0x394] sm:$0xf]
      %v3632 = vld [vmem:[%s1 + $0x398] sm:$0xf]
      %v3633 = vld [vmem:[%s1 + $0x39c] sm:$0xf]
      %v3634 = vld [vmem:[%s1 + $0x3a0] sm:$0xf]
      %v3635 = vld [vmem:[%s1 + $0x3a4] sm:$0xf]
      %v3636 = vld [vmem:[%s1 + $0x3a8] sm:$0xf]
      %v3637 = vld [vmem:[%s1 + $0x3ac] sm:$0xf]
      %v3638 = vld [vmem:[%s1 + $0x3b0] sm:$0xf]
      %v3639 = vld [vmem:[%s1 + $0x3b4] sm:$0xf]
      %v3643 = vunpack.c.l.b16 %v3600
      %v3644 = vunpack.c.l.b16 %v3601
      %v3645 = vunpack.c.l.b16 %v3602
      %v3646 = vpack.c.b16 %v3644, %v3643
      %v3647 = vpack.c.b16 %v3645, %v3645
      %v3656 = vunpack.c.l.b16 %v3632
      %v3657 = vunpack.c.l.b16 %v3633
      %v3658 = vunpack.c.l.b16 %v3634
      %v3659 = vunpack.c.l.b16 %v3635
      %v3660 = vunpack.c.l.b16 %v3636
      %v3661 = vunpack.c.l.b16 %v3637
      %v3662 = vunpack.c.l.b16 %v3638
      %v3663 = vunpack.c.l.b16 %v3639
      %v3664 = vpack.c.b16 %v3657, %v3656
      %v3665 = vpack.c.b16 %v3659, %v3658
      %v3666 = vpack.c.b16 %v3661, %v3660
      %v3667 = vpack.c.b16 %v3663, %v3662
      %v3673 = vsel %vm414, %v3646, 0
      %v3676 = vsel %vm414, %v3647, 0
      %3678 = vmatpush.bf16.msra.mxu0 0
      %3679 = vmatpush.bf16.msra.mxu0 0
      %3680 = vmatpush.bf16.msra.mxu0 0
      %3681 = vmatpush.bf16.msra.mxu0 0
      %3682 = vmatpush.bf16.msra.mxu0 %v3667
      %3683 = vmatpush.bf16.msra.mxu0 %v3666
      %3684 = vmatpush.bf16.msra.mxu0 %v3665
      %3685 = vmatpush.bf16.msra.mxu0 %v3664
      %3686 = vmatmul.bf16.gmra.mxu0 %v3673
      %v3687 = vpop.f32.mrf.mxu0
      %v3688 = vadd.f32 0.0, %v3687
      %v3689 = vpop.f32.mrf.mxu0
      %v3690 = vadd.f32 0.0, %v3689
      %3691 = vmatmul.bf16.gmra.mxu0 %v3676
      %v3692 = vpop.f32.mrf.mxu0
      %v3693 = vadd.f32 0.0, %v3692
      %v3694 = vpop.f32.mrf.mxu0
      %3695 = vdwg.mxu0
      %v3696 = vld [vmem:[%s1 + $0x3b8] sm:$0xf]
      %v3697 = vld [vmem:[%s1 + $0x3bc] sm:$0xf]
      %v3698 = vld [vmem:[%s1 + $0x3c0] sm:$0xf]
      %v3699 = vld [vmem:[%s1 + $0x3c4] sm:$0xf]
      %v3700 = vld [vmem:[%s1 + $0x3c8] sm:$0xf]
      %v3701 = vld [vmem:[%s1 + $0x3cc] sm:$0xf]
      %v3702 = vld [vmem:[%s1 + $0x3d0] sm:$0xf]
      %v3703 = vld [vmem:[%s1 + $0x3d4] sm:$0xf]
      %v3704 = vld [vmem:[%s1 + $0x3d8] sm:$0xf]
      %v3705 = vld [vmem:[%s1 + $0x3dc] sm:$0xf]
      %v3706 = vld [vmem:[%s1 + $0x3e0] sm:$0xf]
      %v3707 = vld [vmem:[%s1 + $0x3e4] sm:$0xf]
      %v3708 = vld [vmem:[%s1 + $0x3e8] sm:$0xf]
      %v3709 = vld [vmem:[%s1 + $0x3ec] sm:$0xf]
      %v3710 = vld [vmem:[%s1 + $0x3f0] sm:$0xf]
      %v3711 = vld [vmem:[%s1 + $0x3f4] sm:$0xf]
      %v3715 = vunpack.c.l.b16 %v3606
      %v3716 = vunpack.c.l.b16 %v3607
      %v3717 = vunpack.c.l.b16 %v3608
      %v3718 = vpack.c.b16 %v3716, %v3715
      %v3719 = vpack.c.b16 %v3717, %v3717
      %v3728 = vunpack.c.l.b16 %v3704
      %v3729 = vunpack.c.l.b16 %v3705
      %v3730 = vunpack.c.l.b16 %v3706
      %v3731 = vunpack.c.l.b16 %v3707
      %v3732 = vunpack.c.l.b16 %v3708
      %v3733 = vunpack.c.l.b16 %v3709
      %v3734 = vunpack.c.l.b16 %v3710
      %v3735 = vunpack.c.l.b16 %v3711
      %v3736 = vpack.c.b16 %v3729, %v3728
      %v3737 = vpack.c.b16 %v3731, %v3730
      %v3738 = vpack.c.b16 %v3733, %v3732
      %v3739 = vpack.c.b16 %v3735, %v3734
      %v3745 = vsel %vm414, %v3718, 0
      %v3748 = vsel %vm414, %v3719, 0
      %3750 = vmatpush.bf16.msra.mxu0 0
      %3751 = vmatpush.bf16.msra.mxu0 0
      %3752 = vmatpush.bf16.msra.mxu0 0
      %3753 = vmatpush.bf16.msra.mxu0 0
      %3754 = vmatpush.bf16.msra.mxu0 %v3739
      %3755 = vmatpush.bf16.msra.mxu0 %v3738
      %3756 = vmatpush.bf16.msra.mxu0 %v3737
      %3757 = vmatpush.bf16.msra.mxu0 %v3736
      %3758 = vmatmul.bf16.gmra.mxu0 %v3745
      %v3759 = vpop.f32.mrf.mxu0
      %v3760 = vadd.f32 0.0, %v3759
      %v3761 = vpop.f32.mrf.mxu0
      %v3762 = vadd.f32 0.0, %v3761
      %3763 = vmatmul.bf16.gmra.mxu0 %v3748
      %v3764 = vpop.f32.mrf.mxu0
      %v3765 = vadd.f32 0.0, %v3764
      %v3766 = vpop.f32.mrf.mxu0
      %3767 = vdwg.mxu0
      %v3768 = vld [vmem:[%s1 + $0x3f8] sm:$0xf]
      %v3769 = vld [vmem:[%s1 + $0x3fc] sm:$0xf]
      %v3770 = vld [vmem:[%s1 + $0x400] sm:$0xf]
      %v3771 = vld [vmem:[%s1 + $0x404] sm:$0xf]
      %v3772 = vld [vmem:[%s1 + $0x408] sm:$0xf]
      %v3773 = vld [vmem:[%s1 + $0x40c] sm:$0xf]
      %v3774 = vld [vmem:[%s1 + $0x410] sm:$0xf]
      %v3775 = vld [vmem:[%s1 + $0x414] sm:$0xf]
      %v3776 = vld [vmem:[%s1 + $0x418] sm:$0xf]
      %v3777 = vld [vmem:[%s1 + $0x41c] sm:$0xf]
      %v3778 = vld [vmem:[%s1 + $0x420] sm:$0xf]
      %v3779 = vld [vmem:[%s1 + $0x424] sm:$0xf]
      %v3780 = vld [vmem:[%s1 + $0x428] sm:$0xf]
      %v3781 = vld [vmem:[%s1 + $0x42c] sm:$0xf]
      %v3782 = vld [vmem:[%s1 + $0x430] sm:$0xf]
      %v3783 = vld [vmem:[%s1 + $0x434] sm:$0xf]
      %v3787 = vunpack.c.l.b16 %v3612
      %v3788 = vunpack.c.l.b16 %v3613
      %v3789 = vunpack.c.l.b16 %v3614
      %v3790 = vpack.c.b16 %v3788, %v3787
      %v3791 = vpack.c.b16 %v3789, %v3789
      %v3800 = vunpack.c.l.b16 %v3776
      %v3801 = vunpack.c.l.b16 %v3777
      %v3802 = vunpack.c.l.b16 %v3778
      %v3803 = vunpack.c.l.b16 %v3779
      %v3804 = vunpack.c.l.b16 %v3780
      %v3805 = vunpack.c.l.b16 %v3781
      %v3806 = vunpack.c.l.b16 %v3782
      %v3807 = vunpack.c.l.b16 %v3783
      %v3808 = vpack.c.b16 %v3801, %v3800
      %v3809 = vpack.c.b16 %v3803, %v3802
      %v3810 = vpack.c.b16 %v3805, %v3804
      %v3811 = vpack.c.b16 %v3807, %v3806
      %v3817 = vsel %vm414, %v3790, 0
      %v3820 = vsel %vm414, %v3791, 0
      %3822 = vmatpush.bf16.msra.mxu0 0
      %3823 = vmatpush.bf16.msra.mxu0 0
      %3824 = vmatpush.bf16.msra.mxu0 0
      %3825 = vmatpush.bf16.msra.mxu0 0
      %3826 = vmatpush.bf16.msra.mxu0 %v3811
      %3827 = vmatpush.bf16.msra.mxu0 %v3810
      %3828 = vmatpush.bf16.msra.mxu0 %v3809
      %3829 = vmatpush.bf16.msra.mxu0 %v3808
      %3830 = vmatmul.bf16.gmra.mxu0 %v3817
      %v3831 = vpop.f32.mrf.mxu0
      %v3832 = vadd.f32 0.0, %v3831
      %v3833 = vpop.f32.mrf.mxu0
      %v3834 = vadd.f32 0.0, %v3833
      %3835 = vmatmul.bf16.gmra.mxu0 %v3820
      %v3836 = vpop.f32.mrf.mxu0
      %v3837 = vadd.f32 0.0, %v3836
      %v3838 = vpop.f32.mrf.mxu0
      %3839 = vdwg.mxu0
      %v3840 = vld [vmem:[%s1 + $0x438] sm:$0xf]
      %v3841 = vld [vmem:[%s1 + $0x43c] sm:$0xf]
      %v3842 = vld [vmem:[%s1 + $0x440] sm:$0xf]
      %v3843 = vld [vmem:[%s1 + $0x444] sm:$0xf]
      %v3844 = vld [vmem:[%s1 + $0x448] sm:$0xf]
      %v3845 = vld [vmem:[%s1 + $0x44c] sm:$0xf]
      %v3846 = vld [vmem:[%s1 + $0x450] sm:$0xf]
      %v3847 = vld [vmem:[%s1 + $0x454] sm:$0xf]
      %v3848 = vld [vmem:[%s1 + $0x458] sm:$0xf]
      %v3849 = vld [vmem:[%s1 + $0x45c] sm:$0xf]
      %v3850 = vld [vmem:[%s1 + $0x460] sm:$0xf]
      %v3851 = vld [vmem:[%s1 + $0x464] sm:$0xf]
      %v3852 = vld [vmem:[%s1 + $0x468] sm:$0xf]
      %v3853 = vld [vmem:[%s1 + $0x46c] sm:$0xf]
      %v3854 = vld [vmem:[%s1 + $0x470] sm:$0xf]
      %v3855 = vld [vmem:[%s1 + $0x474] sm:$0xf]
      %v3859 = vunpack.c.l.b16 %v3618
      %v3860 = vunpack.c.l.b16 %v3619
      %v3861 = vunpack.c.l.b16 %v3620
      %v3862 = vpack.c.b16 %v3860, %v3859
      %v3863 = vpack.c.b16 %v3861, %v3861
      %v3872 = vunpack.c.l.b16 %v3848
      %v3873 = vunpack.c.l.b16 %v3849
      %v3874 = vunpack.c.l.b16 %v3850
      %v3875 = vunpack.c.l.b16 %v3851
      %v3876 = vunpack.c.l.b16 %v3852
      %v3877 = vunpack.c.l.b16 %v3853
      %v3878 = vunpack.c.l.b16 %v3854
      %v3879 = vunpack.c.l.b16 %v3855
      %v3880 = vpack.c.b16 %v3873, %v3872
      %v3881 = vpack.c.b16 %v3875, %v3874
      %v3882 = vpack.c.b16 %v3877, %v3876
      %v3883 = vpack.c.b16 %v3879, %v3878
      %v3889 = vsel %vm414, %v3862, 0
      %v3892 = vsel %vm414, %v3863, 0
      %3894 = vmatpush.bf16.msra.mxu0 0
      %3895 = vmatpush.bf16.msra.mxu0 0
      %3896 = vmatpush.bf16.msra.mxu0 0
      %3897 = vmatpush.bf16.msra.mxu0 0
      %3898 = vmatpush.bf16.msra.mxu0 %v3883
      %3899 = vmatpush.bf16.msra.mxu0 %v3882
      %3900 = vmatpush.bf16.msra.mxu0 %v3881
      %3901 = vmatpush.bf16.msra.mxu0 %v3880
      %3902 = vmatmul.bf16.gmra.mxu0 %v3889
      %v3903 = vpop.f32.mrf.mxu0
      %v3904 = vadd.f32 0.0, %v3903
      %v3905 = vpop.f32.mrf.mxu0
      %v3906 = vadd.f32 0.0, %v3905
      %3907 = vmatmul.bf16.gmra.mxu0 %v3892
      %v3908 = vpop.f32.mrf.mxu0
      %v3909 = vadd.f32 0.0, %v3908
      %v3910 = vpop.f32.mrf.mxu0
      %3911 = vdwg.mxu0
      %v3912 = vld [vmem:[%s1 + $0x478] sm:$0xf]
      %v3913 = vld [vmem:[%s1 + $0x47c] sm:$0xf]
      %v3914 = vld [vmem:[%s1 + $0x480] sm:$0xf]
      %v3915 = vld [vmem:[%s1 + $0x484] sm:$0xf]
      %v3916 = vld [vmem:[%s1 + $0x488] sm:$0xf]
      %v3917 = vld [vmem:[%s1 + $0x48c] sm:$0xf]
      %v3918 = vld [vmem:[%s1 + $0x490] sm:$0xf]
      %v3919 = vld [vmem:[%s1 + $0x494] sm:$0xf]
      %v3923 = vunpack.c.l.b16 %v3621
      %v3924 = vunpack.c.l.b16 %v3622
      %v3925 = vunpack.c.l.b16 %v3623
      %v3926 = vpack.c.b16 %v3924, %v3923
      %v3927 = vpack.c.b16 %v3925, %v3925
      %v3936 = vunpack.c.l.b16 %v3912
      %v3937 = vunpack.c.l.b16 %v3913
      %v3938 = vunpack.c.l.b16 %v3914
      %v3939 = vunpack.c.l.b16 %v3915
      %v3940 = vunpack.c.l.b16 %v3916
      %v3941 = vunpack.c.l.b16 %v3917
      %v3942 = vunpack.c.l.b16 %v3918
      %v3943 = vunpack.c.l.b16 %v3919
      %v3944 = vpack.c.b16 %v3937, %v3936
      %v3945 = vpack.c.b16 %v3939, %v3938
      %v3946 = vpack.c.b16 %v3941, %v3940
      %v3947 = vpack.c.b16 %v3943, %v3942
      %v3953 = vsel %vm414, %v3926, 0
      %v3956 = vsel %vm414, %v3927, 0
      %3958 = vmatpush.bf16.msra.mxu0 0
      %3959 = vmatpush.bf16.msra.mxu0 0
      %3960 = vmatpush.bf16.msra.mxu0 0
      %3961 = vmatpush.bf16.msra.mxu0 0
      %3962 = vmatpush.bf16.msra.mxu0 %v3947
      %3963 = vmatpush.bf16.msra.mxu0 %v3946
      %3964 = vmatpush.bf16.msra.mxu0 %v3945
      %3965 = vmatpush.bf16.msra.mxu0 %v3944
      %3966 = vmatmul.bf16.gmra.mxu0 %v3953
      %v3967 = vpop.f32.mrf.mxu0
      %v3968 = vadd.f32 0.0, %v3967
      %v3969 = vpop.f32.mrf.mxu0
      %v3970 = vadd.f32 0.0, %v3969
      %3971 = vmatmul.bf16.gmra.mxu0 %v3956
      %v3972 = vpop.f32.mrf.mxu0
      %v3973 = vadd.f32 0.0, %v3972
      %v3974 = vpop.f32.mrf.mxu0
      %3975 = vdwg.mxu0
      %v3979 = vunpack.c.l.b16 %v3597
      %v3980 = vunpack.c.l.b16 %v3598
      %v3981 = vunpack.c.l.b16 %v3599
      %v3982 = vpack.c.b16 %v3980, %v3979
      %v3983 = vpack.c.b16 %v3981, %v3981
      %v3992 = vunpack.c.l.b16 %v3624
      %v3993 = vunpack.c.l.b16 %v3625
      %v3994 = vunpack.c.l.b16 %v3626
      %v3995 = vunpack.c.l.b16 %v3627
      %v3996 = vunpack.c.l.b16 %v3628
      %v3997 = vunpack.c.l.b16 %v3629
      %v3998 = vunpack.c.l.b16 %v3630
      %v3999 = vunpack.c.l.b16 %v3631
      %v4000 = vpack.c.b16 %v3993, %v3992
      %v4001 = vpack.c.b16 %v3995, %v3994
      %v4002 = vpack.c.b16 %v3997, %v3996
      %v4003 = vpack.c.b16 %v3999, %v3998
      %v4009 = vsel %vm414, %v3982, 0
      %v4012 = vsel %vm414, %v3983, 0
      %4014 = vmatpush.bf16.msra.mxu0 0
      %4015 = vmatpush.bf16.msra.mxu0 0
      %4016 = vmatpush.bf16.msra.mxu0 0
      %4017 = vmatpush.bf16.msra.mxu0 0
      %4018 = vmatpush.bf16.msra.mxu0 %v4003
      %4019 = vmatpush.bf16.msra.mxu0 %v4002
      %4020 = vmatpush.bf16.msra.mxu0 %v4001
      %4021 = vmatpush.bf16.msra.mxu0 %v4000
      %4022 = vmatmul.bf16.gmra.mxu0 %v4009
      %v4023 = vpop.f32.mrf.mxu0
      %v4024 = vadd.f32 %v3688, %v4023
      %v4025 = vpop.f32.mrf.mxu0
      %v4026 = vadd.f32 %v3690, %v4025
      %4027 = vmatmul.bf16.gmra.mxu0 %v4012
      %v4028 = vpop.f32.mrf.mxu0
      %v4029 = vadd.f32 %v3693, %v4028
      %v4030 = vpop.f32.mrf.mxu0
      %4031 = vdwg.mxu0
      %v4035 = vunpack.c.l.b16 %v3603
      %v4036 = vunpack.c.l.b16 %v3604
      %v4037 = vunpack.c.l.b16 %v3605
      %v4038 = vpack.c.b16 %v4036, %v4035
      %v4039 = vpack.c.b16 %v4037, %v4037
      %v4048 = vunpack.c.l.b16 %v3696
      %v4049 = vunpack.c.l.b16 %v3697
      %v4050 = vunpack.c.l.b16 %v3698
      %v4051 = vunpack.c.l.b16 %v3699
      %v4052 = vunpack.c.l.b16 %v3700
      %v4053 = vunpack.c.l.b16 %v3701
      %v4054 = vunpack.c.l.b16 %v3702
      %v4055 = vunpack.c.l.b16 %v3703
      %v4056 = vpack.c.b16 %v4049, %v4048
      %v4057 = vpack.c.b16 %v4051, %v4050
      %v4058 = vpack.c.b16 %v4053, %v4052
      %v4059 = vpack.c.b16 %v4055, %v4054
      %v4065 = vsel %vm414, %v4038, 0
      %v4068 = vsel %vm414, %v4039, 0
      %4070 = vmatpush.bf16.msra.mxu0 0
      %4071 = vmatpush.bf16.msra.mxu0 0
      %4072 = vmatpush.bf16.msra.mxu0 0
      %4073 = vmatpush.bf16.msra.mxu0 0
      %4074 = vmatpush.bf16.msra.mxu0 %v4059
      %4075 = vmatpush.bf16.msra.mxu0 %v4058
      %4076 = vmatpush.bf16.msra.mxu0 %v4057
      %4077 = vmatpush.bf16.msra.mxu0 %v4056
      %4078 = vmatmul.bf16.gmra.mxu0 %v4065
      %v4079 = vpop.f32.mrf.mxu0
      %v4080 = vadd.f32 %v3760, %v4079
      %v4081 = vpop.f32.mrf.mxu0
      %v4082 = vadd.f32 %v3762, %v4081
      %4083 = vmatmul.bf16.gmra.mxu0 %v4068
      %v4084 = vpop.f32.mrf.mxu0
      %v4085 = vadd.f32 %v3765, %v4084
      %v4086 = vpop.f32.mrf.mxu0
      %4087 = vdwg.mxu0
      %v4091 = vunpack.c.l.b16 %v3609
      %v4092 = vunpack.c.l.b16 %v3610
      %v4093 = vunpack.c.l.b16 %v3611
      %v4094 = vpack.c.b16 %v4092, %v4091
      %v4095 = vpack.c.b16 %v4093, %v4093
      %v4104 = vunpack.c.l.b16 %v3768
      %v4105 = vunpack.c.l.b16 %v3769
      %v4106 = vunpack.c.l.b16 %v3770
      %v4107 = vunpack.c.l.b16 %v3771
      %v4108 = vunpack.c.l.b16 %v3772
      %v4109 = vunpack.c.l.b16 %v3773
      %v4110 = vunpack.c.l.b16 %v3774
      %v4111 = vunpack.c.l.b16 %v3775
      %v4112 = vpack.c.b16 %v4105, %v4104
      %v4113 = vpack.c.b16 %v4107, %v4106
      %v4114 = vpack.c.b16 %v4109, %v4108
      %v4115 = vpack.c.b16 %v4111, %v4110
      %v4121 = vsel %vm414, %v4094, 0
      %v4124 = vsel %vm414, %v4095, 0
      %4126 = vmatpush.bf16.msra.mxu0 0
      %4127 = vmatpush.bf16.msra.mxu0 0
      %4128 = vmatpush.bf16.msra.mxu0 0
      %4129 = vmatpush.bf16.msra.mxu0 0
      %4130 = vmatpush.bf16.msra.mxu0 %v4115
      %4131 = vmatpush.bf16.msra.mxu0 %v4114
      %4132 = vmatpush.bf16.msra.mxu0 %v4113
      %4133 = vmatpush.bf16.msra.mxu0 %v4112
      %4134 = vmatmul.bf16.gmra.mxu0 %v4121
      %v4135 = vpop.f32.mrf.mxu0
      %v4136 = vadd.f32 %v3832, %v4135
      %v4137 = vpop.f32.mrf.mxu0
      %v4138 = vadd.f32 %v3834, %v4137
      %4139 = vmatmul.bf16.gmra.mxu0 %v4124
      %v4140 = vpop.f32.mrf.mxu0
      %v4141 = vadd.f32 %v3837, %v4140
      %v4142 = vpop.f32.mrf.mxu0
      %4143 = vdwg.mxu0
      %v4147 = vunpack.c.l.b16 %v3615
      %v4148 = vunpack.c.l.b16 %v3616
      %v4149 = vunpack.c.l.b16 %v3617
      %v4150 = vpack.c.b16 %v4148, %v4147
      %v4151 = vpack.c.b16 %v4149, %v4149
      %v4160 = vunpack.c.l.b16 %v3840
      %v4161 = vunpack.c.l.b16 %v3841
      %v4162 = vunpack.c.l.b16 %v3842
      %v4163 = vunpack.c.l.b16 %v3843
      %v4164 = vunpack.c.l.b16 %v3844
      %v4165 = vunpack.c.l.b16 %v3845
      %v4166 = vunpack.c.l.b16 %v3846
      %v4167 = vunpack.c.l.b16 %v3847
      %v4168 = vpack.c.b16 %v4161, %v4160
      %v4169 = vpack.c.b16 %v4163, %v4162
      %v4170 = vpack.c.b16 %v4165, %v4164
      %v4171 = vpack.c.b16 %v4167, %v4166
      %v4177 = vsel %vm414, %v4150, 0
      %v4180 = vsel %vm414, %v4151, 0
      %4182 = vmatpush.bf16.msra.mxu0 0
      %4183 = vmatpush.bf16.msra.mxu0 0
      %4184 = vmatpush.bf16.msra.mxu0 0
      %4185 = vmatpush.bf16.msra.mxu0 0
      %4186 = vmatpush.bf16.msra.mxu0 %v4171
      %4187 = vmatpush.bf16.msra.mxu0 %v4170
      %4188 = vmatpush.bf16.msra.mxu0 %v4169
      %4189 = vmatpush.bf16.msra.mxu0 %v4168
      %4190 = vmatmul.bf16.gmra.mxu0 %v4177
      %v4191 = vpop.f32.mrf.mxu0
      %v4192 = vadd.f32 %v3904, %v4191
      %v4193 = vpop.f32.mrf.mxu0
      %v4194 = vadd.f32 %v3906, %v4193
      %4195 = vmatmul.bf16.gmra.mxu0 %v4180
      %v4196 = vpop.f32.mrf.mxu0
      %v4197 = vadd.f32 %v3909, %v4196
      %v4198 = vpop.f32.mrf.mxu0
      %4199 = vdwg.mxu0
      %v4200 = vadd.f32 %v4024, %v4080
      %v4201 = vadd.f32 %v4026, %v4082
      %v4202 = vadd.f32 %v4029, %v4085
      %v4203 = vadd.f32 %v4136, %v4192
      %v4204 = vadd.f32 %v4138, %v4194
      %v4205 = vadd.f32 %v4141, %v4197
      %v4206 = vadd.f32 %v4200, %v4203
      %v4207 = vadd.f32 %v4201, %v4204
      %v4208 = vadd.f32 %v4202, %v4205
      %v4209 = vadd.f32 %v4206, %v3968
      %v4210 = vadd.f32 %v4207, %v3970
      %v4211 = vadd.f32 %v4208, %v3973
      %v4212 = vld [vmem:[%s2 + $0x48] sm:$0x1]
      %v4213 = vperm.slane %v4212, 0
      %v4214 = vadd.f32 %v4209, %v4213
      %v4215 = vadd.f32 %v4210, %v4213
      %v4216 = vadd.f32 %v4211, %v4213
      %v4217 = vmax.f32 %v4214, 0.0
      %v4218 = vmax.f32 %v4215, 0.0
      %v4219 = vmax.f32 %v4216, 0.0
      %v4220 = vpack.c.bf16 %v4218, %v4217
      %v4221 = vpack.c.bf16 %v4219, %v4219
      %v4223 = vsel %vm1268, %v4221, 0
      %4225 = vmatpush.bf16.msra.mxu0 0
      %4226 = vmatpush.bf16.msra.mxu0 0
      %4227 = vmatpush.bf16.msra.mxu0 0
      %4228 = vmatpush.bf16.msra.mxu0 0
      %4229 = vmatpush.bf16.msra.mxu0 0
      %4230 = vmatpush.bf16.msra.mxu0 0
      %4231 = vmatpush.bf16.msra.mxu0 %v4223
      %4232 = vmatpush.bf16.msra.mxu0 %v4220
      %4233 = vmatmul.bf16.gmra.mxu0 %v2769
      %v4234 = vpop.f32.mrf.mxu0
      %v4235 = vadd.f32 0.0, %v4234
      %v4236 = vpop.f32.mrf.mxu0
      %v4237 = vadd.f32 0.0, %v4236
      %4238 = vmatmul.bf16.gmra.mxu0 %v2772
      %v4239 = vpop.f32.mrf.mxu0
      %v4240 = vadd.f32 0.0, %v4239
      %v4241 = vpop.f32.mrf.mxu0
      %v4242 = vadd.f32 0.0, %v4241
      %4243 = vmatmul.bf16.gmra.mxu0 %v2775
      %v4244 = vpop.f32.mrf.mxu0
      %v4245 = vadd.f32 0.0, %v4244
      %v4246 = vpop.f32.mrf.mxu0
      %v4247 = vadd.f32 0.0, %v4246
      %4248 = vmatmul.bf16.gmra.mxu0 %v2778
      %v4249 = vpop.f32.mrf.mxu0
      %v4250 = vadd.f32 0.0, %v4249
      %v4251 = vpop.f32.mrf.mxu0
      %v4252 = vadd.f32 0.0, %v4251
      %4253 = vmatmul.bf16.gmra.mxu0 %v2781
      %v4254 = vpop.f32.mrf.mxu0
      %v4255 = vadd.f32 0.0, %v4254
      %v4256 = vpop.f32.mrf.mxu0
      %v4257 = vadd.f32 0.0, %v4256
      %4258 = vmatmul.bf16.gmra.mxu0 %v2784
      %v4259 = vpop.f32.mrf.mxu0
      %v4260 = vadd.f32 0.0, %v4259
      %v4261 = vpop.f32.mrf.mxu0
      %v4262 = vadd.f32 0.0, %v4261
      %4263 = vmatmul.bf16.gmra.mxu0 %v2787
      %v4264 = vpop.f32.mrf.mxu0
      %v4265 = vadd.f32 0.0, %v4264
      %v4266 = vpop.f32.mrf.mxu0
      %v4267 = vadd.f32 0.0, %v4266
      %4268 = vmatmul.bf16.gmra.mxu0 %v2790
      %v4269 = vpop.f32.mrf.mxu0
      %v4270 = vadd.f32 0.0, %v4269
      %v4271 = vpop.f32.mrf.mxu0
      %v4272 = vadd.f32 0.0, %v4271
      %4273 = vmatmul.bf16.gmra.mxu0 %v2793
      %v4274 = vpop.f32.mrf.mxu0
      %v4275 = vadd.f32 0.0, %v4274
      %v4276 = vpop.f32.mrf.mxu0
      %v4277 = vadd.f32 0.0, %v4276
      %4278 = vmatmul.bf16.gmra.mxu0 %v2796
      %v4279 = vpop.f32.mrf.mxu0
      %v4280 = vadd.f32 0.0, %v4279
      %v4281 = vpop.f32.mrf.mxu0
      %v4282 = vadd.f32 0.0, %v4281
      %4283 = vmatmul.bf16.gmra.mxu0 %v2799
      %v4284 = vpop.f32.mrf.mxu0
      %v4285 = vadd.f32 0.0, %v4284
      %v4286 = vpop.f32.mrf.mxu0
      %v4287 = vadd.f32 0.0, %v4286
      %4288 = vmatmul.bf16.gmra.mxu0 %v2802
      %v4289 = vpop.f32.mrf.mxu0
      %v4290 = vadd.f32 0.0, %v4289
      %v4291 = vpop.f32.mrf.mxu0
      %v4292 = vadd.f32 0.0, %v4291
      %4293 = vmatmul.bf16.gmra.mxu0 %v2805
      %v4294 = vpop.f32.mrf.mxu0
      %v4295 = vadd.f32 0.0, %v4294
      %v4296 = vpop.f32.mrf.mxu0
      %v4297 = vadd.f32 0.0, %v4296
      %4298 = vmatmul.bf16.gmra.mxu0 %v2808
      %v4299 = vpop.f32.mrf.mxu0
      %v4300 = vadd.f32 0.0, %v4299
      %v4301 = vpop.f32.mrf.mxu0
      %4302 = vdwg.mxu0
      %v4303 = vpack.c.bf16 %v4235, %v4235
      %v4304 = vpack.c.bf16 %v4237, %v4237
      %v4305 = vpack.c.bf16 %v4240, %v4240
      %v4306 = vpack.c.bf16 %v4242, %v4242
      %v4307 = vpack.c.bf16 %v4245, %v4245
      %v4308 = vpack.c.bf16 %v4247, %v4247
      %v4309 = vpack.c.bf16 %v4250, %v4250
      %v4310 = vpack.c.bf16 %v4252, %v4252
      %v4311 = vpack.c.bf16 %v4255, %v4255
      %v4312 = vpack.c.bf16 %v4257, %v4257
      %v4313 = vpack.c.bf16 %v4260, %v4260
      %v4314 = vpack.c.bf16 %v4262, %v4262
      %v4315 = vpack.c.bf16 %v4265, %v4265
      %v4316 = vpack.c.bf16 %v4267, %v4267
      %v4317 = vpack.c.bf16 %v4270, %v4270
      %v4318 = vpack.c.bf16 %v4272, %v4272
      %v4319 = vpack.c.bf16 %v4275, %v4275
      %v4320 = vpack.c.bf16 %v4277, %v4277
      %v4321 = vpack.c.bf16 %v4280, %v4280
      %v4322 = vpack.c.bf16 %v4282, %v4282
      %v4323 = vpack.c.bf16 %v4285, %v4285
      %v4324 = vpack.c.bf16 %v4287, %v4287
      %v4325 = vpack.c.bf16 %v4290, %v4290
      %v4326 = vpack.c.bf16 %v4292, %v4292
      %v4327 = vpack.c.bf16 %v4295, %v4295
      %v4328 = vpack.c.bf16 %v4297, %v4297
      %v4329 = vpack.c.bf16 %v4300, %v4300
      %v4330 = vld [vmem:[%s1 + $0x498] sm:$0xf]
      %v4331 = vld [vmem:[%s1 + $0x49c] sm:$0xf]
      %v4332 = vld [vmem:[%s1 + $0x4a0] sm:$0xf]
      %v4333 = vld [vmem:[%s1 + $0x4a4] sm:$0xf]
      %v4334 = vld [vmem:[%s1 + $0x4a8] sm:$0xf]
      %v4335 = vld [vmem:[%s1 + $0x4ac] sm:$0xf]
      %v4336 = vld [vmem:[%s1 + $0x4b0] sm:$0xf]
      %v4337 = vld [vmem:[%s1 + $0x4b4] sm:$0xf]
      %v4338 = vld [vmem:[%s1 + $0x4b8] sm:$0xf]
      %v4339 = vld [vmem:[%s1 + $0x4bc] sm:$0xf]
      %v4340 = vld [vmem:[%s1 + $0x4c0] sm:$0xf]
      %v4341 = vld [vmem:[%s1 + $0x4c4] sm:$0xf]
      %v4342 = vld [vmem:[%s1 + $0x4c8] sm:$0xf]
      %v4343 = vld [vmem:[%s1 + $0x4cc] sm:$0xf]
      %v4344 = vld [vmem:[%s1 + $0x4d0] sm:$0xf]
      %v4345 = vld [vmem:[%s1 + $0x4d4] sm:$0xf]
      %v4349 = vunpack.c.l.b16 %v4306
      %v4350 = vunpack.c.l.b16 %v4307
      %v4351 = vunpack.c.l.b16 %v4308
      %v4352 = vpack.c.b16 %v4350, %v4349
      %v4353 = vpack.c.b16 %v4351, %v4351
      %v4362 = vunpack.c.l.b16 %v4338
      %v4363 = vunpack.c.l.b16 %v4339
      %v4364 = vunpack.c.l.b16 %v4340
      %v4365 = vunpack.c.l.b16 %v4341
      %v4366 = vunpack.c.l.b16 %v4342
      %v4367 = vunpack.c.l.b16 %v4343
      %v4368 = vunpack.c.l.b16 %v4344
      %v4369 = vunpack.c.l.b16 %v4345
      %v4370 = vpack.c.b16 %v4363, %v4362
      %v4371 = vpack.c.b16 %v4365, %v4364
      %v4372 = vpack.c.b16 %v4367, %v4366
      %v4373 = vpack.c.b16 %v4369, %v4368
      %v4379 = vsel %vm414, %v4352, 0
      %v4382 = vsel %vm414, %v4353, 0
      %4384 = vmatpush.bf16.msra.mxu0 0
      %4385 = vmatpush.bf16.msra.mxu0 0
      %4386 = vmatpush.bf16.msra.mxu0 0
      %4387 = vmatpush.bf16.msra.mxu0 0
      %4388 = vmatpush.bf16.msra.mxu0 %v4373
      %4389 = vmatpush.bf16.msra.mxu0 %v4372
      %4390 = vmatpush.bf16.msra.mxu0 %v4371
      %4391 = vmatpush.bf16.msra.mxu0 %v4370
      %4392 = vmatmul.bf16.gmra.mxu0 %v4379
      %v4393 = vpop.f32.mrf.mxu0
      %v4394 = vadd.f32 0.0, %v4393
      %v4395 = vpop.f32.mrf.mxu0
      %v4396 = vadd.f32 0.0, %v4395
      %4397 = vmatmul.bf16.gmra.mxu0 %v4382
      %v4398 = vpop.f32.mrf.mxu0
      %v4399 = vadd.f32 0.0, %v4398
      %v4400 = vpop.f32.mrf.mxu0
      %4401 = vdwg.mxu0
      %v4402 = vld [vmem:[%s1 + $0x4d8] sm:$0xf]
      %v4403 = vld [vmem:[%s1 + $0x4dc] sm:$0xf]
      %v4404 = vld [vmem:[%s1 + $0x4e0] sm:$0xf]
      %v4405 = vld [vmem:[%s1 + $0x4e4] sm:$0xf]
      %v4406 = vld [vmem:[%s1 + $0x4e8] sm:$0xf]
      %v4407 = vld [vmem:[%s1 + $0x4ec] sm:$0xf]
      %v4408 = vld [vmem:[%s1 + $0x4f0] sm:$0xf]
      %v4409 = vld [vmem:[%s1 + $0x4f4] sm:$0xf]
      %v4410 = vld [vmem:[%s1 + $0x4f8] sm:$0xf]
      %v4411 = vld [vmem:[%s1 + $0x4fc] sm:$0xf]
      %v4412 = vld [vmem:[%s1 + $0x500] sm:$0xf]
      %v4413 = vld [vmem:[%s1 + $0x504] sm:$0xf]
      %v4414 = vld [vmem:[%s1 + $0x508] sm:$0xf]
      %v4415 = vld [vmem:[%s1 + $0x50c] sm:$0xf]
      %v4416 = vld [vmem:[%s1 + $0x510] sm:$0xf]
      %v4417 = vld [vmem:[%s1 + $0x514] sm:$0xf]
      %v4421 = vunpack.c.l.b16 %v4312
      %v4422 = vunpack.c.l.b16 %v4313
      %v4423 = vunpack.c.l.b16 %v4314
      %v4424 = vpack.c.b16 %v4422, %v4421
      %v4425 = vpack.c.b16 %v4423, %v4423
      %v4434 = vunpack.c.l.b16 %v4410
      %v4435 = vunpack.c.l.b16 %v4411
      %v4436 = vunpack.c.l.b16 %v4412
      %v4437 = vunpack.c.l.b16 %v4413
      %v4438 = vunpack.c.l.b16 %v4414
      %v4439 = vunpack.c.l.b16 %v4415
      %v4440 = vunpack.c.l.b16 %v4416
      %v4441 = vunpack.c.l.b16 %v4417
      %v4442 = vpack.c.b16 %v4435, %v4434
      %v4443 = vpack.c.b16 %v4437, %v4436
      %v4444 = vpack.c.b16 %v4439, %v4438
      %v4445 = vpack.c.b16 %v4441, %v4440
      %v4451 = vsel %vm414, %v4424, 0
      %v4454 = vsel %vm414, %v4425, 0
      %4456 = vmatpush.bf16.msra.mxu0 0
      %4457 = vmatpush.bf16.msra.mxu0 0
      %4458 = vmatpush.bf16.msra.mxu0 0
      %4459 = vmatpush.bf16.msra.mxu0 0
      %4460 = vmatpush.bf16.msra.mxu0 %v4445
      %4461 = vmatpush.bf16.msra.mxu0 %v4444
      %4462 = vmatpush.bf16.msra.mxu0 %v4443
      %4463 = vmatpush.bf16.msra.mxu0 %v4442
      %4464 = vmatmul.bf16.gmra.mxu0 %v4451
      %v4465 = vpop.f32.mrf.mxu0
      %v4466 = vadd.f32 0.0, %v4465
      %v4467 = vpop.f32.mrf.mxu0
      %v4468 = vadd.f32 0.0, %v4467
      %4469 = vmatmul.bf16.gmra.mxu0 %v4454
      %v4470 = vpop.f32.mrf.mxu0
      %v4471 = vadd.f32 0.0, %v4470
      %v4472 = vpop.f32.mrf.mxu0
      %4473 = vdwg.mxu0
      %v4474 = vld [vmem:[%s1 + $0x518] sm:$0xf]
      %v4475 = vld [vmem:[%s1 + $0x51c] sm:$0xf]
      %v4476 = vld [vmem:[%s1 + $0x520] sm:$0xf]
      %v4477 = vld [vmem:[%s1 + $0x524] sm:$0xf]
      %v4478 = vld [vmem:[%s1 + $0x528] sm:$0xf]
      %v4479 = vld [vmem:[%s1 + $0x52c] sm:$0xf]
      %v4480 = vld [vmem:[%s1 + $0x530] sm:$0xf]
      %v4481 = vld [vmem:[%s1 + $0x534] sm:$0xf]
      %v4482 = vld [vmem:[%s1 + $0x538] sm:$0xf]
      %v4483 = vld [vmem:[%s1 + $0x53c] sm:$0xf]
      %v4484 = vld [vmem:[%s1 + $0x540] sm:$0xf]
      %v4485 = vld [vmem:[%s1 + $0x544] sm:$0xf]
      %v4486 = vld [vmem:[%s1 + $0x548] sm:$0xf]
      %v4487 = vld [vmem:[%s1 + $0x54c] sm:$0xf]
      %v4488 = vld [vmem:[%s1 + $0x550] sm:$0xf]
      %v4489 = vld [vmem:[%s1 + $0x554] sm:$0xf]
      %v4493 = vunpack.c.l.b16 %v4318
      %v4494 = vunpack.c.l.b16 %v4319
      %v4495 = vunpack.c.l.b16 %v4320
      %v4496 = vpack.c.b16 %v4494, %v4493
      %v4497 = vpack.c.b16 %v4495, %v4495
      %v4506 = vunpack.c.l.b16 %v4482
      %v4507 = vunpack.c.l.b16 %v4483
      %v4508 = vunpack.c.l.b16 %v4484
      %v4509 = vunpack.c.l.b16 %v4485
      %v4510 = vunpack.c.l.b16 %v4486
      %v4511 = vunpack.c.l.b16 %v4487
      %v4512 = vunpack.c.l.b16 %v4488
      %v4513 = vunpack.c.l.b16 %v4489
      %v4514 = vpack.c.b16 %v4507, %v4506
      %v4515 = vpack.c.b16 %v4509, %v4508
      %v4516 = vpack.c.b16 %v4511, %v4510
      %v4517 = vpack.c.b16 %v4513, %v4512
      %v4523 = vsel %vm414, %v4496, 0
      %v4526 = vsel %vm414, %v4497, 0
      %4528 = vmatpush.bf16.msra.mxu0 0
      %4529 = vmatpush.bf16.msra.mxu0 0
      %4530 = vmatpush.bf16.msra.mxu0 0
      %4531 = vmatpush.bf16.msra.mxu0 0
      %4532 = vmatpush.bf16.msra.mxu0 %v4517
      %4533 = vmatpush.bf16.msra.mxu0 %v4516
      %4534 = vmatpush.bf16.msra.mxu0 %v4515
      %4535 = vmatpush.bf16.msra.mxu0 %v4514
      %4536 = vmatmul.bf16.gmra.mxu0 %v4523
      %v4537 = vpop.f32.mrf.mxu0
      %v4538 = vadd.f32 0.0, %v4537
      %v4539 = vpop.f32.mrf.mxu0
      %v4540 = vadd.f32 0.0, %v4539
      %4541 = vmatmul.bf16.gmra.mxu0 %v4526
      %v4542 = vpop.f32.mrf.mxu0
      %v4543 = vadd.f32 0.0, %v4542
      %v4544 = vpop.f32.mrf.mxu0
      %4545 = vdwg.mxu0
      %v4546 = vld [vmem:[%s1 + $0x558] sm:$0xf]
      %v4547 = vld [vmem:[%s1 + $0x55c] sm:$0xf]
      %v4548 = vld [vmem:[%s1 + $0x560] sm:$0xf]
      %v4549 = vld [vmem:[%s1 + $0x564] sm:$0xf]
      %v4550 = vld [vmem:[%s1 + $0x568] sm:$0xf]
      %v4551 = vld [vmem:[%s1 + $0x56c] sm:$0xf]
      %v4552 = vld [vmem:[%s1 + $0x570] sm:$0xf]
      %v4553 = vld [vmem:[%s1 + $0x574] sm:$0xf]
      %v4554 = vld [vmem:[%s1 + $0x578] sm:$0xf]
      %v4555 = vld [vmem:[%s1 + $0x57c] sm:$0xf]
      %v4556 = vld [vmem:[%s1 + $0x580] sm:$0xf]
      %v4557 = vld [vmem:[%s1 + $0x584] sm:$0xf]
      %v4558 = vld [vmem:[%s1 + $0x588] sm:$0xf]
      %v4559 = vld [vmem:[%s1 + $0x58c] sm:$0xf]
      %v4560 = vld [vmem:[%s1 + $0x590] sm:$0xf]
      %v4561 = vld [vmem:[%s1 + $0x594] sm:$0xf]
      %v4565 = vunpack.c.l.b16 %v4324
      %v4566 = vunpack.c.l.b16 %v4325
      %v4567 = vunpack.c.l.b16 %v4326
      %v4568 = vpack.c.b16 %v4566, %v4565
      %v4569 = vpack.c.b16 %v4567, %v4567
      %v4578 = vunpack.c.l.b16 %v4554
      %v4579 = vunpack.c.l.b16 %v4555
      %v4580 = vunpack.c.l.b16 %v4556
      %v4581 = vunpack.c.l.b16 %v4557
      %v4582 = vunpack.c.l.b16 %v4558
      %v4583 = vunpack.c.l.b16 %v4559
      %v4584 = vunpack.c.l.b16 %v4560
      %v4585 = vunpack.c.l.b16 %v4561
      %v4586 = vpack.c.b16 %v4579, %v4578
      %v4587 = vpack.c.b16 %v4581, %v4580
      %v4588 = vpack.c.b16 %v4583, %v4582
      %v4589 = vpack.c.b16 %v4585, %v4584
      %v4595 = vsel %vm414, %v4568, 0
      %v4598 = vsel %vm414, %v4569, 0
      %4600 = vmatpush.bf16.msra.mxu0 0
      %4601 = vmatpush.bf16.msra.mxu0 0
      %4602 = vmatpush.bf16.msra.mxu0 0
      %4603 = vmatpush.bf16.msra.mxu0 0
      %4604 = vmatpush.bf16.msra.mxu0 %v4589
      %4605 = vmatpush.bf16.msra.mxu0 %v4588
      %4606 = vmatpush.bf16.msra.mxu0 %v4587
      %4607 = vmatpush.bf16.msra.mxu0 %v4586
      %4608 = vmatmul.bf16.gmra.mxu0 %v4595
      %v4609 = vpop.f32.mrf.mxu0
      %v4610 = vadd.f32 0.0, %v4609
      %v4611 = vpop.f32.mrf.mxu0
      %v4612 = vadd.f32 0.0, %v4611
      %4613 = vmatmul.bf16.gmra.mxu0 %v4598
      %v4614 = vpop.f32.mrf.mxu0
      %v4615 = vadd.f32 0.0, %v4614
      %v4616 = vpop.f32.mrf.mxu0
      %4617 = vdwg.mxu0
      %v4618 = vld [vmem:[%s1 + $0x598] sm:$0xf]
      %v4619 = vld [vmem:[%s1 + $0x59c] sm:$0xf]
      %v4620 = vld [vmem:[%s1 + $0x5a0] sm:$0xf]
      %v4621 = vld [vmem:[%s1 + $0x5a4] sm:$0xf]
      %v4622 = vld [vmem:[%s1 + $0x5a8] sm:$0xf]
      %v4623 = vld [vmem:[%s1 + $0x5ac] sm:$0xf]
      %v4624 = vld [vmem:[%s1 + $0x5b0] sm:$0xf]
      %v4625 = vld [vmem:[%s1 + $0x5b4] sm:$0xf]
      %v4629 = vunpack.c.l.b16 %v4327
      %v4630 = vunpack.c.l.b16 %v4328
      %v4631 = vunpack.c.l.b16 %v4329
      %v4632 = vpack.c.b16 %v4630, %v4629
      %v4633 = vpack.c.b16 %v4631, %v4631
      %v4642 = vunpack.c.l.b16 %v4618
      %v4643 = vunpack.c.l.b16 %v4619
      %v4644 = vunpack.c.l.b16 %v4620
      %v4645 = vunpack.c.l.b16 %v4621
      %v4646 = vunpack.c.l.b16 %v4622
      %v4647 = vunpack.c.l.b16 %v4623
      %v4648 = vunpack.c.l.b16 %v4624
      %v4649 = vunpack.c.l.b16 %v4625
      %v4650 = vpack.c.b16 %v4643, %v4642
      %v4651 = vpack.c.b16 %v4645, %v4644
      %v4652 = vpack.c.b16 %v4647, %v4646
      %v4653 = vpack.c.b16 %v4649, %v4648
      %v4659 = vsel %vm414, %v4632, 0
      %v4662 = vsel %vm414, %v4633, 0
      %4664 = vmatpush.bf16.msra.mxu0 0
      %4665 = vmatpush.bf16.msra.mxu0 0
      %4666 = vmatpush.bf16.msra.mxu0 0
      %4667 = vmatpush.bf16.msra.mxu0 0
      %4668 = vmatpush.bf16.msra.mxu0 %v4653
      %4669 = vmatpush.bf16.msra.mxu0 %v4652
      %4670 = vmatpush.bf16.msra.mxu0 %v4651
      %4671 = vmatpush.bf16.msra.mxu0 %v4650
      %4672 = vmatmul.bf16.gmra.mxu0 %v4659
      %v4673 = vpop.f32.mrf.mxu0
      %v4674 = vadd.f32 0.0, %v4673
      %v4675 = vpop.f32.mrf.mxu0
      %v4676 = vadd.f32 0.0, %v4675
      %4677 = vmatmul.bf16.gmra.mxu0 %v4662
      %v4678 = vpop.f32.mrf.mxu0
      %v4679 = vadd.f32 0.0, %v4678
      %v4680 = vpop.f32.mrf.mxu0
      %4681 = vdwg.mxu0
      %v4685 = vunpack.c.l.b16 %v4303
      %v4686 = vunpack.c.l.b16 %v4304
      %v4687 = vunpack.c.l.b16 %v4305
      %v4688 = vpack.c.b16 %v4686, %v4685
      %v4689 = vpack.c.b16 %v4687, %v4687
      %v4698 = vunpack.c.l.b16 %v4330
      %v4699 = vunpack.c.l.b16 %v4331
      %v4700 = vunpack.c.l.b16 %v4332
      %v4701 = vunpack.c.l.b16 %v4333
      %v4702 = vunpack.c.l.b16 %v4334
      %v4703 = vunpack.c.l.b16 %v4335
      %v4704 = vunpack.c.l.b16 %v4336
      %v4705 = vunpack.c.l.b16 %v4337
      %v4706 = vpack.c.b16 %v4699, %v4698
      %v4707 = vpack.c.b16 %v4701, %v4700
      %v4708 = vpack.c.b16 %v4703, %v4702
      %v4709 = vpack.c.b16 %v4705, %v4704
      %v4715 = vsel %vm414, %v4688, 0
      %v4718 = vsel %vm414, %v4689, 0
      %4720 = vmatpush.bf16.msra.mxu0 0
      %4721 = vmatpush.bf16.msra.mxu0 0
      %4722 = vmatpush.bf16.msra.mxu0 0
      %4723 = vmatpush.bf16.msra.mxu0 0
      %4724 = vmatpush.bf16.msra.mxu0 %v4709
      %4725 = vmatpush.bf16.msra.mxu0 %v4708
      %4726 = vmatpush.bf16.msra.mxu0 %v4707
      %4727 = vmatpush.bf16.msra.mxu0 %v4706
      %4728 = vmatmul.bf16.gmra.mxu0 %v4715
      %v4729 = vpop.f32.mrf.mxu0
      %v4730 = vadd.f32 %v4394, %v4729
      %v4731 = vpop.f32.mrf.mxu0
      %v4732 = vadd.f32 %v4396, %v4731
      %4733 = vmatmul.bf16.gmra.mxu0 %v4718
      %v4734 = vpop.f32.mrf.mxu0
      %v4735 = vadd.f32 %v4399, %v4734
      %v4736 = vpop.f32.mrf.mxu0
      %4737 = vdwg.mxu0
      %v4741 = vunpack.c.l.b16 %v4309
      %v4742 = vunpack.c.l.b16 %v4310
      %v4743 = vunpack.c.l.b16 %v4311
      %v4744 = vpack.c.b16 %v4742, %v4741
      %v4745 = vpack.c.b16 %v4743, %v4743
      %v4754 = vunpack.c.l.b16 %v4402
      %v4755 = vunpack.c.l.b16 %v4403
      %v4756 = vunpack.c.l.b16 %v4404
      %v4757 = vunpack.c.l.b16 %v4405
      %v4758 = vunpack.c.l.b16 %v4406
      %v4759 = vunpack.c.l.b16 %v4407
      %v4760 = vunpack.c.l.b16 %v4408
      %v4761 = vunpack.c.l.b16 %v4409
      %v4762 = vpack.c.b16 %v4755, %v4754
      %v4763 = vpack.c.b16 %v4757, %v4756
      %v4764 = vpack.c.b16 %v4759, %v4758
      %v4765 = vpack.c.b16 %v4761, %v4760
      %v4771 = vsel %vm414, %v4744, 0
      %v4774 = vsel %vm414, %v4745, 0
      %4776 = vmatpush.bf16.msra.mxu0 0
      %4777 = vmatpush.bf16.msra.mxu0 0
      %4778 = vmatpush.bf16.msra.mxu0 0
      %4779 = vmatpush.bf16.msra.mxu0 0
      %4780 = vmatpush.bf16.msra.mxu0 %v4765
      %4781 = vmatpush.bf16.msra.mxu0 %v4764
      %4782 = vmatpush.bf16.msra.mxu0 %v4763
      %4783 = vmatpush.bf16.msra.mxu0 %v4762
      %4784 = vmatmul.bf16.gmra.mxu0 %v4771
      %v4785 = vpop.f32.mrf.mxu0
      %v4786 = vadd.f32 %v4466, %v4785
      %v4787 = vpop.f32.mrf.mxu0
      %v4788 = vadd.f32 %v4468, %v4787
      %4789 = vmatmul.bf16.gmra.mxu0 %v4774
      %v4790 = vpop.f32.mrf.mxu0
      %v4791 = vadd.f32 %v4471, %v4790
      %v4792 = vpop.f32.mrf.mxu0
      %4793 = vdwg.mxu0
      %v4797 = vunpack.c.l.b16 %v4315
      %v4798 = vunpack.c.l.b16 %v4316
      %v4799 = vunpack.c.l.b16 %v4317
      %v4800 = vpack.c.b16 %v4798, %v4797
      %v4801 = vpack.c.b16 %v4799, %v4799
      %v4810 = vunpack.c.l.b16 %v4474
      %v4811 = vunpack.c.l.b16 %v4475
      %v4812 = vunpack.c.l.b16 %v4476
      %v4813 = vunpack.c.l.b16 %v4477
      %v4814 = vunpack.c.l.b16 %v4478
      %v4815 = vunpack.c.l.b16 %v4479
      %v4816 = vunpack.c.l.b16 %v4480
      %v4817 = vunpack.c.l.b16 %v4481
      %v4818 = vpack.c.b16 %v4811, %v4810
      %v4819 = vpack.c.b16 %v4813, %v4812
      %v4820 = vpack.c.b16 %v4815, %v4814
      %v4821 = vpack.c.b16 %v4817, %v4816
      %v4827 = vsel %vm414, %v4800, 0
      %v4830 = vsel %vm414, %v4801, 0
      %4832 = vmatpush.bf16.msra.mxu0 0
      %4833 = vmatpush.bf16.msra.mxu0 0
      %4834 = vmatpush.bf16.msra.mxu0 0
      %4835 = vmatpush.bf16.msra.mxu0 0
      %4836 = vmatpush.bf16.msra.mxu0 %v4821
      %4837 = vmatpush.bf16.msra.mxu0 %v4820
      %4838 = vmatpush.bf16.msra.mxu0 %v4819
      %4839 = vmatpush.bf16.msra.mxu0 %v4818
      %4840 = vmatmul.bf16.gmra.mxu0 %v4827
      %v4841 = vpop.f32.mrf.mxu0
      %v4842 = vadd.f32 %v4538, %v4841
      %v4843 = vpop.f32.mrf.mxu0
      %v4844 = vadd.f32 %v4540, %v4843
      %4845 = vmatmul.bf16.gmra.mxu0 %v4830
      %v4846 = vpop.f32.mrf.mxu0
      %v4847 = vadd.f32 %v4543, %v4846
      %v4848 = vpop.f32.mrf.mxu0
      %4849 = vdwg.mxu0
      %v4853 = vunpack.c.l.b16 %v4321
      %v4854 = vunpack.c.l.b16 %v4322
      %v4855 = vunpack.c.l.b16 %v4323
      %v4856 = vpack.c.b16 %v4854, %v4853
      %v4857 = vpack.c.b16 %v4855, %v4855
      %v4866 = vunpack.c.l.b16 %v4546
      %v4867 = vunpack.c.l.b16 %v4547
      %v4868 = vunpack.c.l.b16 %v4548
      %v4869 = vunpack.c.l.b16 %v4549
      %v4870 = vunpack.c.l.b16 %v4550
      %v4871 = vunpack.c.l.b16 %v4551
      %v4872 = vunpack.c.l.b16 %v4552
      %v4873 = vunpack.c.l.b16 %v4553
      %v4874 = vpack.c.b16 %v4867, %v4866
      %v4875 = vpack.c.b16 %v4869, %v4868
      %v4876 = vpack.c.b16 %v4871, %v4870
      %v4877 = vpack.c.b16 %v4873, %v4872
      %v4883 = vsel %vm414, %v4856, 0
      %v4886 = vsel %vm414, %v4857, 0
      %4888 = vmatpush.bf16.msra.mxu0 0
      %4889 = vmatpush.bf16.msra.mxu0 0
      %4890 = vmatpush.bf16.msra.mxu0 0
      %4891 = vmatpush.bf16.msra.mxu0 0
      %4892 = vmatpush.bf16.msra.mxu0 %v4877
      %4893 = vmatpush.bf16.msra.mxu0 %v4876
      %4894 = vmatpush.bf16.msra.mxu0 %v4875
      %4895 = vmatpush.bf16.msra.mxu0 %v4874
      %4896 = vmatmul.bf16.gmra.mxu0 %v4883
      %v4897 = vpop.f32.mrf.mxu0
      %v4898 = vadd.f32 %v4610, %v4897
      %v4899 = vpop.f32.mrf.mxu0
      %v4900 = vadd.f32 %v4612, %v4899
      %4901 = vmatmul.bf16.gmra.mxu0 %v4886
      %v4902 = vpop.f32.mrf.mxu0
      %v4903 = vadd.f32 %v4615, %v4902
      %v4904 = vpop.f32.mrf.mxu0
      %4905 = vdwg.mxu0
      %v4906 = vadd.f32 %v4730, %v4786
      %v4907 = vadd.f32 %v4732, %v4788
      %v4908 = vadd.f32 %v4735, %v4791
      %v4909 = vadd.f32 %v4842, %v4898
      %v4910 = vadd.f32 %v4844, %v4900
      %v4911 = vadd.f32 %v4847, %v4903
      %v4912 = vadd.f32 %v4906, %v4909
      %v4913 = vadd.f32 %v4907, %v4910
      %v4914 = vadd.f32 %v4908, %v4911
      %v4915 = vadd.f32 %v4912, %v4674
      %v4916 = vadd.f32 %v4913, %v4676
      %v4917 = vadd.f32 %v4914, %v4679
      %v4918 = vld [vmem:[%s2 + $0x50] sm:$0x1]
      %v4919 = vperm.slane %v4918, 0
      %v4920 = vadd.f32 %v4915, %v4919
      %v4921 = vadd.f32 %v4916, %v4919
      %v4922 = vadd.f32 %v4917, %v4919
      %v4923 = vxor.u32 %v4920, 2147483648
      %v4924 = vxor.u32 %v4921, 2147483648
      %v4925 = vxor.u32 %v4922, 2147483648
      %v4926 = vmul.f32 %v4923, 1.442695
      %v4927 = vpow.pop %v4926
      %v4928 = vmul.f32 %v4924, 1.442695
      %v4929 = vpow.pop %v4928
      %v4930 = vmul.f32 %v4925, 1.442695
      %v4931 = vpow.pop %v4930
      %v4932 = vadd.f32 %v4927, 1.0
      %v4933 = vadd.f32 %v4929, 1.0
      %v4934 = vadd.f32 %v4931, 1.0
      %v4935 = vrcp.pop %v4932
      %v4936 = vmul.f32 %v4932, %v4935
      %v4937 = vsub.f32 1.0, %v4936
      %v4938 = vmul.f32 %v4935, %v4937
      %v4939 = vadd.f32 %v4935, %v4938
      %vm4940 = vweird.f32 %v4932
      %vm4941 = vweird.f32 %v4935
      %vm4942 = vmor %vm4940, %vm4941
      %v4943 = vsel %vm4942, %v4935, %v4939
      %v4944 = vand.u32 2147483647, %v4932
      %vm4945 = vcmp.eq.f32.partialorder %v4944, 8.507059e+37
      %v4946 = vand.u32 %v4932, 2147483648
      %v4947 = vor.u32 1.1754944e-38, %v4946
      %v4948 = vsel %vm4945, %v4947, %v4943
      %v4949 = vmul.f32 1.0, %v4948
      %v4950 = vrcp.pop %v4933
      %v4951 = vmul.f32 %v4933, %v4950
      %v4952 = vsub.f32 1.0, %v4951
      %v4953 = vmul.f32 %v4950, %v4952
      %v4954 = vadd.f32 %v4950, %v4953
      %vm4955 = vweird.f32 %v4933
      %vm4956 = vweird.f32 %v4950
      %vm4957 = vmor %vm4955, %vm4956
      %v4958 = vsel %vm4957, %v4950, %v4954
      %v4959 = vand.u32 2147483647, %v4933
      %vm4960 = vcmp.eq.f32.partialorder %v4959, 8.507059e+37
      %v4961 = vand.u32 %v4933, 2147483648
      %v4962 = vor.u32 1.1754944e-38, %v4961
      %v4963 = vsel %vm4960, %v4962, %v4958
      %v4964 = vmul.f32 1.0, %v4963
      %v4965 = vrcp.pop %v4934
      %v4966 = vmul.f32 %v4934, %v4965
      %v4967 = vsub.f32 1.0, %v4966
      %v4968 = vmul.f32 %v4965, %v4967
      %v4969 = vadd.f32 %v4965, %v4968
      %vm4970 = vweird.f32 %v4934
      %vm4971 = vweird.f32 %v4965
      %vm4972 = vmor %vm4970, %vm4971
      %v4973 = vsel %vm4972, %v4965, %v4969
      %v4974 = vand.u32 2147483647, %v4934
      %vm4975 = vcmp.eq.f32.partialorder %v4974, 8.507059e+37
      %v4976 = vand.u32 %v4934, 2147483648
      %v4977 = vor.u32 1.1754944e-38, %v4976
      %v4978 = vsel %vm4975, %v4977, %v4973
      %v4979 = vmul.f32 1.0, %v4978
      %4981 = vset.pattern.permute.xlu0 4
      %4982 = vperm.xlu0 %4981, %v4949
      %v4983 = vpop.permute.xlu0 %4982
      %4986 = vset.pattern.permute.xlu0 4
      %4987 = vperm.xlu0 %4986, %v4964
      %v4988 = vpop.permute.xlu0 %4987
      %4991 = vset.pattern.permute.xlu0 4
      %4992 = vperm.xlu0 %4991, %v4979
      %v4993 = vpop.permute.xlu0 %4992
      %v4995 = vmul.f32 %v4949, %v4983
      %v4996 = vmul.f32 %v4964, %v4988
      %v4997 = vmul.f32 %v4979, %v4993
      %4998 = vst [vmem:[%s205] sm:$0xff] %v4995
      %4999 = vst [vmem:[%s205 + $0x8] sm:$0xff] %v4996
      %5000 = vst [vmem:[%s205 + $0x10] sm:$0xff] %v4997
      %v5001 = vld [vmem:[%s2 + $0x58] sm:$0xff]
      %v5002 = vld [vmem:[%s2 + $0x60] sm:$0xff]
      %v5003 = vld [vmem:[%s2 + $0x68] sm:$0xff]
      %v5004 = vmax.f32 %v4920, 0.0
      %v5005 = vmax.f32 %v4921, 0.0
      %v5006 = vmax.f32 %v4922, 0.0
      %v5007 = vld [vmem:[%s2 + $0x70] sm:$0xff]
      %v5008 = vld [vmem:[%s2 + $0x78] sm:$0xff]
      %v5009 = vld [vmem:[%s2 + $0x80] sm:$0xff]
      %v5010 = vmul.f32 %v5004, %v5007
      %v5011 = vmul.f32 %v5005, %v5008
      %v5012 = vmul.f32 %v5006, %v5009
      %v5013 = vadd.f32 %v5001, %v5010
      %v5014 = vadd.f32 %v5002, %v5011
      %v5015 = vadd.f32 %v5003, %v5012
      %5016 = vst [vmem:[%s210] sm:$0xff] %v5013
      %5017 = vst [vmem:[%s210 + $0x8] sm:$0xff] %v5014
      %5018 = vst [vmem:[%s210 + $0x10] sm:$0xff] %v5015
      %p5019 = scmp.lt.s32.totalorder %s16, 1
      %s5020 = scalar_select %p5019, %s16, 1
      %s5021 = smul.addr %s5020, 3
      %s5022 = smul.addr %s5021, 8
      %s5023 = scalar_lea.vmem %s3, %s5022
      %p5024 = scmp.lt.s32.totalorder %s16, 1
      %s5025 = scalar_select %p5024, %s16, 1
      %s5026 = smul.addr %s5025, 3
      %s5027 = smul.addr %s5026, 8
      %s5028 = scalar_lea.vmem %s4, %s5027
      // Predicated region
      $region33: #{fcos_pss_inference.1} parent=31 // pred_check
        %p5029 = pneg %p102
      $region34: #{fcos_pss_inference.1} parent=31 // pred_check_branch
        %5031 = sbr.rel (%p5029) target = $region36
      $region35: #{fcos_pss_inference.1} parent=31 // pred_region
        _
      $region36: #{fcos_pss_inference.1} parent=31 // pred_fallthru
        _
      // Predicated region
      $region37: #{fcos_pss_inference.1} parent=31 // pred_check
        %p5032 = pneg %p128
      $region38: #{fcos_pss_inference.1} parent=31 // pred_check_branch
        %5034 = sbr.rel (%p5032) target = $region40
      $region39: #{fcos_pss_inference.1} parent=31 // pred_region
        _
      $region40: #{fcos_pss_inference.1} parent=31 // pred_fallthru
        _
    $region32: #{fcos_pss_inference.1} parent=5 // pred_fallthru
      _
    %p5035 = scmp.le.s32.totalorder 2, %s11
    // Predicated region
    $region41: #{fcos_pss_inference.1} parent=5 // pred_check
      %p5036 = pneg %p5035
    $region42: #{fcos_pss_inference.1} parent=5 // pred_check_branch
      %5038 = sbr.rel (%p5036) target = $region44
    $region43: #{fcos_pss_inference.1} parent=5 // pred_region
      %s5039 = ssub.s32 %s11, 2
      // Predicated region
      $region45: #{fcos_pss_inference.1} parent=43 // pred_check
        %p5040 = pneg %p108
      $region46: #{fcos_pss_inference.1} parent=43 // pred_check_branch
        %5042 = sbr.rel (%p5040) target = $region48
      $region47: #{fcos_pss_inference.1} parent=43 // pred_region
        %p5043 = scmp.lt.s32.totalorder %s17, 1
        %s5044 = scalar_select %p5043, %s17, 1
        %s5045 = smul.addr %s5044, 3
        %s5046 = smul.addr %s5045, 8
        %s5047 = scalar_lea.vmem %s3, %s5046
      $region48: #{fcos_pss_inference.1} parent=43 // pred_fallthru
        _
      // Predicated region
      $region49: #{fcos_pss_inference.1} parent=43 // pred_check
        %p5048 = pneg %p134
      $region50: #{fcos_pss_inference.1} parent=43 // pred_check_branch
        %5050 = sbr.rel (%p5048) target = $region52
      $region51: #{fcos_pss_inference.1} parent=43 // pred_region
        %p5051 = scmp.lt.s32.totalorder %s17, 1
        %s5052 = scalar_select %p5051, %s17, 1
        %s5053 = smul.addr %s5052, 3
        %s5054 = smul.addr %s5053, 8
        %s5055 = scalar_lea.vmem %s4, %s5054
      $region52: #{fcos_pss_inference.1} parent=43 // pred_fallthru
        _
    $region44: #{fcos_pss_inference.1} parent=5 // pred_fallthru
      _
  $region6: #{fcos_pss_inference.1} parent=0 // loop_footer
    %s15 = sadd.s32 1, %s11
  $region7: #{fcos_pss_inference.1} parent=0 // loop_footer_branch
    %10 = sbr.rel target = $region3
  $region8: #{fcos_pss_inference.1} parent=0 // loop_exit
    _

</llo_original>
